<compile_context>
chip_gen: v6e
topology: v6e:2x2x1
jax: 0.10.0
libtpu: 0.0.40
codegen_flags: <defaults>
</compile_context>

<pallas_src>
import math
import functools

import jax
import jax.numpy as jnp
from jax.experimental import pallas as pl
from jax.experimental.pallas import tpu as pltpu


def _layernorm(x, g, b, eps=1e-5):
    # PyTorch LayerNorm: biased variance, eps inside sqrt.
    mu = jnp.mean(x, axis=-1, keepdims=True)
    var = jnp.mean((x - mu) ** 2, axis=-1, keepdims=True)
    return (x - mu) * jax.lax.rsqrt(var + eps) * g + b


def _transformer_kernel(x_ref, pe_ref, bias_ref, w_emb_ref, b_emb_ref,
                        w_q_ref, b_q_ref, w_k_ref, b_k_ref, w_v_ref, b_v_ref,
                        w_o_ref, b_o_ref, ln1_g_ref, ln1_b_ref,
                        w_ff1_ref, b_ff1_ref, w_ff2_ref, b_ff2_ref,
                        ln2_g_ref, ln2_b_ref, w_fc_ref, b_fc_ref,
                        o_ref, h_ref, *, n_heads, head_dim):
    layer = pl.program_id(0)           # outer axis: layers (weights fetched once/layer)
    blk = pl.program_id(1)             # inner axis: batch blocks
    m = x_ref.shape[0]                 # rows in this slab = batch_block * seq_len
    rows = pl.ds(pl.multiple_of(blk * m, 8), m)
    scale = 1.0 / math.sqrt(head_dim)
    bf16 = jnp.bfloat16

    # ---- layer 0: embedding + positional encoding into the VMEM-resident state
    @pl.when(layer == 0)
    def _():
        h0 = jnp.dot(x_ref[...].astype(bf16), w_emb_ref[...],
                     preferred_element_type=jnp.float32)
        h_ref[rows, :] = h0 + b_emb_ref[...] + pe_ref[...]   # pe pre-tiled to (M, D)

    h = h_ref[rows, :]                 # (M, D) f32 hidden state for this batch block
    hb = h.astype(bf16)
    bias = bias_ref[...]               # (M, M) block-diag additive mask (const, hoisted)

    # ---- multi-head self-attention -------------------------------------------
    # Per-head weights are pre-split on the host, so there are no unaligned lane
    # slices of activations and no concat; each head folds directly into the
    # out-projection accumulator.  (Attention FLOPs are negligible vs the FFN.)
    attn = jnp.zeros(h.shape, jnp.float32)
    for hh in range(n_heads):
        qh = jnp.dot(hb, w_q_ref[0, hh], preferred_element_type=jnp.float32) + b_q_ref[0, hh]
        kh = jnp.dot(hb, w_k_ref[0, hh], preferred_element_type=jnp.float32) + b_k_ref[0, hh]
        vh = jnp.dot(hb, w_v_ref[0, hh], preferred_element_type=jnp.float32) + b_v_ref[0, hh]
        # q @ k^T without materializing a transpose (contract last dims of both).
        s = jax.lax.dot_general((qh * scale).astype(bf16), kh.astype(bf16),
                                (((1,), (1,)), ((), ())),
                                preferred_element_type=jnp.float32)      # (M, M)
        s = s + bias
        s = s - jnp.max(s, axis=-1, keepdims=True)
        p = jnp.exp(s)
        p = p * pl.reciprocal(jnp.sum(p, axis=-1, keepdims=True), approx=True)
        oh = jnp.dot(p.astype(bf16), vh.astype(bf16),
                     preferred_element_type=jnp.float32)                 # (M, hd)
        attn = attn + jnp.dot(oh.astype(bf16), w_o_ref[0, hh],
                              preferred_element_type=jnp.float32)        # (M, D)
    attn = attn + b_o_ref[0]

    h = _layernorm(h + attn, ln1_g_ref[0], ln1_b_ref[0])

    # ---- feed-forward (Linear -> ReLU -> Linear), post-LN ----------------------
    ff = jnp.dot(h.astype(bf16), w_ff1_ref[0],
                 preferred_element_type=jnp.float32) + b_ff1_ref[0]
    ff = jnp.maximum(ff, 0.0)
    ff = jnp.dot(ff.astype(bf16), w_ff2_ref[0],
                 preferred_element_type=jnp.float32) + b_ff2_ref[0]
    h = _layernorm(h + ff, ln2_g_ref[0], ln2_b_ref[0])
    h_ref[rows, :] = h

    # ---- output head: lane-dense (1, M) block, value only meaningful at the
    # last layer (earlier writes are overwritten; non-consecutive output revisits
    # are correct on TPU Pallas).
    o = jax.lax.dot_general(w_fc_ref[...], h.astype(bf16),
                            (((1,), (1,)), ((), ())),
                            preferred_element_type=jnp.float32)          # (1, M)
    o_ref[...] = o + b_fc_ref[...]


def time_series_transformer_forward(x, pe, params, n_heads, batch_block=None):
    B, S, F = x.shape
    D = params["w_emb"].shape[1]
    L = params["w_q"].shape[0]
    DFF = params["w_ff1"].shape[2]
    assert D % n_heads == 0
    hd = D // n_heads

    # Fill the MXU M dimension (target up to 256 rows per slab).
    if batch_block is None:
        cap = max(1, 256 // S)
        batch_block = 1
        for bb in range(min(B, cap), 0, -1):
            if B % bb == 0:
                batch_block = bb
                break
    assert B % batch_block == 0
    M = batch_block * S
    nb = B // batch_block
    assert M % 8 == 0, "batch_block * seq_len must be a multiple of 8"

    bf16 = jnp.bfloat16
    f32 = jnp.float32
    x_flat = x.reshape(B * S, F).astype(f32)
    pe_blk = jnp.tile(pe[:S], (batch_block, 1)).astype(f32)              # (M, D)
    row = jnp.arange(M) // S                                             # hoisted mask
    attn_bias = jnp.where(row[:, None] == row[None, :], 0.0, -1e30).astype(f32)

    # bf16 weight streaming; per-head splits for q/k/v/out-proj.
    wq = params["w_q"].reshape(L, D, n_heads, hd).transpose(0, 2, 1, 3).astype(bf16)
    wk = params["w_k"].reshape(L, D, n_heads, hd).transpose(0, 2, 1, 3).astype(bf16)
    wv = params["w_v"].reshape(L, D, n_heads, hd).transpose(0, 2, 1, 3).astype(bf16)
    bq = params["b_q"].reshape(L, n_heads, 1, hd).astype(f32)
    bk = params["b_k"].reshape(L, n_heads, 1, hd).astype(f32)
    bv = params["b_v"].reshape(L, n_heads, 1, hd).astype(f32)
    wo = params["w_out"].reshape(L, n_heads, hd, D).astype(bf16)
    bo = params["b_out"].reshape(L, 1, D).astype(f32)
    ln1g = params["ln1_g"].reshape(L, 1, D).astype(f32)
    ln1b = params["ln1_b"].reshape(L, 1, D).astype(f32)
    ln2g = params["ln2_g"].reshape(L, 1, D).astype(f32)
    ln2b = params["ln2_b"].reshape(L, 1, D).astype(f32)
    wff1 = params["w_ff1"].astype(bf16)
    bff1 = params["b_ff1"].reshape(L, 1, DFF).astype(f32)
    wff2 = params["w_ff2"].astype(bf16)
    bff2 = params["b_ff2"].reshape(L, 1, D).astype(f32)
    wemb = params["w_emb"].astype(bf16)
    bemb = params["b_emb"].reshape(1, D).astype(f32)
    wfc = params["w_fc"].reshape(1, D).astype(bf16)
    bfc = params["b_fc"].reshape(1, 1).astype(f32)

    def const(shape):
        nd = len(shape)
        return pl.BlockSpec(shape, lambda l, b, _n=nd: (0,) * _n)

    def per_layer(shape):
        nd = len(shape)
        return pl.BlockSpec((1,) + shape, lambda l, b, _n=nd: (l,) + (0,) * _n)

    in_specs = [
        pl.BlockSpec((M, F), lambda l, b: (b, 0)),        # input slab (tiny, refetched)
        const((M, D)),                                    # positional encoding (pre-tiled)
        const((M, M)),                                    # block-diag attention bias
        const((F, D)), const((1, D)),                     # embedding
        per_layer((n_heads, D, hd)), per_layer((n_heads, 1, hd)),   # q proj (per-head)
        per_layer((n_heads, D, hd)), per_layer((n_heads, 1, hd)),   # k proj
        per_layer((n_heads, D, hd)), per_layer((n_heads, 1, hd)),   # v proj
        per_layer((n_heads, hd, D)), per_layer((1, D)),             # out proj
        per_layer((1, D)), per_layer((1, D)),                       # layernorm 1
        per_layer((D, DFF)), per_layer((1, DFF)),                   # ffn linear1
        per_layer((DFF, D)), per_layer((1, D)),                     # ffn linear2
        per_layer((1, D)), per_layer((1, D)),                       # layernorm 2
        const((1, D)), const((1, 1)),                               # fc head
    ]

    kernel = functools.partial(_transformer_kernel, n_heads=n_heads, head_dim=hd)

    out = pl.pallas_call(
        kernel,
        out_shape=jax.ShapeDtypeStruct((nb, M), jnp.float32),   # lane-dense output
        grid=(L, nb),                                           # layer-major: weights DMA'd once/layer
        in_specs=in_specs,
        out_specs=pl.BlockSpec((1, M), lambda l, b: (b, 0)),
        # Hidden state for ALL batch blocks lives in VMEM across the whole grid
        # (B*S*D*4 bytes, tiny).  Both axes are 'arbitrary' because of the carry;
        # on v7x a CORE_PARALLEL split of the batch axis could use both TCs but
        # needs per-core-consistent scratch partitioning, so it is not enabled.
        scratch_shapes=[pltpu.VMEM((B * S, D), jnp.float32)],
        compiler_params=pltpu.CompilerParams(
            dimension_semantics=("arbitrary", "arbitrary"),
        ),
    )(x_flat, pe_blk, attn_bias, wemb, bemb,
      wq, bq, wk, bk, wv, bv, wo, bo, ln1g, ln1b,
      wff1, bff1, wff2, bff2, ln2g, ln2b, wfc, bfc)

    return out.reshape(nb, batch_block, S).reshape(B, S)[..., None]


def make_positional_encoding(max_len, d_model):
    position = jnp.arange(max_len, dtype=jnp.float32)[:, None]
    div_term = jnp.exp(jnp.arange(0, d_model, 2, dtype=jnp.float32)
                       * (-math.log(10000.0) / d_model))
    pe = jnp.zeros((max_len, d_model), jnp.float32)
    pe = pe.at[:, 0::2].set(jnp.sin(position * div_term))
    pe = pe.at[:, 1::2].set(jnp.cos(position * div_term))
    return pe


def init_params(key, feature_dim, d_model, n_layers, dim_ff):
    ks = jax.random.split(key, 16)
    nrm = lambda k, shp: 0.02 * jax.random.normal(k, shp, jnp.float32)
    L, D, F, DFF = n_layers, d_model, feature_dim, dim_ff
    return {
        "w_emb": nrm(ks[0], (F, D)),      "b_emb": nrm(ks[1], (1, D)),
        "w_q":   nrm(ks[2], (L, D, D)),   "b_q":   nrm(ks[3], (L, D)),
        "w_k":   nrm(ks[4], (L, D, D)),   "b_k":   nrm(ks[5], (L, D)),
        "w_v":   nrm(ks[6], (L, D, D)),   "b_v":   nrm(ks[7], (L, D)),
        "w_out": nrm(ks[8], (L, D, D)),   "b_out": nrm(ks[9], (L, D)),
        "ln1_g": jnp.ones((L, D), jnp.float32), "ln1_b": jnp.zeros((L, D), jnp.float32),
        "w_ff1": nrm(ks[10], (L, D, DFF)), "b_ff1": nrm(ks[11], (L, DFF)),
        "w_ff2": nrm(ks[12], (L, DFF, D)), "b_ff2": nrm(ks[13], (L, D)),
        "ln2_g": jnp.ones((L, D), jnp.float32), "ln2_b": jnp.zeros((L, D), jnp.float32),
        "w_fc":  nrm(ks[14], (D, 1)),      "b_fc":  nrm(ks[15], (1,)),
    }


def reference_forward(x, pe, params, n_heads):
    """Pure-JAX f32 reference (PyTorch post-LN encoder semantics, eval mode)."""
    B, S, F = x.shape
    D = params["w_emb"].shape[1]
    L = params["w_q"].shape[0]
    hd = D // n_heads
    h = x @ params["w_emb"] + params["b_emb"] + pe[None, :S]
    for l in range(L):
        q = h @ params["w_q"][l] + params["b_q"][l]
        k = h @ params["w_k"][l] + params["b_k"][l]
        v = h @ params["w_v"][l] + params["b_v"][l]
        rs = lambda t: t.reshape(B, S, n_heads, hd).transpose(0, 2, 1, 3)
        qh, kh, vh = rs(q), rs(k), rs(v)
        s = jnp.einsum("bhqd,bhkd->bhqk", qh, kh) / math.sqrt(hd)
        p = jax.nn.softmax(s, axis=-1)
        a = jnp.einsum("bhqk,bhkd->bhqd", p, vh).transpose(0, 2, 1, 3).reshape(B, S, D)
        a = a @ params["w_out"][l] + params["b_out"][l]
        h = _layernorm(h + a, params["ln1_g"][l], params["ln1_b"][l])
        ff = jnp.maximum(h @ params["w_ff1"][l] + params["b_ff1"][l], 0.0)
        ff = ff @ params["w_ff2"][l] + params["b_ff2"][l]
        h = _layernorm(h + ff, params["ln2_g"][l], params["ln2_b"][l])
    return h @ params["w_fc"] + params["b_fc"]


if __name__ == "__main__":
    # small, module-consistent shapes
    B, S, FEATURE_DIM = 2, 8, 16
    D_MODEL, N_HEADS, N_LAYERS = 64, 4, 2
    DIM_FF = 2048          # nn.TransformerEncoderLayer default
    MAX_LEN = 1024

    key = jax.random.PRNGKey(0)
    kx, kp = jax.random.split(key)
    x = jax.random.normal(kx, (B, S, FEATURE_DIM), jnp.float32)
    params = init_params(kp, FEATURE_DIM, D_MODEL, N_LAYERS, DIM_FF)
    pe = make_positional_encoding(MAX_LEN, D_MODEL)

    out = time_series_transformer_forward(x, pe, params, N_HEADS)
    out = jax.block_until_ready(out)
    assert out.shape == (B, S, 1)

    ref = reference_forward(x, pe, params, N_HEADS)
    err = float(jnp.max(jnp.abs(out - ref)))
    # bf16 weight/activation streaming + approx softmax reciprocal vs f32 reference.
    assert err < 3e-2, f"kernel/reference mismatch: {err}"

    print("KERNEL_OK")
</pallas_src>

<mosaic_0001>
module attributes {stable_mosaic.version = 11 : i64} {
  func.func @_transformer_kernel(%arg0: i32, %arg1: i32, %arg2: memref<16x16xf32, #tpu.memory_space<vmem>>, %arg3: memref<16x64xf32, #tpu.memory_space<vmem>>, %arg4: memref<16x16xf32, #tpu.memory_space<vmem>>, %arg5: memref<16x64xbf16, #tpu.memory_space<vmem>>, %arg6: memref<1x64xf32, #tpu.memory_space<vmem>>, %arg7: memref<1x4x64x16xbf16, #tpu.memory_space<vmem>>, %arg8: memref<1x4x1x16xf32, #tpu.memory_space<vmem>>, %arg9: memref<1x4x64x16xbf16, #tpu.memory_space<vmem>>, %arg10: memref<1x4x1x16xf32, #tpu.memory_space<vmem>>, %arg11: memref<1x4x64x16xbf16, #tpu.memory_space<vmem>>, %arg12: memref<1x4x1x16xf32, #tpu.memory_space<vmem>>, %arg13: memref<1x4x16x64xbf16, #tpu.memory_space<vmem>>, %arg14: memref<1x1x64xf32, #tpu.memory_space<vmem>>, %arg15: memref<1x1x64xf32, #tpu.memory_space<vmem>>, %arg16: memref<1x1x64xf32, #tpu.memory_space<vmem>>, %arg17: memref<1x64x2048xbf16, #tpu.memory_space<vmem>>, %arg18: memref<1x1x2048xf32, #tpu.memory_space<vmem>>, %arg19: memref<1x2048x64xbf16, #tpu.memory_space<vmem>>, %arg20: memref<1x1x64xf32, #tpu.memory_space<vmem>>, %arg21: memref<1x1x64xf32, #tpu.memory_space<vmem>>, %arg22: memref<1x1x64xf32, #tpu.memory_space<vmem>>, %arg23: memref<1x64xbf16, #tpu.memory_space<vmem>>, %arg24: memref<1x1xf32, #tpu.memory_space<vmem>>, %arg25: memref<1x16xf32, #tpu.memory_space<vmem>>, %arg26: memref<16x64xf32, #tpu.memory_space<vmem>>) attributes {dimension_semantics = [#tpu.dimension_semantics<arbitrary>, #tpu.dimension_semantics<arbitrary>], iteration_bounds = array<i64: 2, 1>, scalar_prefetch = 0 : i64, scratch_operands = 1 : i64, tpu.core_type = #tpu.core_type<tc>, window_params = [{transform_indices = @transform_0, window_bounds = array<i64: 16, 16>}, {pipeline_mode = #tpu.pipeline_mode<synchronous>, transform_indices = @transform_1, window_bounds = array<i64: 16, 64>}, {pipeline_mode = #tpu.pipeline_mode<synchronous>, transform_indices = @transform_2, window_bounds = array<i64: 16, 16>}, {pipeline_mode = #tpu.pipeline_mode<synchronous>, transform_indices = @transform_3, window_bounds = array<i64: 16, 64>}, {pipeline_mode = #tpu.pipeline_mode<synchronous>, transform_indices = @transform_4, window_bounds = array<i64: 1, 64>}, {transform_indices = @transform_5, window_bounds = array<i64: 1, 4, 64, 16>}, {transform_indices = @transform_6, window_bounds = array<i64: 1, 4, 1, 16>}, {transform_indices = @transform_7, window_bounds = array<i64: 1, 4, 64, 16>}, {transform_indices = @transform_8, window_bounds = array<i64: 1, 4, 1, 16>}, {transform_indices = @transform_9, window_bounds = array<i64: 1, 4, 64, 16>}, {transform_indices = @transform_10, window_bounds = array<i64: 1, 4, 1, 16>}, {transform_indices = @transform_11, window_bounds = array<i64: 1, 4, 16, 64>}, {transform_indices = @transform_12, window_bounds = array<i64: 1, 1, 64>}, {transform_indices = @transform_13, window_bounds = array<i64: 1, 1, 64>}, {transform_indices = @transform_14, window_bounds = array<i64: 1, 1, 64>}, {transform_indices = @transform_15, window_bounds = array<i64: 1, 64, 2048>}, {transform_indices = @transform_16, window_bounds = array<i64: 1, 1, 2048>}, {transform_indices = @transform_17, window_bounds = array<i64: 1, 2048, 64>}, {transform_indices = @transform_18, window_bounds = array<i64: 1, 1, 64>}, {transform_indices = @transform_19, window_bounds = array<i64: 1, 1, 64>}, {transform_indices = @transform_20, window_bounds = array<i64: 1, 1, 64>}, {pipeline_mode = #tpu.pipeline_mode<synchronous>, transform_indices = @transform_21, window_bounds = array<i64: 1, 64>}, {pipeline_mode = #tpu.pipeline_mode<synchronous>, transform_indices = @transform_22, window_bounds = array<i64: 1, 1>}, {transform_indices = @transform_23, window_bounds = array<i64: 1, 16>}]} {
    %c16_i32 = arith.constant 16 : i32
    %0 = arith.muli %arg1, %c16_i32 : i32
    %1 = tpu.assume_multiple %0, 8 : i32
    %c0_i32 = arith.constant 0 : i32
    %2 = arith.cmpi eq, %arg0, %c0_i32 : i32
    %3 = arith.extui %2 : i1 to i32
    %c0_i32_0 = arith.constant 0 : i32
    %4 = arith.cmpi ne, %3, %c0_i32_0 : i32
    scf.if %4 {
      %c0_196 = arith.constant 0 : index
      %c0_197 = arith.constant 0 : index
      %275 = vector.load %arg2[%c0_196, %c0_197] : memref<16x16xf32, #tpu.memory_space<vmem>>, vector<16x16xf32>
      %276 = arith.truncf %275 : vector<16x16xf32> to vector<16x16xbf16>
      %c0_198 = arith.constant 0 : index
      %c0_199 = arith.constant 0 : index
      %277 = vector.load %arg5[%c0_198, %c0_199] : memref<16x64xbf16, #tpu.memory_space<vmem>>, vector<16x64xbf16>
      %cst_200 = arith.constant dense<0.000000e+00> : vector<16x64xf32>
      %278 = tpu.matmul %276, %277, %cst_200 {dimension_numbers = #tpu.dot_dimension_numbers<[1], [0], [0], [1], [0, 0, 1, 1], [], []>} : vector<16x16xbf16>, vector<16x64xbf16>, vector<16x64xf32> -> vector<16x64xf32>
      %c0_201 = arith.constant 0 : index
      %c0_202 = arith.constant 0 : index
      %279 = vector.load %arg6[%c0_201, %c0_202] : memref<1x64xf32, #tpu.memory_space<vmem>>, vector<1x64xf32>
      %280 = vector.broadcast %279 : vector<1x64xf32> to vector<16x64xf32>
      %281 = arith.addf %278, %280 : vector<16x64xf32>
      %c0_203 = arith.constant 0 : index
      %c0_204 = arith.constant 0 : index
      %282 = vector.load %arg3[%c0_203, %c0_204] : memref<16x64xf32, #tpu.memory_space<vmem>>, vector<16x64xf32>
      %283 = arith.addf %281, %282 : vector<16x64xf32>
      %284 = arith.index_cast %1 : i32 to index
      %c0_205 = arith.constant 0 : index
      %285 = vector.load %arg26[%284, %c0_205] : memref<16x64xf32, #tpu.memory_space<vmem>>, vector<16x64xf32>
      tpu.vector_store %arg26[%284, %c0_205], %283 {strides = array<i32>} : memref<16x64xf32, #tpu.memory_space<vmem>>, vector<16x64xf32>,
    } else {
    }
    %5 = arith.index_cast %1 : i32 to index
    %c0 = arith.constant 0 : index
    %6 = vector.load %arg26[%5, %c0] : memref<16x64xf32, #tpu.memory_space<vmem>>, vector<16x64xf32>
    %7 = arith.truncf %6 : vector<16x64xf32> to vector<16x64xbf16>
    %c0_1 = arith.constant 0 : index
    %c0_2 = arith.constant 0 : index
    %8 = vector.load %arg4[%c0_1, %c0_2] : memref<16x16xf32, #tpu.memory_space<vmem>>, vector<16x16xf32>
    %cst = arith.constant 0.000000e+00 : f32
    %9 = vector.broadcast %cst : f32 to vector<16x64xf32>
    %c0_3 = arith.constant 0 : index
    %c0_4 = arith.constant 0 : index
    %c0_5 = arith.constant 0 : index
    %c0_6 = arith.constant 0 : index
    %10 = vector.load %arg7[%c0_3, %c0_4, %c0_5, %c0_6] : memref<1x4x64x16xbf16, #tpu.memory_space<vmem>>, vector<1x1x64x16xbf16>
    %11 = vector.shape_cast %10 : vector<1x1x64x16xbf16> to vector<64x16xbf16>
    %cst_7 = arith.constant dense<0.000000e+00> : vector<16x16xf32>
    %12 = tpu.matmul %7, %11, %cst_7 {dimension_numbers = #tpu.dot_dimension_numbers<[1], [0], [0], [1], [0, 0, 1, 1], [], []>} : vector<16x64xbf16>, vector<64x16xbf16>, vector<16x16xf32> -> vector<16x16xf32>
    %c0_8 = arith.constant 0 : index
    %c0_9 = arith.constant 0 : index
    %c0_10 = arith.constant 0 : index
    %c0_11 = arith.constant 0 : index
    %13 = vector.load %arg8[%c0_8, %c0_9, %c0_10, %c0_11] : memref<1x4x1x16xf32, #tpu.memory_space<vmem>>, vector<1x1x1x16xf32>
    %14 = vector.shape_cast %13 : vector<1x1x1x16xf32> to vector<1x16xf32>
    %15 = vector.broadcast %14 : vector<1x16xf32> to vector<16x16xf32>
    %16 = arith.addf %12, %15 : vector<16x16xf32>
    %c0_12 = arith.constant 0 : index
    %c0_13 = arith.constant 0 : index
    %c0_14 = arith.constant 0 : index
    %c0_15 = arith.constant 0 : index
    %17 = vector.load %arg9[%c0_12, %c0_13, %c0_14, %c0_15] : memref<1x4x64x16xbf16, #tpu.memory_space<vmem>>, vector<1x1x64x16xbf16>
    %18 = vector.shape_cast %17 : vector<1x1x64x16xbf16> to vector<64x16xbf16>
    %cst_16 = arith.constant dense<0.000000e+00> : vector<16x16xf32>
    %19 = tpu.matmul %7, %18, %cst_16 {dimension_numbers = #tpu.dot_dimension_numbers<[1], [0], [0], [1], [0, 0, 1, 1], [], []>} : vector<16x64xbf16>, vector<64x16xbf16>, vector<16x16xf32> -> vector<16x16xf32>
    %c0_17 = arith.constant 0 : index
    %c0_18 = arith.constant 0 : index
    %c0_19 = arith.constant 0 : index
    %c0_20 = arith.constant 0 : index
    %20 = vector.load %arg10[%c0_17, %c0_18, %c0_19, %c0_20] : memref<1x4x1x16xf32, #tpu.memory_space<vmem>>, vector<1x1x1x16xf32>
    %21 = vector.shape_cast %20 : vector<1x1x1x16xf32> to vector<1x16xf32>
    %22 = vector.broadcast %21 : vector<1x16xf32> to vector<16x16xf32>
    %23 = arith.addf %19, %22 : vector<16x16xf32>
    %c0_21 = arith.constant 0 : index
    %c0_22 = arith.constant 0 : index
    %c0_23 = arith.constant 0 : index
    %c0_24 = arith.constant 0 : index
    %24 = vector.load %arg11[%c0_21, %c0_22, %c0_23, %c0_24] : memref<1x4x64x16xbf16, #tpu.memory_space<vmem>>, vector<1x1x64x16xbf16>
    %25 = vector.shape_cast %24 : vector<1x1x64x16xbf16> to vector<64x16xbf16>
    %cst_25 = arith.constant dense<0.000000e+00> : vector<16x16xf32>
    %26 = tpu.matmul %7, %25, %cst_25 {dimension_numbers = #tpu.dot_dimension_numbers<[1], [0], [0], [1], [0, 0, 1, 1], [], []>} : vector<16x64xbf16>, vector<64x16xbf16>, vector<16x16xf32> -> vector<16x16xf32>
    %c0_26 = arith.constant 0 : index
    %c0_27 = arith.constant 0 : index
    %c0_28 = arith.constant 0 : index
    %c0_29 = arith.constant 0 : index
    %27 = vector.load %arg12[%c0_26, %c0_27, %c0_28, %c0_29] : memref<1x4x1x16xf32, #tpu.memory_space<vmem>>, vector<1x1x1x16xf32>
    %28 = vector.shape_cast %27 : vector<1x1x1x16xf32> to vector<1x16xf32>
    %29 = vector.broadcast %28 : vector<1x16xf32> to vector<16x16xf32>
    %30 = arith.addf %26, %29 : vector<16x16xf32>
    %cst_30 = arith.constant 2.500000e-01 : f32
    %31 = vector.broadcast %cst_30 : f32 to vector<16x16xf32>
    %32 = arith.mulf %16, %31 : vector<16x16xf32>
    %33 = arith.truncf %32 : vector<16x16xf32> to vector<16x16xbf16>
    %34 = arith.truncf %23 : vector<16x16xf32> to vector<16x16xbf16>
    %cst_31 = arith.constant dense<0.000000e+00> : vector<16x16xf32>
    %35 = tpu.matmul %33, %34, %cst_31 {dimension_numbers = #tpu.dot_dimension_numbers<[1], [1], [0], [0], [0, 0, 1, 0], [], []>} : vector<16x16xbf16>, vector<16x16xbf16>, vector<16x16xf32> -> vector<16x16xf32>
    %36 = arith.addf %35, %8 : vector<16x16xf32>
    %cst_32 = arith.constant dense<0xFF800000> : vector<16xf32>
    %37 = vector.multi_reduction <maximumf>, %36, %cst_32 [1] : vector<16x16xf32> to vector<16xf32>
    %38 = vector.shape_cast %37 : vector<16xf32> to vector<16x1xf32>
    %39 = vector.broadcast %38 : vector<16x1xf32> to vector<16x16xf32>
    %40 = arith.subf %36, %39 : vector<16x16xf32>
    %41 = math.exp %40 : vector<16x16xf32>
    %cst_33 = arith.constant dense<0.000000e+00> : vector<16xf32>
    %42 = vector.multi_reduction <add>, %41, %cst_33 [1] : vector<16x16xf32> to vector<16xf32>
    %43 = vector.shape_cast %42 : vector<16xf32> to vector<16x1xf32>
    %44 = tpu.reciprocal %43 {approx = true} : vector<16x1xf32> -> vector<16x1xf32>
    %45 = vector.broadcast %44 : vector<16x1xf32> to vector<16x16xf32>
    %46 = arith.mulf %41, %45 : vector<16x16xf32>
    %47 = arith.truncf %46 : vector<16x16xf32> to vector<16x16xbf16>
    %48 = arith.truncf %30 : vector<16x16xf32> to vector<16x16xbf16>
    %cst_34 = arith.constant dense<0.000000e+00> : vector<16x16xf32>
    %49 = tpu.matmul %47, %48, %cst_34 {dimension_numbers = #tpu.dot_dimension_numbers<[1], [0], [0], [1], [0, 0, 1, 1], [], []>} : vector<16x16xbf16>, vector<16x16xbf16>, vector<16x16xf32> -> vector<16x16xf32>
    %50 = arith.truncf %49 : vector<16x16xf32> to vector<16x16xbf16>
    %c0_35 = arith.constant 0 : index
    %c0_36 = arith.constant 0 : index
    %c0_37 = arith.constant 0 : index
    %c0_38 = arith.constant 0 : index
    %51 = vector.load %arg13[%c0_35, %c0_36, %c0_37, %c0_38] : memref<1x4x16x64xbf16, #tpu.memory_space<vmem>>, vector<1x1x16x64xbf16>
    %52 = vector.shape_cast %51 : vector<1x1x16x64xbf16> to vector<16x64xbf16>
    %cst_39 = arith.constant dense<0.000000e+00> : vector<16x64xf32>
    %53 = tpu.matmul %50, %52, %cst_39 {dimension_numbers = #tpu.dot_dimension_numbers<[1], [0], [0], [1], [0, 0, 1, 1], [], []>} : vector<16x16xbf16>, vector<16x64xbf16>, vector<16x64xf32> -> vector<16x64xf32>
    %54 = arith.addf %9, %53 : vector<16x64xf32>
    %c0_40 = arith.constant 0 : index
    %c1 = arith.constant 1 : index
    %c0_41 = arith.constant 0 : index
    %c0_42 = arith.constant 0 : index
    %55 = vector.load %arg7[%c0_40, %c1, %c0_41, %c0_42] : memref<1x4x64x16xbf16, #tpu.memory_space<vmem>>, vector<1x1x64x16xbf16>
    %56 = vector.shape_cast %55 : vector<1x1x64x16xbf16> to vector<64x16xbf16>
    %cst_43 = arith.constant dense<0.000000e+00> : vector<16x16xf32>
    %57 = tpu.matmul %7, %56, %cst_43 {dimension_numbers = #tpu.dot_dimension_numbers<[1], [0], [0], [1], [0, 0, 1, 1], [], []>} : vector<16x64xbf16>, vector<64x16xbf16>, vector<16x16xf32> -> vector<16x16xf32>
    %c0_44 = arith.constant 0 : index
    %c1_45 = arith.constant 1 : index
    %c0_46 = arith.constant 0 : index
    %c0_47 = arith.constant 0 : index
    %58 = vector.load %arg8[%c0_44, %c1_45, %c0_46, %c0_47] : memref<1x4x1x16xf32, #tpu.memory_space<vmem>>, vector<1x1x1x16xf32>
    %59 = vector.shape_cast %58 : vector<1x1x1x16xf32> to vector<1x16xf32>
    %60 = vector.broadcast %59 : vector<1x16xf32> to vector<16x16xf32>
    %61 = arith.addf %57, %60 : vector<16x16xf32>
    %c0_48 = arith.constant 0 : index
    %c1_49 = arith.constant 1 : index
    %c0_50 = arith.constant 0 : index
    %c0_51 = arith.constant 0 : index
    %62 = vector.load %arg9[%c0_48, %c1_49, %c0_50, %c0_51] : memref<1x4x64x16xbf16, #tpu.memory_space<vmem>>, vector<1x1x64x16xbf16>
    %63 = vector.shape_cast %62 : vector<1x1x64x16xbf16> to vector<64x16xbf16>
    %cst_52 = arith.constant dense<0.000000e+00> : vector<16x16xf32>
    %64 = tpu.matmul %7, %63, %cst_52 {dimension_numbers = #tpu.dot_dimension_numbers<[1], [0], [0], [1], [0, 0, 1, 1], [], []>} : vector<16x64xbf16>, vector<64x16xbf16>, vector<16x16xf32> -> vector<16x16xf32>
    %c0_53 = arith.constant 0 : index
    %c1_54 = arith.constant 1 : index
    %c0_55 = arith.constant 0 : index
    %c0_56 = arith.constant 0 : index
    %65 = vector.load %arg10[%c0_53, %c1_54, %c0_55, %c0_56] : memref<1x4x1x16xf32, #tpu.memory_space<vmem>>, vector<1x1x1x16xf32>
    %66 = vector.shape_cast %65 : vector<1x1x1x16xf32> to vector<1x16xf32>
    %67 = vector.broadcast %66 : vector<1x16xf32> to vector<16x16xf32>
    %68 = arith.addf %64, %67 : vector<16x16xf32>
    %c0_57 = arith.constant 0 : index
    %c1_58 = arith.constant 1 : index
    %c0_59 = arith.constant 0 : index
    %c0_60 = arith.constant 0 : index
    %69 = vector.load %arg11[%c0_57, %c1_58, %c0_59, %c0_60] : memref<1x4x64x16xbf16, #tpu.memory_space<vmem>>, vector<1x1x64x16xbf16>
    %70 = vector.shape_cast %69 : vector<1x1x64x16xbf16> to vector<64x16xbf16>
    %cst_61 = arith.constant dense<0.000000e+00> : vector<16x16xf32>
    %71 = tpu.matmul %7, %70, %cst_61 {dimension_numbers = #tpu.dot_dimension_numbers<[1], [0], [0], [1], [0, 0, 1, 1], [], []>} : vector<16x64xbf16>, vector<64x16xbf16>, vector<16x16xf32> -> vector<16x16xf32>
    %c0_62 = arith.constant 0 : index
    %c1_63 = arith.constant 1 : index
    %c0_64 = arith.constant 0 : index
    %c0_65 = arith.constant 0 : index
    %72 = vector.load %arg12[%c0_62, %c1_63, %c0_64, %c0_65] : memref<1x4x1x16xf32, #tpu.memory_space<vmem>>, vector<1x1x1x16xf32>
    %73 = vector.shape_cast %72 : vector<1x1x1x16xf32> to vector<1x16xf32>
    %74 = vector.broadcast %73 : vector<1x16xf32> to vector<16x16xf32>
    %75 = arith.addf %71, %74 : vector<16x16xf32>
    %cst_66 = arith.constant 2.500000e-01 : f32
    %76 = vector.broadcast %cst_66 : f32 to vector<16x16xf32>
    %77 = arith.mulf %61, %76 : vector<16x16xf32>
    %78 = arith.truncf %77 : vector<16x16xf32> to vector<16x16xbf16>
    %79 = arith.truncf %68 : vector<16x16xf32> to vector<16x16xbf16>
    %cst_67 = arith.constant dense<0.000000e+00> : vector<16x16xf32>
    %80 = tpu.matmul %78, %79, %cst_67 {dimension_numbers = #tpu.dot_dimension_numbers<[1], [1], [0], [0], [0, 0, 1, 0], [], []>} : vector<16x16xbf16>, vector<16x16xbf16>, vector<16x16xf32> -> vector<16x16xf32>
    %81 = arith.addf %80, %8 : vector<16x16xf32>
    %cst_68 = arith.constant dense<0xFF800000> : vector<16xf32>
    %82 = vector.multi_reduction <maximumf>, %81, %cst_68 [1] : vector<16x16xf32> to vector<16xf32>
    %83 = vector.shape_cast %82 : vector<16xf32> to vector<16x1xf32>
    %84 = vector.broadcast %83 : vector<16x1xf32> to vector<16x16xf32>
    %85 = arith.subf %81, %84 : vector<16x16xf32>
    %86 = math.exp %85 : vector<16x16xf32>
    %cst_69 = arith.constant dense<0.000000e+00> : vector<16xf32>
    %87 = vector.multi_reduction <add>, %86, %cst_69 [1] : vector<16x16xf32> to vector<16xf32>
    %88 = vector.shape_cast %87 : vector<16xf32> to vector<16x1xf32>
    %89 = tpu.reciprocal %88 {approx = true} : vector<16x1xf32> -> vector<16x1xf32>
    %90 = vector.broadcast %89 : vector<16x1xf32> to vector<16x16xf32>
    %91 = arith.mulf %86, %90 : vector<16x16xf32>
    %92 = arith.truncf %91 : vector<16x16xf32> to vector<16x16xbf16>
    %93 = arith.truncf %75 : vector<16x16xf32> to vector<16x16xbf16>
    %cst_70 = arith.constant dense<0.000000e+00> : vector<16x16xf32>
    %94 = tpu.matmul %92, %93, %cst_70 {dimension_numbers = #tpu.dot_dimension_numbers<[1], [0], [0], [1], [0, 0, 1, 1], [], []>} : vector<16x16xbf16>, vector<16x16xbf16>, vector<16x16xf32> -> vector<16x16xf32>
    %95 = arith.truncf %94 : vector<16x16xf32> to vector<16x16xbf16>
    %c0_71 = arith.constant 0 : index
    %c1_72 = arith.constant 1 : index
    %c0_73 = arith.constant 0 : index
    %c0_74 = arith.constant 0 : index
    %96 = vector.load %arg13[%c0_71, %c1_72, %c0_73, %c0_74] : memref<1x4x16x64xbf16, #tpu.memory_space<vmem>>, vector<1x1x16x64xbf16>
    %97 = vector.shape_cast %96 : vector<1x1x16x64xbf16> to vector<16x64xbf16>
    %cst_75 = arith.constant dense<0.000000e+00> : vector<16x64xf32>
    %98 = tpu.matmul %95, %97, %cst_75 {dimension_numbers = #tpu.dot_dimension_numbers<[1], [0], [0], [1], [0, 0, 1, 1], [], []>} : vector<16x16xbf16>, vector<16x64xbf16>, vector<16x64xf32> -> vector<16x64xf32>
    %99 = arith.addf %54, %98 : vector<16x64xf32>
    %c0_76 = arith.constant 0 : index
    %c2 = arith.constant 2 : index
    %c0_77 = arith.constant 0 : index
    %c0_78 = arith.constant 0 : index
    %100 = vector.load %arg7[%c0_76, %c2, %c0_77, %c0_78] : memref<1x4x64x16xbf16, #tpu.memory_space<vmem>>, vector<1x1x64x16xbf16>
    %101 = vector.shape_cast %100 : vector<1x1x64x16xbf16> to vector<64x16xbf16>
    %cst_79 = arith.constant dense<0.000000e+00> : vector<16x16xf32>
    %102 = tpu.matmul %7, %101, %cst_79 {dimension_numbers = #tpu.dot_dimension_numbers<[1], [0], [0], [1], [0, 0, 1, 1], [], []>} : vector<16x64xbf16>, vector<64x16xbf16>, vector<16x16xf32> -> vector<16x16xf32>
    %c0_80 = arith.constant 0 : index
    %c2_81 = arith.constant 2 : index
    %c0_82 = arith.constant 0 : index
    %c0_83 = arith.constant 0 : index
    %103 = vector.load %arg8[%c0_80, %c2_81, %c0_82, %c0_83] : memref<1x4x1x16xf32, #tpu.memory_space<vmem>>, vector<1x1x1x16xf32>
    %104 = vector.shape_cast %103 : vector<1x1x1x16xf32> to vector<1x16xf32>
    %105 = vector.broadcast %104 : vector<1x16xf32> to vector<16x16xf32>
    %106 = arith.addf %102, %105 : vector<16x16xf32>
    %c0_84 = arith.constant 0 : index
    %c2_85 = arith.constant 2 : index
    %c0_86 = arith.constant 0 : index
    %c0_87 = arith.constant 0 : index
    %107 = vector.load %arg9[%c0_84, %c2_85, %c0_86, %c0_87] : memref<1x4x64x16xbf16, #tpu.memory_space<vmem>>, vector<1x1x64x16xbf16>
    %108 = vector.shape_cast %107 : vector<1x1x64x16xbf16> to vector<64x16xbf16>
    %cst_88 = arith.constant dense<0.000000e+00> : vector<16x16xf32>
    %109 = tpu.matmul %7, %108, %cst_88 {dimension_numbers = #tpu.dot_dimension_numbers<[1], [0], [0], [1], [0, 0, 1, 1], [], []>} : vector<16x64xbf16>, vector<64x16xbf16>, vector<16x16xf32> -> vector<16x16xf32>
    %c0_89 = arith.constant 0 : index
    %c2_90 = arith.constant 2 : index
    %c0_91 = arith.constant 0 : index
    %c0_92 = arith.constant 0 : index
    %110 = vector.load %arg10[%c0_89, %c2_90, %c0_91, %c0_92] : memref<1x4x1x16xf32, #tpu.memory_space<vmem>>, vector<1x1x1x16xf32>
    %111 = vector.shape_cast %110 : vector<1x1x1x16xf32> to vector<1x16xf32>
    %112 = vector.broadcast %111 : vector<1x16xf32> to vector<16x16xf32>
    %113 = arith.addf %109, %112 : vector<16x16xf32>
    %c0_93 = arith.constant 0 : index
    %c2_94 = arith.constant 2 : index
    %c0_95 = arith.constant 0 : index
    %c0_96 = arith.constant 0 : index
    %114 = vector.load %arg11[%c0_93, %c2_94, %c0_95, %c0_96] : memref<1x4x64x16xbf16, #tpu.memory_space<vmem>>, vector<1x1x64x16xbf16>
    %115 = vector.shape_cast %114 : vector<1x1x64x16xbf16> to vector<64x16xbf16>
    %cst_97 = arith.constant dense<0.000000e+00> : vector<16x16xf32>
    %116 = tpu.matmul %7, %115, %cst_97 {dimension_numbers = #tpu.dot_dimension_numbers<[1], [0], [0], [1], [0, 0, 1, 1], [], []>} : vector<16x64xbf16>, vector<64x16xbf16>, vector<16x16xf32> -> vector<16x16xf32>
    %c0_98 = arith.constant 0 : index
    %c2_99 = arith.constant 2 : index
    %c0_100 = arith.constant 0 : index
    %c0_101 = arith.constant 0 : index
    %117 = vector.load %arg12[%c0_98, %c2_99, %c0_100, %c0_101] : memref<1x4x1x16xf32, #tpu.memory_space<vmem>>, vector<1x1x1x16xf32>
    %118 = vector.shape_cast %117 : vector<1x1x1x16xf32> to vector<1x16xf32>
    %119 = vector.broadcast %118 : vector<1x16xf32> to vector<16x16xf32>
    %120 = arith.addf %116, %119 : vector<16x16xf32>
    %cst_102 = arith.constant 2.500000e-01 : f32
    %121 = vector.broadcast %cst_102 : f32 to vector<16x16xf32>
    %122 = arith.mulf %106, %121 : vector<16x16xf32>
    %123 = arith.truncf %122 : vector<16x16xf32> to vector<16x16xbf16>
    %124 = arith.truncf %113 : vector<16x16xf32> to vector<16x16xbf16>
    %cst_103 = arith.constant dense<0.000000e+00> : vector<16x16xf32>
    %125 = tpu.matmul %123, %124, %cst_103 {dimension_numbers = #tpu.dot_dimension_numbers<[1], [1], [0], [0], [0, 0, 1, 0], [], []>} : vector<16x16xbf16>, vector<16x16xbf16>, vector<16x16xf32> -> vector<16x16xf32>
    %126 = arith.addf %125, %8 : vector<16x16xf32>
    %cst_104 = arith.constant dense<0xFF800000> : vector<16xf32>
    %127 = vector.multi_reduction <maximumf>, %126, %cst_104 [1] : vector<16x16xf32> to vector<16xf32>
    %128 = vector.shape_cast %127 : vector<16xf32> to vector<16x1xf32>
    %129 = vector.broadcast %128 : vector<16x1xf32> to vector<16x16xf32>
    %130 = arith.subf %126, %129 : vector<16x16xf32>
    %131 = math.exp %130 : vector<16x16xf32>
    %cst_105 = arith.constant dense<0.000000e+00> : vector<16xf32>
    %132 = vector.multi_reduction <add>, %131, %cst_105 [1] : vector<16x16xf32> to vector<16xf32>
    %133 = vector.shape_cast %132 : vector<16xf32> to vector<16x1xf32>
    %134 = tpu.reciprocal %133 {approx = true} : vector<16x1xf32> -> vector<16x1xf32>
    %135 = vector.broadcast %134 : vector<16x1xf32> to vector<16x16xf32>
    %136 = arith.mulf %131, %135 : vector<16x16xf32>
    %137 = arith.truncf %136 : vector<16x16xf32> to vector<16x16xbf16>
    %138 = arith.truncf %120 : vector<16x16xf32> to vector<16x16xbf16>
    %cst_106 = arith.constant dense<0.000000e+00> : vector<16x16xf32>
    %139 = tpu.matmul %137, %138, %cst_106 {dimension_numbers = #tpu.dot_dimension_numbers<[1], [0], [0], [1], [0, 0, 1, 1], [], []>} : vector<16x16xbf16>, vector<16x16xbf16>, vector<16x16xf32> -> vector<16x16xf32>
    %140 = arith.truncf %139 : vector<16x16xf32> to vector<16x16xbf16>
    %c0_107 = arith.constant 0 : index
    %c2_108 = arith.constant 2 : index
    %c0_109 = arith.constant 0 : index
    %c0_110 = arith.constant 0 : index
    %141 = vector.load %arg13[%c0_107, %c2_108, %c0_109, %c0_110] : memref<1x4x16x64xbf16, #tpu.memory_space<vmem>>, vector<1x1x16x64xbf16>
    %142 = vector.shape_cast %141 : vector<1x1x16x64xbf16> to vector<16x64xbf16>
    %cst_111 = arith.constant dense<0.000000e+00> : vector<16x64xf32>
    %143 = tpu.matmul %140, %142, %cst_111 {dimension_numbers = #tpu.dot_dimension_numbers<[1], [0], [0], [1], [0, 0, 1, 1], [], []>} : vector<16x16xbf16>, vector<16x64xbf16>, vector<16x64xf32> -> vector<16x64xf32>
    %144 = arith.addf %99, %143 : vector<16x64xf32>
    %c0_112 = arith.constant 0 : index
    %c3 = arith.constant 3 : index
    %c0_113 = arith.constant 0 : index
    %c0_114 = arith.constant 0 : index
    %145 = vector.load %arg7[%c0_112, %c3, %c0_113, %c0_114] : memref<1x4x64x16xbf16, #tpu.memory_space<vmem>>, vector<1x1x64x16xbf16>
    %146 = vector.shape_cast %145 : vector<1x1x64x16xbf16> to vector<64x16xbf16>
    %cst_115 = arith.constant dense<0.000000e+00> : vector<16x16xf32>
    %147 = tpu.matmul %7, %146, %cst_115 {dimension_numbers = #tpu.dot_dimension_numbers<[1], [0], [0], [1], [0, 0, 1, 1], [], []>} : vector<16x64xbf16>, vector<64x16xbf16>, vector<16x16xf32> -> vector<16x16xf32>
    %c0_116 = arith.constant 0 : index
    %c3_117 = arith.constant 3 : index
    %c0_118 = arith.constant 0 : index
    %c0_119 = arith.constant 0 : index
    %148 = vector.load %arg8[%c0_116, %c3_117, %c0_118, %c0_119] : memref<1x4x1x16xf32, #tpu.memory_space<vmem>>, vector<1x1x1x16xf32>
    %149 = vector.shape_cast %148 : vector<1x1x1x16xf32> to vector<1x16xf32>
    %150 = vector.broadcast %149 : vector<1x16xf32> to vector<16x16xf32>
    %151 = arith.addf %147, %150 : vector<16x16xf32>
    %c0_120 = arith.constant 0 : index
    %c3_121 = arith.constant 3 : index
    %c0_122 = arith.constant 0 : index
    %c0_123 = arith.constant 0 : index
    %152 = vector.load %arg9[%c0_120, %c3_121, %c0_122, %c0_123] : memref<1x4x64x16xbf16, #tpu.memory_space<vmem>>, vector<1x1x64x16xbf16>
    %153 = vector.shape_cast %152 : vector<1x1x64x16xbf16> to vector<64x16xbf16>
    %cst_124 = arith.constant dense<0.000000e+00> : vector<16x16xf32>
    %154 = tpu.matmul %7, %153, %cst_124 {dimension_numbers = #tpu.dot_dimension_numbers<[1], [0], [0], [1], [0, 0, 1, 1], [], []>} : vector<16x64xbf16>, vector<64x16xbf16>, vector<16x16xf32> -> vector<16x16xf32>
    %c0_125 = arith.constant 0 : index
    %c3_126 = arith.constant 3 : index
    %c0_127 = arith.constant 0 : index
    %c0_128 = arith.constant 0 : index
    %155 = vector.load %arg10[%c0_125, %c3_126, %c0_127, %c0_128] : memref<1x4x1x16xf32, #tpu.memory_space<vmem>>, vector<1x1x1x16xf32>
    %156 = vector.shape_cast %155 : vector<1x1x1x16xf32> to vector<1x16xf32>
    %157 = vector.broadcast %156 : vector<1x16xf32> to vector<16x16xf32>
    %158 = arith.addf %154, %157 : vector<16x16xf32>
    %c0_129 = arith.constant 0 : index
    %c3_130 = arith.constant 3 : index
    %c0_131 = arith.constant 0 : index
    %c0_132 = arith.constant 0 : index
    %159 = vector.load %arg11[%c0_129, %c3_130, %c0_131, %c0_132] : memref<1x4x64x16xbf16, #tpu.memory_space<vmem>>, vector<1x1x64x16xbf16>
    %160 = vector.shape_cast %159 : vector<1x1x64x16xbf16> to vector<64x16xbf16>
    %cst_133 = arith.constant dense<0.000000e+00> : vector<16x16xf32>
    %161 = tpu.matmul %7, %160, %cst_133 {dimension_numbers = #tpu.dot_dimension_numbers<[1], [0], [0], [1], [0, 0, 1, 1], [], []>} : vector<16x64xbf16>, vector<64x16xbf16>, vector<16x16xf32> -> vector<16x16xf32>
    %c0_134 = arith.constant 0 : index
    %c3_135 = arith.constant 3 : index
    %c0_136 = arith.constant 0 : index
    %c0_137 = arith.constant 0 : index
    %162 = vector.load %arg12[%c0_134, %c3_135, %c0_136, %c0_137] : memref<1x4x1x16xf32, #tpu.memory_space<vmem>>, vector<1x1x1x16xf32>
    %163 = vector.shape_cast %162 : vector<1x1x1x16xf32> to vector<1x16xf32>
    %164 = vector.broadcast %163 : vector<1x16xf32> to vector<16x16xf32>
    %165 = arith.addf %161, %164 : vector<16x16xf32>
    %cst_138 = arith.constant 2.500000e-01 : f32
    %166 = vector.broadcast %cst_138 : f32 to vector<16x16xf32>
    %167 = arith.mulf %151, %166 : vector<16x16xf32>
    %168 = arith.truncf %167 : vector<16x16xf32> to vector<16x16xbf16>
    %169 = arith.truncf %158 : vector<16x16xf32> to vector<16x16xbf16>
    %cst_139 = arith.constant dense<0.000000e+00> : vector<16x16xf32>
    %170 = tpu.matmul %168, %169, %cst_139 {dimension_numbers = #tpu.dot_dimension_numbers<[1], [1], [0], [0], [0, 0, 1, 0], [], []>} : vector<16x16xbf16>, vector<16x16xbf16>, vector<16x16xf32> -> vector<16x16xf32>
    %171 = arith.addf %170, %8 : vector<16x16xf32>
    %cst_140 = arith.constant dense<0xFF800000> : vector<16xf32>
    %172 = vector.multi_reduction <maximumf>, %171, %cst_140 [1] : vector<16x16xf32> to vector<16xf32>
    %173 = vector.shape_cast %172 : vector<16xf32> to vector<16x1xf32>
    %174 = vector.broadcast %173 : vector<16x1xf32> to vector<16x16xf32>
    %175 = arith.subf %171, %174 : vector<16x16xf32>
    %176 = math.exp %175 : vector<16x16xf32>
    %cst_141 = arith.constant dense<0.000000e+00> : vector<16xf32>
    %177 = vector.multi_reduction <add>, %176, %cst_141 [1] : vector<16x16xf32> to vector<16xf32>
    %178 = vector.shape_cast %177 : vector<16xf32> to vector<16x1xf32>
    %179 = tpu.reciprocal %178 {approx = true} : vector<16x1xf32> -> vector<16x1xf32>
    %180 = vector.broadcast %179 : vector<16x1xf32> to vector<16x16xf32>
    %181 = arith.mulf %176, %180 : vector<16x16xf32>
    %182 = arith.truncf %181 : vector<16x16xf32> to vector<16x16xbf16>
    %183 = arith.truncf %165 : vector<16x16xf32> to vector<16x16xbf16>
    %cst_142 = arith.constant dense<0.000000e+00> : vector<16x16xf32>
    %184 = tpu.matmul %182, %183, %cst_142 {dimension_numbers = #tpu.dot_dimension_numbers<[1], [0], [0], [1], [0, 0, 1, 1], [], []>} : vector<16x16xbf16>, vector<16x16xbf16>, vector<16x16xf32> -> vector<16x16xf32>
    %185 = arith.truncf %184 : vector<16x16xf32> to vector<16x16xbf16>
    %c0_143 = arith.constant 0 : index
    %c3_144 = arith.constant 3 : index
    %c0_145 = arith.constant 0 : index
    %c0_146 = arith.constant 0 : index
    %186 = vector.load %arg13[%c0_143, %c3_144, %c0_145, %c0_146] : memref<1x4x16x64xbf16, #tpu.memory_space<vmem>>, vector<1x1x16x64xbf16>
    %187 = vector.shape_cast %186 : vector<1x1x16x64xbf16> to vector<16x64xbf16>
    %cst_147 = arith.constant dense<0.000000e+00> : vector<16x64xf32>
    %188 = tpu.matmul %185, %187, %cst_147 {dimension_numbers = #tpu.dot_dimension_numbers<[1], [0], [0], [1], [0, 0, 1, 1], [], []>} : vector<16x16xbf16>, vector<16x64xbf16>, vector<16x64xf32> -> vector<16x64xf32>
    %189 = arith.addf %144, %188 : vector<16x64xf32>
    %c0_148 = arith.constant 0 : index
    %c0_149 = arith.constant 0 : index
    %c0_150 = arith.constant 0 : index
    %190 = vector.load %arg14[%c0_148, %c0_149, %c0_150] : memref<1x1x64xf32, #tpu.memory_space<vmem>>, vector<1x1x64xf32>
    %191 = vector.shape_cast %190 : vector<1x1x64xf32> to vector<1x64xf32>
    %192 = vector.broadcast %191 : vector<1x64xf32> to vector<16x64xf32>
    %193 = arith.addf %189, %192 : vector<16x64xf32>
    %194 = arith.addf %6, %193 : vector<16x64xf32>
    %c0_151 = arith.constant 0 : index
    %c0_152 = arith.constant 0 : index
    %c0_153 = arith.constant 0 : index
    %195 = vector.load %arg15[%c0_151, %c0_152, %c0_153] : memref<1x1x64xf32, #tpu.memory_space<vmem>>, vector<1x1x64xf32>
    %196 = vector.shape_cast %195 : vector<1x1x64xf32> to vector<1x64xf32>
    %c0_154 = arith.constant 0 : index
    %c0_155 = arith.constant 0 : index
    %c0_156 = arith.constant 0 : index
    %197 = vector.load %arg16[%c0_154, %c0_155, %c0_156] : memref<1x1x64xf32, #tpu.memory_space<vmem>>, vector<1x1x64xf32>
    %198 = vector.shape_cast %197 : vector<1x1x64xf32> to vector<1x64xf32>
    %cst_157 = arith.constant dense<0.000000e+00> : vector<16xf32>
    %199 = vector.multi_reduction <add>, %194, %cst_157 [1] : vector<16x64xf32> to vector<16xf32>
    %200 = vector.shape_cast %199 : vector<16xf32> to vector<16x1xf32>
    %cst_158 = arith.constant 6.400000e+01 : f32
    %201 = vector.broadcast %cst_158 : f32 to vector<16x1xf32>
    %202 = arith.divf %200, %201 : vector<16x1xf32>
    %203 = vector.broadcast %202 : vector<16x1xf32> to vector<16x64xf32>
    %204 = arith.subf %194, %203 : vector<16x64xf32>
    %205 = arith.mulf %204, %204 : vector<16x64xf32>
    %cst_159 = arith.constant dense<0.000000e+00> : vector<16xf32>
    %206 = vector.multi_reduction <add>, %205, %cst_159 [1] : vector<16x64xf32> to vector<16xf32>
    %207 = vector.shape_cast %206 : vector<16xf32> to vector<16x1xf32>
    %cst_160 = arith.constant 6.400000e+01 : f32
    %208 = vector.broadcast %cst_160 : f32 to vector<16x1xf32>
    %209 = arith.divf %207, %208 : vector<16x1xf32>
    %210 = vector.broadcast %202 : vector<16x1xf32> to vector<16x64xf32>
    %211 = arith.subf %194, %210 : vector<16x64xf32>
    %cst_161 = arith.constant 9.99999974E-6 : f32
    %212 = vector.broadcast %cst_161 : f32 to vector<16x1xf32>
    %213 = arith.addf %209, %212 : vector<16x1xf32>
    %214 = math.rsqrt %213 : vector<16x1xf32>
    %215 = vector.broadcast %214 : vector<16x1xf32> to vector<16x64xf32>
    %216 = arith.mulf %211, %215 : vector<16x64xf32>
    %217 = vector.broadcast %196 : vector<1x64xf32> to vector<16x64xf32>
    %218 = arith.mulf %216, %217 : vector<16x64xf32>
    %219 = vector.broadcast %198 : vector<1x64xf32> to vector<16x64xf32>
    %220 = arith.addf %218, %219 : vector<16x64xf32>
    %221 = arith.truncf %220 : vector<16x64xf32> to vector<16x64xbf16>
    %c0_162 = arith.constant 0 : index
    %c0_163 = arith.constant 0 : index
    %c0_164 = arith.constant 0 : index
    %222 = vector.load %arg17[%c0_162, %c0_163, %c0_164] : memref<1x64x2048xbf16, #tpu.memory_space<vmem>>, vector<1x64x2048xbf16>
    %223 = vector.shape_cast %222 : vector<1x64x2048xbf16> to vector<64x2048xbf16>
    %cst_165 = arith.constant dense<0.000000e+00> : vector<16x2048xf32>
    %224 = tpu.matmul %221, %223, %cst_165 {dimension_numbers = #tpu.dot_dimension_numbers<[1], [0], [0], [1], [0, 0, 1, 1], [], []>} : vector<16x64xbf16>, vector<64x2048xbf16>, vector<16x2048xf32> -> vector<16x2048xf32>
    %c0_166 = arith.constant 0 : index
    %c0_167 = arith.constant 0 : index
    %c0_168 = arith.constant 0 : index
    %225 = vector.load %arg18[%c0_166, %c0_167, %c0_168] : memref<1x1x2048xf32, #tpu.memory_space<vmem>>, vector<1x1x2048xf32>
    %226 = vector.shape_cast %225 : vector<1x1x2048xf32> to vector<1x2048xf32>
    %227 = vector.broadcast %226 : vector<1x2048xf32> to vector<16x2048xf32>
    %228 = arith.addf %224, %227 : vector<16x2048xf32>
    %cst_169 = arith.constant 0.000000e+00 : f32
    %229 = vector.broadcast %cst_169 : f32 to vector<16x2048xf32>
    %230 = arith.maximumf %228, %229 : vector<16x2048xf32>
    %231 = arith.truncf %230 : vector<16x2048xf32> to vector<16x2048xbf16>
    %c0_170 = arith.constant 0 : index
    %c0_171 = arith.constant 0 : index
    %c0_172 = arith.constant 0 : index
    %232 = vector.load %arg19[%c0_170, %c0_171, %c0_172] : memref<1x2048x64xbf16, #tpu.memory_space<vmem>>, vector<1x2048x64xbf16>
    %233 = vector.shape_cast %232 : vector<1x2048x64xbf16> to vector<2048x64xbf16>
    %cst_173 = arith.constant dense<0.000000e+00> : vector<16x64xf32>
    %234 = tpu.matmul %231, %233, %cst_173 {dimension_numbers = #tpu.dot_dimension_numbers<[1], [0], [0], [1], [0, 0, 1, 1], [], []>} : vector<16x2048xbf16>, vector<2048x64xbf16>, vector<16x64xf32> -> vector<16x64xf32>
    %c0_174 = arith.constant 0 : index
    %c0_175 = arith.constant 0 : index
    %c0_176 = arith.constant 0 : index
    %235 = vector.load %arg20[%c0_174, %c0_175, %c0_176] : memref<1x1x64xf32, #tpu.memory_space<vmem>>, vector<1x1x64xf32>
    %236 = vector.shape_cast %235 : vector<1x1x64xf32> to vector<1x64xf32>
    %237 = vector.broadcast %236 : vector<1x64xf32> to vector<16x64xf32>
    %238 = arith.addf %234, %237 : vector<16x64xf32>
    %239 = arith.addf %220, %238 : vector<16x64xf32>
    %c0_177 = arith.constant 0 : index
    %c0_178 = arith.constant 0 : index
    %c0_179 = arith.constant 0 : index
    %240 = vector.load %arg21[%c0_177, %c0_178, %c0_179] : memref<1x1x64xf32, #tpu.memory_space<vmem>>, vector<1x1x64xf32>
    %241 = vector.shape_cast %240 : vector<1x1x64xf32> to vector<1x64xf32>
    %c0_180 = arith.constant 0 : index
    %c0_181 = arith.constant 0 : index
    %c0_182 = arith.constant 0 : index
    %242 = vector.load %arg22[%c0_180, %c0_181, %c0_182] : memref<1x1x64xf32, #tpu.memory_space<vmem>>, vector<1x1x64xf32>
    %243 = vector.shape_cast %242 : vector<1x1x64xf32> to vector<1x64xf32>
    %cst_183 = arith.constant dense<0.000000e+00> : vector<16xf32>
    %244 = vector.multi_reduction <add>, %239, %cst_183 [1] : vector<16x64xf32> to vector<16xf32>
    %245 = vector.shape_cast %244 : vector<16xf32> to vector<16x1xf32>
    %cst_184 = arith.constant 6.400000e+01 : f32
    %246 = vector.broadcast %cst_184 : f32 to vector<16x1xf32>
    %247 = arith.divf %245, %246 : vector<16x1xf32>
    %248 = vector.broadcast %247 : vector<16x1xf32> to vector<16x64xf32>
    %249 = arith.subf %239, %248 : vector<16x64xf32>
    %250 = arith.mulf %249, %249 : vector<16x64xf32>
    %cst_185 = arith.constant dense<0.000000e+00> : vector<16xf32>
    %251 = vector.multi_reduction <add>, %250, %cst_185 [1] : vector<16x64xf32> to vector<16xf32>
    %252 = vector.shape_cast %251 : vector<16xf32> to vector<16x1xf32>
    %cst_186 = arith.constant 6.400000e+01 : f32
    %253 = vector.broadcast %cst_186 : f32 to vector<16x1xf32>
    %254 = arith.divf %252, %253 : vector<16x1xf32>
    %255 = vector.broadcast %247 : vector<16x1xf32> to vector<16x64xf32>
    %256 = arith.subf %239, %255 : vector<16x64xf32>
    %cst_187 = arith.constant 9.99999974E-6 : f32
    %257 = vector.broadcast %cst_187 : f32 to vector<16x1xf32>
    %258 = arith.addf %254, %257 : vector<16x1xf32>
    %259 = math.rsqrt %258 : vector<16x1xf32>
    %260 = vector.broadcast %259 : vector<16x1xf32> to vector<16x64xf32>
    %261 = arith.mulf %256, %260 : vector<16x64xf32>
    %262 = vector.broadcast %241 : vector<1x64xf32> to vector<16x64xf32>
    %263 = arith.mulf %261, %262 : vector<16x64xf32>
    %264 = vector.broadcast %243 : vector<1x64xf32> to vector<16x64xf32>
    %265 = arith.addf %263, %264 : vector<16x64xf32>
    %266 = arith.index_cast %1 : i32 to index
    %c0_188 = arith.constant 0 : index
    %267 = vector.load %arg26[%266, %c0_188] : memref<16x64xf32, #tpu.memory_space<vmem>>, vector<16x64xf32>
    tpu.vector_store %arg26[%266, %c0_188], %265 {strides = array<i32>} : memref<16x64xf32, #tpu.memory_space<vmem>>, vector<16x64xf32>,
    %c0_189 = arith.constant 0 : index
    %c0_190 = arith.constant 0 : index
    %268 = vector.load %arg23[%c0_189, %c0_190] : memref<1x64xbf16, #tpu.memory_space<vmem>>, vector<1x64xbf16>
    %269 = arith.truncf %265 : vector<16x64xf32> to vector<16x64xbf16>
    %cst_191 = arith.constant dense<0.000000e+00> : vector<1x16xf32>
    %270 = tpu.matmul %268, %269, %cst_191 {dimension_numbers = #tpu.dot_dimension_numbers<[1], [1], [0], [0], [0, 0, 1, 0], [], []>} : vector<1x64xbf16>, vector<16x64xbf16>, vector<1x16xf32> -> vector<1x16xf32>
    %c0_192 = arith.constant 0 : index
    %c0_193 = arith.constant 0 : index
    %271 = vector.load %arg24[%c0_192, %c0_193] : memref<1x1xf32, #tpu.memory_space<vmem>>, vector<1x1xf32>
    %272 = vector.broadcast %271 : vector<1x1xf32> to vector<1x16xf32>
    %273 = arith.addf %270, %272 : vector<1x16xf32>
    %c0_194 = arith.constant 0 : index
    %c0_195 = arith.constant 0 : index
    %274 = vector.load %arg25[%c0_194, %c0_195] : memref<1x16xf32, #tpu.memory_space<vmem>>, vector<1x16xf32>
    tpu.vector_store %arg25[%c0_194, %c0_195], %273 {strides = array<i32>} : memref<1x16xf32, #tpu.memory_space<vmem>>, vector<1x16xf32>,
    return
  }
  func.func @transform_0(%arg0: i32, %arg1: i32) -> (i32, i32) {
    %c0_i32 = arith.constant 0 : i32
    %c0_i32_0 = arith.constant 0 : i32
    return %arg1, %c0_i32 : i32, i32
  }
  func.func @transform_1(%arg0: i32, %arg1: i32) -> (i32, i32) {
    %c0_i32 = arith.constant 0 : i32
    %c0_i32_0 = arith.constant 0 : i32
    %c0_i32_1 = arith.constant 0 : i32
    return %c0_i32, %c0_i32_0 : i32, i32
  }
  func.func @transform_2(%arg0: i32, %arg1: i32) -> (i32, i32) {
    %c0_i32 = arith.constant 0 : i32
    %c0_i32_0 = arith.constant 0 : i32
    %c0_i32_1 = arith.constant 0 : i32
    return %c0_i32, %c0_i32_0 : i32, i32
  }
  func.func @transform_3(%arg0: i32, %arg1: i32) -> (i32, i32) {
    %c0_i32 = arith.constant 0 : i32
    %c0_i32_0 = arith.constant 0 : i32
    %c0_i32_1 = arith.constant 0 : i32
    return %c0_i32, %c0_i32_0 : i32, i32
  }
  func.func @transform_4(%arg0: i32, %arg1: i32) -> (i32, i32) {
    %c0_i32 = arith.constant 0 : i32
    %c0_i32_0 = arith.constant 0 : i32
    %c0_i32_1 = arith.constant 0 : i32
    return %c0_i32, %c0_i32_0 : i32, i32
  }
  func.func @transform_5(%arg0: i32, %arg1: i32) -> (i32, i32, i32, i32) {
    %c0_i32 = arith.constant 0 : i32
    %c0_i32_0 = arith.constant 0 : i32
    %c0_i32_1 = arith.constant 0 : i32
    %c0_i32_2 = arith.constant 0 : i32
    return %arg0, %c0_i32, %c0_i32_0, %c0_i32_1 : i32, i32, i32, i32
  }
  func.func @transform_6(%arg0: i32, %arg1: i32) -> (i32, i32, i32, i32) {
    %c0_i32 = arith.constant 0 : i32
    %c0_i32_0 = arith.constant 0 : i32
    %c0_i32_1 = arith.constant 0 : i32
    %c0_i32_2 = arith.constant 0 : i32
    return %arg0, %c0_i32, %c0_i32_0, %c0_i32_1 : i32, i32, i32, i32
  }
  func.func @transform_7(%arg0: i32, %arg1: i32) -> (i32, i32, i32, i32) {
    %c0_i32 = arith.constant 0 : i32
    %c0_i32_0 = arith.constant 0 : i32
    %c0_i32_1 = arith.constant 0 : i32
    %c0_i32_2 = arith.constant 0 : i32
    return %arg0, %c0_i32, %c0_i32_0, %c0_i32_1 : i32, i32, i32, i32
  }
  func.func @transform_8(%arg0: i32, %arg1: i32) -> (i32, i32, i32, i32) {
    %c0_i32 = arith.constant 0 : i32
    %c0_i32_0 = arith.constant 0 : i32
    %c0_i32_1 = arith.constant 0 : i32
    %c0_i32_2 = arith.constant 0 : i32
    return %arg0, %c0_i32, %c0_i32_0, %c0_i32_1 : i32, i32, i32, i32
  }
  func.func @transform_9(%arg0: i32, %arg1: i32) -> (i32, i32, i32, i32) {
    %c0_i32 = arith.constant 0 : i32
    %c0_i32_0 = arith.constant 0 : i32
    %c0_i32_1 = arith.constant 0 : i32
    %c0_i32_2 = arith.constant 0 : i32
    return %arg0, %c0_i32, %c0_i32_0, %c0_i32_1 : i32, i32, i32, i32
  }
  func.func @transform_10(%arg0: i32, %arg1: i32) -> (i32, i32, i32, i32) {
    %c0_i32 = arith.constant 0 : i32
    %c0_i32_0 = arith.constant 0 : i32
    %c0_i32_1 = arith.constant 0 : i32
    %c0_i32_2 = arith.constant 0 : i32
    return %arg0, %c0_i32, %c0_i32_0, %c0_i32_1 : i32, i32, i32, i32
  }
  func.func @transform_11(%arg0: i32, %arg1: i32) -> (i32, i32, i32, i32) {
    %c0_i32 = arith.constant 0 : i32
    %c0_i32_0 = arith.constant 0 : i32
    %c0_i32_1 = arith.constant 0 : i32
    %c0_i32_2 = arith.constant 0 : i32
    return %arg0, %c0_i32, %c0_i32_0, %c0_i32_1 : i32, i32, i32, i32
  }
  func.func @transform_12(%arg0: i32, %arg1: i32) -> (i32, i32, i32) {
    %c0_i32 = arith.constant 0 : i32
    %c0_i32_0 = arith.constant 0 : i32
    %c0_i32_1 = arith.constant 0 : i32
    return %arg0, %c0_i32, %c0_i32_0 : i32, i32, i32
  }
  func.func @transform_13(%arg0: i32, %arg1: i32) -> (i32, i32, i32) {
    %c0_i32 = arith.constant 0 : i32
    %c0_i32_0 = arith.constant 0 : i32
    %c0_i32_1 = arith.constant 0 : i32
    return %arg0, %c0_i32, %c0_i32_0 : i32, i32, i32
  }
  func.func @transform_14(%arg0: i32, %arg1: i32) -> (i32, i32, i32) {
    %c0_i32 = arith.constant 0 : i32
    %c0_i32_0 = arith.constant 0 : i32
    %c0_i32_1 = arith.constant 0 : i32
    return %arg0, %c0_i32, %c0_i32_0 : i32, i32, i32
  }
  func.func @transform_15(%arg0: i32, %arg1: i32) -> (i32, i32, i32) {
    %c0_i32 = arith.constant 0 : i32
    %c0_i32_0 = arith.constant 0 : i32
    %c0_i32_1 = arith.constant 0 : i32
    return %arg0, %c0_i32, %c0_i32_0 : i32, i32, i32
  }
  func.func @transform_16(%arg0: i32, %arg1: i32) -> (i32, i32, i32) {
    %c0_i32 = arith.constant 0 : i32
    %c0_i32_0 = arith.constant 0 : i32
    %c0_i32_1 = arith.constant 0 : i32
    return %arg0, %c0_i32, %c0_i32_0 : i32, i32, i32
  }
  func.func @transform_17(%arg0: i32, %arg1: i32) -> (i32, i32, i32) {
    %c0_i32 = arith.constant 0 : i32
    %c0_i32_0 = arith.constant 0 : i32
    %c0_i32_1 = arith.constant 0 : i32
    return %arg0, %c0_i32, %c0_i32_0 : i32, i32, i32
  }
  func.func @transform_18(%arg0: i32, %arg1: i32) -> (i32, i32, i32) {
    %c0_i32 = arith.constant 0 : i32
    %c0_i32_0 = arith.constant 0 : i32
    %c0_i32_1 = arith.constant 0 : i32
    return %arg0, %c0_i32, %c0_i32_0 : i32, i32, i32
  }
  func.func @transform_19(%arg0: i32, %arg1: i32) -> (i32, i32, i32) {
    %c0_i32 = arith.constant 0 : i32
    %c0_i32_0 = arith.constant 0 : i32
    %c0_i32_1 = arith.constant 0 : i32
    return %arg0, %c0_i32, %c0_i32_0 : i32, i32, i32
  }
  func.func @transform_20(%arg0: i32, %arg1: i32) -> (i32, i32, i32) {
    %c0_i32 = arith.constant 0 : i32
    %c0_i32_0 = arith.constant 0 : i32
    %c0_i32_1 = arith.constant 0 : i32
    return %arg0, %c0_i32, %c0_i32_0 : i32, i32, i32
  }
  func.func @transform_21(%arg0: i32, %arg1: i32) -> (i32, i32) {
    %c0_i32 = arith.constant 0 : i32
    %c0_i32_0 = arith.constant 0 : i32
    %c0_i32_1 = arith.constant 0 : i32
    return %c0_i32, %c0_i32_0 : i32, i32
  }
  func.func @transform_22(%arg0: i32, %arg1: i32) -> (i32, i32) {
    %c0_i32 = arith.constant 0 : i32
    %c0_i32_0 = arith.constant 0 : i32
    %c0_i32_1 = arith.constant 0 : i32
    return %c0_i32, %c0_i32_0 : i32, i32
  }
  func.func @transform_23(%arg0: i32, %arg1: i32) -> (i32, i32) {
    %c0_i32 = arith.constant 0 : i32
    %c0_i32_0 = arith.constant 0 : i32
    return %arg1, %c0_i32 : i32, i32
  }
}

</mosaic_0001>

<llo_original>
// kernel: tpu_custom_call.1
$region0: #{tpu_custom_call.1}
  #allocation0 [shape = 'u32[]', space=smem, size = 0x4, offset = 0x4, fixed_abs, tag = 'smem constant byte address 0x4 - core index']
  #allocation1 [shape = 'u32[144,128]{1,0:T(1,128)}', space=vmem, size = 0x12000, scoped, tag = 'internal scratch']
  #allocation2 [shape = 'f32[16,64]{1,0:T(8,128)}', space=vmem, size = 0x2000, scoped, tag = 'scratch operand']
  #allocation3 [shape = 'f32[1,1]{1,0:T(1,128)S(1)}', space=vmem, size = 0x200, scoped, tag = 'scoped memory for tpu_custom_call.1']
  %s0 = inlined_call_operand.vmem [shape: f32[16,16], index: 0, kind: input, shape index: {}]
  %s1 = inlined_call_operand.vmem [shape: f32[16,64], index: 1, kind: input, shape index: {}]
  %s2 = inlined_call_operand.vmem [shape: f32[16,16], index: 2, kind: input, shape index: {}]
  %s3 = inlined_call_operand.vmem [shape: bf16[16,64], index: 3, kind: input, shape index: {}]
  %s4 = inlined_call_operand.vmem [shape: f32[1,64], index: 4, kind: input, shape index: {}]
  %s5 = inlined_call_operand.vmem [shape: bf16[2,4,64,16], index: 5, kind: input, shape index: {}]
  %s6 = inlined_call_operand.vmem [shape: f32[2,4,1,16], index: 6, kind: input, shape index: {}]
  %s7 = inlined_call_operand.vmem [shape: bf16[2,4,64,16], index: 7, kind: input, shape index: {}]
  %s8 = inlined_call_operand.vmem [shape: f32[2,4,1,16], index: 8, kind: input, shape index: {}]
  %s9 = inlined_call_operand.vmem [shape: bf16[2,4,64,16], index: 9, kind: input, shape index: {}]
  %s10 = inlined_call_operand.vmem [shape: f32[2,4,1,16], index: 10, kind: input, shape index: {}]
  %s11 = inlined_call_operand.vmem [shape: bf16[2,4,16,64], index: 11, kind: input, shape index: {}]
  %s12 = inlined_call_operand.vmem [shape: f32[2,1,64], index: 12, kind: input, shape index: {}]
  %s13 = inlined_call_operand.vmem [shape: f32[2,1,64], index: 13, kind: input, shape index: {}]
  %s14 = inlined_call_operand.vmem [shape: f32[2,1,64], index: 14, kind: input, shape index: {}]
  %s15 = inlined_call_operand.vmem [shape: bf16[2,64,2048], index: 15, kind: input, shape index: {}]
  %s16 = inlined_call_operand.vmem [shape: f32[2,1,2048], index: 16, kind: input, shape index: {}]
  %s17 = inlined_call_operand.vmem [shape: bf16[2,2048,64], index: 17, kind: input, shape index: {}]
  %s18 = inlined_call_operand.vmem [shape: f32[2,1,64], index: 18, kind: input, shape index: {}]
  %s19 = inlined_call_operand.vmem [shape: f32[2,1,64], index: 19, kind: input, shape index: {}]
  %s20 = inlined_call_operand.vmem [shape: f32[2,1,64], index: 20, kind: input, shape index: {}]
  %s21 = inlined_call_operand.vmem [shape: bf16[1,64], index: 21, kind: input, shape index: {}]
  %s22 = inlined_call_operand.<no memory space> [shape: f32[1,1], index: 22, kind: input, shape index: {}]
  %s23 = inlined_call_operand.hbm [shape: f32[1,16], index: 23, kind: output, shape index: {}]
  %s24 = sld [smem:[#allocation0]]
  $region129: #{tpu_custom_call.1} parent=0
    _
  %s26 = ssub.s32 1, %s24
  %s27 = scalar_select 0, %s26, %s24
  %v28 = vstv %s22
  %29 = vst [vmem:[#allocation3] sm:$0x1] %v28
  $region1: #{tpu_custom_call.1} parent=0
    #allocation4 [shape = 'u8[512]{0}', space=vmem, size = 0x400, scoped, tag = 'output window, operand 0, single buffered']
    #allocation5 [shape = 's32[2]{0}', space=sflag, size = 0x8, scoped, tag = 'scoped memory for tpu_custom_call.1']
    %30 = vsyncpa [#allocation5], 0
    loop: start=0, step=1, limit=4
    $region2: #{tpu_custom_call.1} parent=1 // loop_pre_header
      _
    $region3: #{tpu_custom_call.1} parent=1 // loop_header
      %s32 = sphi 0, %s36
      %p33 = scmp.ge.s32.totalorder %s32, 4
      %s39 = sphi 0, %s51
      %s40 = sphi 0, %s47
      %s41 = sphi 0, %s39
      %s42 = sphi 0, %s40
      %s43 = sphi 0, %s41
      %s44 = sphi 0, %s42
      %s54 = sphi 0, %s56
      %s57 = sphi 0, %s54
      %s58 = sphi 0, %s57
      %s74 = sphi 0, %s58
      %s78 = sphi 0, %s78
      %s80 = sphi 0, %s78
      %s81 = sphi 0, %s80
      %s95 = sphi 0, %s81
      %s99 = sphi 0, %s99
      %s101 = sphi 0, %s99
      %s102 = sphi 0, %s101
      %s116 = sphi 0, %s102
      %s120 = sphi 0, %s120
      %s122 = sphi 0, %s120
      %s123 = sphi 0, %s122
      %s137 = sphi 0, %s123
      %s141 = sphi 0, %s141
      %s143 = sphi 0, %s141
      %s144 = sphi 0, %s143
      %s158 = sphi 0, %s144
      %s164 = sphi 0, %s166
      %s167 = sphi 0, %s164
      %s168 = sphi 0, %s167
      %s184 = sphi 0, %s168
      %s190 = sphi 0, %s192
      %s193 = sphi 0, %s190
      %s194 = sphi 0, %s193
      %s210 = sphi 0, %s194
      %s216 = sphi 0, %s218
      %s219 = sphi 0, %s216
      %s220 = sphi 0, %s219
      %s236 = sphi 0, %s220
      %s242 = sphi 0, %s244
      %s245 = sphi 0, %s242
      %s246 = sphi 0, %s245
      %s262 = sphi 0, %s246
      %s268 = sphi 0, %s270
      %s271 = sphi 0, %s268
      %s272 = sphi 0, %s271
      %s288 = sphi 0, %s272
      %s294 = sphi 0, %s296
      %s297 = sphi 0, %s294
      %s298 = sphi 0, %s297
      %s314 = sphi 0, %s298
      %s320 = sphi 0, %s322
      %s323 = sphi 0, %s320
      %s324 = sphi 0, %s323
      %s340 = sphi 0, %s324
      %s346 = sphi 0, %s348
      %s349 = sphi 0, %s346
      %s350 = sphi 0, %s349
      %s366 = sphi 0, %s350
      %s372 = sphi 0, %s374
      %s375 = sphi 0, %s372
      %s376 = sphi 0, %s375
      %s392 = sphi 0, %s376
      %s398 = sphi 0, %s400
      %s401 = sphi 0, %s398
      %s402 = sphi 0, %s401
      %s418 = sphi 0, %s402
      %s424 = sphi 0, %s426
      %s427 = sphi 0, %s424
      %s428 = sphi 0, %s427
      %s444 = sphi 0, %s428
      %s450 = sphi 0, %s452
      %s453 = sphi 0, %s450
      %s454 = sphi 0, %s453
      %s470 = sphi 0, %s454
      %s476 = sphi 0, %s478
      %s479 = sphi 0, %s476
      %s480 = sphi 0, %s479
      %s496 = sphi 0, %s480
      %s502 = sphi 0, %s504
      %s505 = sphi 0, %s502
      %s506 = sphi 0, %s505
      %s522 = sphi 0, %s506
      %s528 = sphi 0, %s530
      %s531 = sphi 0, %s528
      %s532 = sphi 0, %s531
      %s548 = sphi 0, %s532
      %s554 = sphi 0, %s556
      %s557 = sphi 0, %s554
      %s558 = sphi 0, %s557
      %s574 = sphi 0, %s558
      %s578 = sphi 0, %s578
      %s580 = sphi 0, %s578
      %s581 = sphi 0, %s580
      %s595 = sphi 0, %s581
      %s599 = sphi 0, %s599
      %s601 = sphi 0, %s599
      %s602 = sphi 0, %s601
      %s616 = sphi 0, %s602
      %s622 = sphi 0, %s624
      %s625 = sphi 0, %s622
      %s626 = sphi 0, %s625
      %s642 = sphi 0, %s626
    $region4: #{tpu_custom_call.1} parent=1 // loop_header_branch
      %35 = sbr.rel (%p33) target = $region8
    $region5: #{tpu_custom_call.1} parent=1 // loop_body
      %s37 = ssub.s32 %s32, 1
      %s38 = ssub.s32 %s32, 2
      %s45 = sadd.s32 1, %s40
      %p46 = scmp.ge.s32.totalorder %s45, 1
      %s47 = scalar_select %p46, 0, %s45
      %s48 = sadd.s32 1, %s39
      %s49 = scalar_select %p46, %s48, %s39
      %p50 = scmp.ge.s32.totalorder %s49, 2
      %s51 = scalar_select %p50, 0, %s49
      %s52 = ssub.s32 %s40, %s47
      %p53 = scmp.eq.s32.totalorder %s52, 0
      %s55 = sadd.s32 %s54, 1
      %s56 = scalar_select %p53, %s54, %s55
      %p59 = pneg %p53
      %p60 = scmp.eq.s32.totalorder %s32, 1
      %p61 = por %p59, %p60
      %p62 = scmp.ne.s32.totalorder %s54, %s57
      %p63 = scmp.eq.s32.totalorder %s32, 0
      %p64 = por %p62, %p63
      %p65 = scmp.ne.s32.totalorder %s54, %s57
      %p66 = scmp.eq.s32.totalorder %s37, 1
      %p67 = por %p65, %p66
      %p68 = scmp.ne.s32.totalorder %s57, %s58
      %p69 = scmp.eq.s32.totalorder %s37, 0
      %p70 = por %p68, %p69
      %p71 = scmp.ne.s32.totalorder %s57, %s58
      %p72 = scmp.eq.s32.totalorder %s38, 1
      %p73 = por %p71, %p72
      %p75 = scmp.ne.s32.totalorder %s58, %s74
      %p76 = scmp.eq.s32.totalorder %s38, 0
      %p77 = por %p75, %p76
      %s79 = sadd.s32 %s78, 1
      %p82 = scmp.eq.s32.totalorder %s32, 1
      %p83 = scmp.ne.s32.totalorder %s78, %s80
      %p84 = scmp.eq.s32.totalorder %s32, 0
      %p85 = por %p83, %p84
      %p86 = scmp.ne.s32.totalorder %s78, %s80
      %p87 = scmp.eq.s32.totalorder %s37, 1
      %p88 = por %p86, %p87
      %p89 = scmp.ne.s32.totalorder %s80, %s81
      %p90 = scmp.eq.s32.totalorder %s37, 0
      %p91 = por %p89, %p90
      %p92 = scmp.ne.s32.totalorder %s80, %s81
      %p93 = scmp.eq.s32.totalorder %s38, 1
      %p94 = por %p92, %p93
      %p96 = scmp.ne.s32.totalorder %s81, %s95
      %p97 = scmp.eq.s32.totalorder %s38, 0
      %p98 = por %p96, %p97
      %s100 = sadd.s32 %s99, 1
      %p103 = scmp.eq.s32.totalorder %s32, 1
      %p104 = scmp.ne.s32.totalorder %s99, %s101
      %p105 = scmp.eq.s32.totalorder %s32, 0
      %p106 = por %p104, %p105
      %p107 = scmp.ne.s32.totalorder %s99, %s101
      %p108 = scmp.eq.s32.totalorder %s37, 1
      %p109 = por %p107, %p108
      %p110 = scmp.ne.s32.totalorder %s101, %s102
      %p111 = scmp.eq.s32.totalorder %s37, 0
      %p112 = por %p110, %p111
      %p113 = scmp.ne.s32.totalorder %s101, %s102
      %p114 = scmp.eq.s32.totalorder %s38, 1
      %p115 = por %p113, %p114
      %p117 = scmp.ne.s32.totalorder %s102, %s116
      %p118 = scmp.eq.s32.totalorder %s38, 0
      %p119 = por %p117, %p118
      %s121 = sadd.s32 %s120, 1
      %p124 = scmp.eq.s32.totalorder %s32, 1
      %p125 = scmp.ne.s32.totalorder %s120, %s122
      %p126 = scmp.eq.s32.totalorder %s32, 0
      %p127 = por %p125, %p126
      %p128 = scmp.ne.s32.totalorder %s120, %s122
      %p129 = scmp.eq.s32.totalorder %s37, 1
      %p130 = por %p128, %p129
      %p131 = scmp.ne.s32.totalorder %s122, %s123
      %p132 = scmp.eq.s32.totalorder %s37, 0
      %p133 = por %p131, %p132
      %p134 = scmp.ne.s32.totalorder %s122, %s123
      %p135 = scmp.eq.s32.totalorder %s38, 1
      %p136 = por %p134, %p135
      %p138 = scmp.ne.s32.totalorder %s123, %s137
      %p139 = scmp.eq.s32.totalorder %s38, 0
      %p140 = por %p138, %p139
      %s142 = sadd.s32 %s141, 1
      %p145 = scmp.eq.s32.totalorder %s32, 1
      %p146 = scmp.ne.s32.totalorder %s141, %s143
      %p147 = scmp.eq.s32.totalorder %s32, 0
      %p148 = por %p146, %p147
      %p149 = scmp.ne.s32.totalorder %s141, %s143
      %p150 = scmp.eq.s32.totalorder %s37, 1
      %p151 = por %p149, %p150
      %p152 = scmp.ne.s32.totalorder %s143, %s144
      %p153 = scmp.eq.s32.totalorder %s37, 0
      %p154 = por %p152, %p153
      %p155 = scmp.ne.s32.totalorder %s143, %s144
      %p156 = scmp.eq.s32.totalorder %s38, 1
      %p157 = por %p155, %p156
      %p159 = scmp.ne.s32.totalorder %s144, %s158
      %p160 = scmp.eq.s32.totalorder %s38, 0
      %p161 = por %p159, %p160
      %s162 = ssub.s32 %s39, %s51
      %p163 = scmp.eq.s32.totalorder %s162, 0
      %s165 = sadd.s32 %s164, 1
      %s166 = scalar_select %p163, %s164, %s165
      %p169 = pneg %p163
      %p170 = scmp.eq.s32.totalorder %s32, 1
      %p171 = por %p169, %p170
      %p172 = scmp.ne.s32.totalorder %s164, %s167
      %p173 = scmp.eq.s32.totalorder %s32, 0
      %p174 = por %p172, %p173
      %p175 = scmp.ne.s32.totalorder %s164, %s167
      %p176 = scmp.eq.s32.totalorder %s37, 1
      %p177 = por %p175, %p176
      %p178 = scmp.ne.s32.totalorder %s167, %s168
      %p179 = scmp.eq.s32.totalorder %s37, 0
      %p180 = por %p178, %p179
      %p181 = scmp.ne.s32.totalorder %s167, %s168
      %p182 = scmp.eq.s32.totalorder %s38, 1
      %p183 = por %p181, %p182
      %p185 = scmp.ne.s32.totalorder %s168, %s184
      %p186 = scmp.eq.s32.totalorder %s38, 0
      %p187 = por %p185, %p186
      %s188 = ssub.s32 %s39, %s51
      %p189 = scmp.eq.s32.totalorder %s188, 0
      %s191 = sadd.s32 %s190, 1
      %s192 = scalar_select %p189, %s190, %s191
      %p195 = pneg %p189
      %p196 = scmp.eq.s32.totalorder %s32, 1
      %p197 = por %p195, %p196
      %p198 = scmp.ne.s32.totalorder %s190, %s193
      %p199 = scmp.eq.s32.totalorder %s32, 0
      %p200 = por %p198, %p199
      %p201 = scmp.ne.s32.totalorder %s190, %s193
      %p202 = scmp.eq.s32.totalorder %s37, 1
      %p203 = por %p201, %p202
      %p204 = scmp.ne.s32.totalorder %s193, %s194
      %p205 = scmp.eq.s32.totalorder %s37, 0
      %p206 = por %p204, %p205
      %p207 = scmp.ne.s32.totalorder %s193, %s194
      %p208 = scmp.eq.s32.totalorder %s38, 1
      %p209 = por %p207, %p208
      %p211 = scmp.ne.s32.totalorder %s194, %s210
      %p212 = scmp.eq.s32.totalorder %s38, 0
      %p213 = por %p211, %p212
      %s214 = ssub.s32 %s39, %s51
      %p215 = scmp.eq.s32.totalorder %s214, 0
      %s217 = sadd.s32 %s216, 1
      %s218 = scalar_select %p215, %s216, %s217
      %p221 = pneg %p215
      %p222 = scmp.eq.s32.totalorder %s32, 1
      %p223 = por %p221, %p222
      %p224 = scmp.ne.s32.totalorder %s216, %s219
      %p225 = scmp.eq.s32.totalorder %s32, 0
      %p226 = por %p224, %p225
      %p227 = scmp.ne.s32.totalorder %s216, %s219
      %p228 = scmp.eq.s32.totalorder %s37, 1
      %p229 = por %p227, %p228
      %p230 = scmp.ne.s32.totalorder %s219, %s220
      %p231 = scmp.eq.s32.totalorder %s37, 0
      %p232 = por %p230, %p231
      %p233 = scmp.ne.s32.totalorder %s219, %s220
      %p234 = scmp.eq.s32.totalorder %s38, 1
      %p235 = por %p233, %p234
      %p237 = scmp.ne.s32.totalorder %s220, %s236
      %p238 = scmp.eq.s32.totalorder %s38, 0
      %p239 = por %p237, %p238
      %s240 = ssub.s32 %s39, %s51
      %p241 = scmp.eq.s32.totalorder %s240, 0
      %s243 = sadd.s32 %s242, 1
      %s244 = scalar_select %p241, %s242, %s243
      %p247 = pneg %p241
      %p248 = scmp.eq.s32.totalorder %s32, 1
      %p249 = por %p247, %p248
      %p250 = scmp.ne.s32.totalorder %s242, %s245
      %p251 = scmp.eq.s32.totalorder %s32, 0
      %p252 = por %p250, %p251
      %p253 = scmp.ne.s32.totalorder %s242, %s245
      %p254 = scmp.eq.s32.totalorder %s37, 1
      %p255 = por %p253, %p254
      %p256 = scmp.ne.s32.totalorder %s245, %s246
      %p257 = scmp.eq.s32.totalorder %s37, 0
      %p258 = por %p256, %p257
      %p259 = scmp.ne.s32.totalorder %s245, %s246
      %p260 = scmp.eq.s32.totalorder %s38, 1
      %p261 = por %p259, %p260
      %p263 = scmp.ne.s32.totalorder %s246, %s262
      %p264 = scmp.eq.s32.totalorder %s38, 0
      %p265 = por %p263, %p264
      %s266 = ssub.s32 %s39, %s51
      %p267 = scmp.eq.s32.totalorder %s266, 0
      %s269 = sadd.s32 %s268, 1
      %s270 = scalar_select %p267, %s268, %s269
      %p273 = pneg %p267
      %p274 = scmp.eq.s32.totalorder %s32, 1
      %p275 = por %p273, %p274
      %p276 = scmp.ne.s32.totalorder %s268, %s271
      %p277 = scmp.eq.s32.totalorder %s32, 0
      %p278 = por %p276, %p277
      %p279 = scmp.ne.s32.totalorder %s268, %s271
      %p280 = scmp.eq.s32.totalorder %s37, 1
      %p281 = por %p279, %p280
      %p282 = scmp.ne.s32.totalorder %s271, %s272
      %p283 = scmp.eq.s32.totalorder %s37, 0
      %p284 = por %p282, %p283
      %p285 = scmp.ne.s32.totalorder %s271, %s272
      %p286 = scmp.eq.s32.totalorder %s38, 1
      %p287 = por %p285, %p286
      %p289 = scmp.ne.s32.totalorder %s272, %s288
      %p290 = scmp.eq.s32.totalorder %s38, 0
      %p291 = por %p289, %p290
      %s292 = ssub.s32 %s39, %s51
      %p293 = scmp.eq.s32.totalorder %s292, 0
      %s295 = sadd.s32 %s294, 1
      %s296 = scalar_select %p293, %s294, %s295
      %p299 = pneg %p293
      %p300 = scmp.eq.s32.totalorder %s32, 1
      %p301 = por %p299, %p300
      %p302 = scmp.ne.s32.totalorder %s294, %s297
      %p303 = scmp.eq.s32.totalorder %s32, 0
      %p304 = por %p302, %p303
      %p305 = scmp.ne.s32.totalorder %s294, %s297
      %p306 = scmp.eq.s32.totalorder %s37, 1
      %p307 = por %p305, %p306
      %p308 = scmp.ne.s32.totalorder %s297, %s298
      %p309 = scmp.eq.s32.totalorder %s37, 0
      %p310 = por %p308, %p309
      %p311 = scmp.ne.s32.totalorder %s297, %s298
      %p312 = scmp.eq.s32.totalorder %s38, 1
      %p313 = por %p311, %p312
      %p315 = scmp.ne.s32.totalorder %s298, %s314
      %p316 = scmp.eq.s32.totalorder %s38, 0
      %p317 = por %p315, %p316
      %s318 = ssub.s32 %s39, %s51
      %p319 = scmp.eq.s32.totalorder %s318, 0
      %s321 = sadd.s32 %s320, 1
      %s322 = scalar_select %p319, %s320, %s321
      %p325 = pneg %p319
      %p326 = scmp.eq.s32.totalorder %s32, 1
      %p327 = por %p325, %p326
      %p328 = scmp.ne.s32.totalorder %s320, %s323
      %p329 = scmp.eq.s32.totalorder %s32, 0
      %p330 = por %p328, %p329
      %p331 = scmp.ne.s32.totalorder %s320, %s323
      %p332 = scmp.eq.s32.totalorder %s37, 1
      %p333 = por %p331, %p332
      %p334 = scmp.ne.s32.totalorder %s323, %s324
      %p335 = scmp.eq.s32.totalorder %s37, 0
      %p336 = por %p334, %p335
      %p337 = scmp.ne.s32.totalorder %s323, %s324
      %p338 = scmp.eq.s32.totalorder %s38, 1
      %p339 = por %p337, %p338
      %p341 = scmp.ne.s32.totalorder %s324, %s340
      %p342 = scmp.eq.s32.totalorder %s38, 0
      %p343 = por %p341, %p342
      %s344 = ssub.s32 %s39, %s51
      %p345 = scmp.eq.s32.totalorder %s344, 0
      %s347 = sadd.s32 %s346, 1
      %s348 = scalar_select %p345, %s346, %s347
      %p351 = pneg %p345
      %p352 = scmp.eq.s32.totalorder %s32, 1
      %p353 = por %p351, %p352
      %p354 = scmp.ne.s32.totalorder %s346, %s349
      %p355 = scmp.eq.s32.totalorder %s32, 0
      %p356 = por %p354, %p355
      %p357 = scmp.ne.s32.totalorder %s346, %s349
      %p358 = scmp.eq.s32.totalorder %s37, 1
      %p359 = por %p357, %p358
      %p360 = scmp.ne.s32.totalorder %s349, %s350
      %p361 = scmp.eq.s32.totalorder %s37, 0
      %p362 = por %p360, %p361
      %p363 = scmp.ne.s32.totalorder %s349, %s350
      %p364 = scmp.eq.s32.totalorder %s38, 1
      %p365 = por %p363, %p364
      %p367 = scmp.ne.s32.totalorder %s350, %s366
      %p368 = scmp.eq.s32.totalorder %s38, 0
      %p369 = por %p367, %p368
      %s370 = ssub.s32 %s39, %s51
      %p371 = scmp.eq.s32.totalorder %s370, 0
      %s373 = sadd.s32 %s372, 1
      %s374 = scalar_select %p371, %s372, %s373
      %p377 = pneg %p371
      %p378 = scmp.eq.s32.totalorder %s32, 1
      %p379 = por %p377, %p378
      %p380 = scmp.ne.s32.totalorder %s372, %s375
      %p381 = scmp.eq.s32.totalorder %s32, 0
      %p382 = por %p380, %p381
      %p383 = scmp.ne.s32.totalorder %s372, %s375
      %p384 = scmp.eq.s32.totalorder %s37, 1
      %p385 = por %p383, %p384
      %p386 = scmp.ne.s32.totalorder %s375, %s376
      %p387 = scmp.eq.s32.totalorder %s37, 0
      %p388 = por %p386, %p387
      %p389 = scmp.ne.s32.totalorder %s375, %s376
      %p390 = scmp.eq.s32.totalorder %s38, 1
      %p391 = por %p389, %p390
      %p393 = scmp.ne.s32.totalorder %s376, %s392
      %p394 = scmp.eq.s32.totalorder %s38, 0
      %p395 = por %p393, %p394
      %s396 = ssub.s32 %s39, %s51
      %p397 = scmp.eq.s32.totalorder %s396, 0
      %s399 = sadd.s32 %s398, 1
      %s400 = scalar_select %p397, %s398, %s399
      %p403 = pneg %p397
      %p404 = scmp.eq.s32.totalorder %s32, 1
      %p405 = por %p403, %p404
      %p406 = scmp.ne.s32.totalorder %s398, %s401
      %p407 = scmp.eq.s32.totalorder %s32, 0
      %p408 = por %p406, %p407
      %p409 = scmp.ne.s32.totalorder %s398, %s401
      %p410 = scmp.eq.s32.totalorder %s37, 1
      %p411 = por %p409, %p410
      %p412 = scmp.ne.s32.totalorder %s401, %s402
      %p413 = scmp.eq.s32.totalorder %s37, 0
      %p414 = por %p412, %p413
      %p415 = scmp.ne.s32.totalorder %s401, %s402
      %p416 = scmp.eq.s32.totalorder %s38, 1
      %p417 = por %p415, %p416
      %p419 = scmp.ne.s32.totalorder %s402, %s418
      %p420 = scmp.eq.s32.totalorder %s38, 0
      %p421 = por %p419, %p420
      %s422 = ssub.s32 %s39, %s51
      %p423 = scmp.eq.s32.totalorder %s422, 0
      %s425 = sadd.s32 %s424, 1
      %s426 = scalar_select %p423, %s424, %s425
      %p429 = pneg %p423
      %p430 = scmp.eq.s32.totalorder %s32, 1
      %p431 = por %p429, %p430
      %p432 = scmp.ne.s32.totalorder %s424, %s427
      %p433 = scmp.eq.s32.totalorder %s32, 0
      %p434 = por %p432, %p433
      %p435 = scmp.ne.s32.totalorder %s424, %s427
      %p436 = scmp.eq.s32.totalorder %s37, 1
      %p437 = por %p435, %p436
      %p438 = scmp.ne.s32.totalorder %s427, %s428
      %p439 = scmp.eq.s32.totalorder %s37, 0
      %p440 = por %p438, %p439
      %p441 = scmp.ne.s32.totalorder %s427, %s428
      %p442 = scmp.eq.s32.totalorder %s38, 1
      %p443 = por %p441, %p442
      %p445 = scmp.ne.s32.totalorder %s428, %s444
      %p446 = scmp.eq.s32.totalorder %s38, 0
      %p447 = por %p445, %p446
      %s448 = ssub.s32 %s39, %s51
      %p449 = scmp.eq.s32.totalorder %s448, 0
      %s451 = sadd.s32 %s450, 1
      %s452 = scalar_select %p449, %s450, %s451
      %p455 = pneg %p449
      %p456 = scmp.eq.s32.totalorder %s32, 1
      %p457 = por %p455, %p456
      %p458 = scmp.ne.s32.totalorder %s450, %s453
      %p459 = scmp.eq.s32.totalorder %s32, 0
      %p460 = por %p458, %p459
      %p461 = scmp.ne.s32.totalorder %s450, %s453
      %p462 = scmp.eq.s32.totalorder %s37, 1
      %p463 = por %p461, %p462
      %p464 = scmp.ne.s32.totalorder %s453, %s454
      %p465 = scmp.eq.s32.totalorder %s37, 0
      %p466 = por %p464, %p465
      %p467 = scmp.ne.s32.totalorder %s453, %s454
      %p468 = scmp.eq.s32.totalorder %s38, 1
      %p469 = por %p467, %p468
      %p471 = scmp.ne.s32.totalorder %s454, %s470
      %p472 = scmp.eq.s32.totalorder %s38, 0
      %p473 = por %p471, %p472
      %s474 = ssub.s32 %s39, %s51
      %p475 = scmp.eq.s32.totalorder %s474, 0
      %s477 = sadd.s32 %s476, 1
      %s478 = scalar_select %p475, %s476, %s477
      %p481 = pneg %p475
      %p482 = scmp.eq.s32.totalorder %s32, 1
      %p483 = por %p481, %p482
      %p484 = scmp.ne.s32.totalorder %s476, %s479
      %p485 = scmp.eq.s32.totalorder %s32, 0
      %p486 = por %p484, %p485
      %p487 = scmp.ne.s32.totalorder %s476, %s479
      %p488 = scmp.eq.s32.totalorder %s37, 1
      %p489 = por %p487, %p488
      %p490 = scmp.ne.s32.totalorder %s479, %s480
      %p491 = scmp.eq.s32.totalorder %s37, 0
      %p492 = por %p490, %p491
      %p493 = scmp.ne.s32.totalorder %s479, %s480
      %p494 = scmp.eq.s32.totalorder %s38, 1
      %p495 = por %p493, %p494
      %p497 = scmp.ne.s32.totalorder %s480, %s496
      %p498 = scmp.eq.s32.totalorder %s38, 0
      %p499 = por %p497, %p498
      %s500 = ssub.s32 %s39, %s51
      %p501 = scmp.eq.s32.totalorder %s500, 0
      %s503 = sadd.s32 %s502, 1
      %s504 = scalar_select %p501, %s502, %s503
      %p507 = pneg %p501
      %p508 = scmp.eq.s32.totalorder %s32, 1
      %p509 = por %p507, %p508
      %p510 = scmp.ne.s32.totalorder %s502, %s505
      %p511 = scmp.eq.s32.totalorder %s32, 0
      %p512 = por %p510, %p511
      %p513 = scmp.ne.s32.totalorder %s502, %s505
      %p514 = scmp.eq.s32.totalorder %s37, 1
      %p515 = por %p513, %p514
      %p516 = scmp.ne.s32.totalorder %s505, %s506
      %p517 = scmp.eq.s32.totalorder %s37, 0
      %p518 = por %p516, %p517
      %p519 = scmp.ne.s32.totalorder %s505, %s506
      %p520 = scmp.eq.s32.totalorder %s38, 1
      %p521 = por %p519, %p520
      %p523 = scmp.ne.s32.totalorder %s506, %s522
      %p524 = scmp.eq.s32.totalorder %s38, 0
      %p525 = por %p523, %p524
      %s526 = ssub.s32 %s39, %s51
      %p527 = scmp.eq.s32.totalorder %s526, 0
      %s529 = sadd.s32 %s528, 1
      %s530 = scalar_select %p527, %s528, %s529
      %p533 = pneg %p527
      %p534 = scmp.eq.s32.totalorder %s32, 1
      %p535 = por %p533, %p534
      %p536 = scmp.ne.s32.totalorder %s528, %s531
      %p537 = scmp.eq.s32.totalorder %s32, 0
      %p538 = por %p536, %p537
      %p539 = scmp.ne.s32.totalorder %s528, %s531
      %p540 = scmp.eq.s32.totalorder %s37, 1
      %p541 = por %p539, %p540
      %p542 = scmp.ne.s32.totalorder %s531, %s532
      %p543 = scmp.eq.s32.totalorder %s37, 0
      %p544 = por %p542, %p543
      %p545 = scmp.ne.s32.totalorder %s531, %s532
      %p546 = scmp.eq.s32.totalorder %s38, 1
      %p547 = por %p545, %p546
      %p549 = scmp.ne.s32.totalorder %s532, %s548
      %p550 = scmp.eq.s32.totalorder %s38, 0
      %p551 = por %p549, %p550
      %s552 = ssub.s32 %s39, %s51
      %p553 = scmp.eq.s32.totalorder %s552, 0
      %s555 = sadd.s32 %s554, 1
      %s556 = scalar_select %p553, %s554, %s555
      %p559 = pneg %p553
      %p560 = scmp.eq.s32.totalorder %s32, 1
      %p561 = por %p559, %p560
      %p562 = scmp.ne.s32.totalorder %s554, %s557
      %p563 = scmp.eq.s32.totalorder %s32, 0
      %p564 = por %p562, %p563
      %p565 = scmp.ne.s32.totalorder %s554, %s557
      %p566 = scmp.eq.s32.totalorder %s37, 1
      %p567 = por %p565, %p566
      %p568 = scmp.ne.s32.totalorder %s557, %s558
      %p569 = scmp.eq.s32.totalorder %s37, 0
      %p570 = por %p568, %p569
      %p571 = scmp.ne.s32.totalorder %s557, %s558
      %p572 = scmp.eq.s32.totalorder %s38, 1
      %p573 = por %p571, %p572
      %p575 = scmp.ne.s32.totalorder %s558, %s574
      %p576 = scmp.eq.s32.totalorder %s38, 0
      %p577 = por %p575, %p576
      %s579 = sadd.s32 %s578, 1
      %p582 = scmp.eq.s32.totalorder %s32, 1
      %p583 = scmp.ne.s32.totalorder %s578, %s580
      %p584 = scmp.eq.s32.totalorder %s32, 0
      %p585 = por %p583, %p584
      %p586 = scmp.ne.s32.totalorder %s578, %s580
      %p587 = scmp.eq.s32.totalorder %s37, 1
      %p588 = por %p586, %p587
      %p589 = scmp.ne.s32.totalorder %s580, %s581
      %p590 = scmp.eq.s32.totalorder %s37, 0
      %p591 = por %p589, %p590
      %p592 = scmp.ne.s32.totalorder %s580, %s581
      %p593 = scmp.eq.s32.totalorder %s38, 1
      %p594 = por %p592, %p593
      %p596 = scmp.ne.s32.totalorder %s581, %s595
      %p597 = scmp.eq.s32.totalorder %s38, 0
      %p598 = por %p596, %p597
      %s600 = sadd.s32 %s599, 1
      %p603 = scmp.eq.s32.totalorder %s32, 1
      %p604 = scmp.ne.s32.totalorder %s599, %s601
      %p605 = scmp.eq.s32.totalorder %s32, 0
      %p606 = por %p604, %p605
      %p607 = scmp.ne.s32.totalorder %s599, %s601
      %p608 = scmp.eq.s32.totalorder %s37, 1
      %p609 = por %p607, %p608
      %p610 = scmp.ne.s32.totalorder %s601, %s602
      %p611 = scmp.eq.s32.totalorder %s37, 0
      %p612 = por %p610, %p611
      %p613 = scmp.ne.s32.totalorder %s601, %s602
      %p614 = scmp.eq.s32.totalorder %s38, 1
      %p615 = por %p613, %p614
      %p617 = scmp.ne.s32.totalorder %s602, %s616
      %p618 = scmp.eq.s32.totalorder %s38, 0
      %p619 = por %p617, %p618
      %s620 = ssub.s32 %s40, %s47
      %p621 = scmp.eq.s32.totalorder %s620, 0
      %s623 = sadd.s32 %s622, 1
      %s624 = scalar_select %p621, %s622, %s623
      %p627 = pneg %p621
      %p628 = scmp.eq.s32.totalorder %s32, 1
      %p629 = por %p627, %p628
      %p630 = scmp.ne.s32.totalorder %s622, %s625
      %p631 = scmp.eq.s32.totalorder %s32, 0
      %p632 = por %p630, %p631
      %p633 = scmp.ne.s32.totalorder %s622, %s625
      %p634 = scmp.eq.s32.totalorder %s37, 1
      %p635 = por %p633, %p634
      %p636 = scmp.ne.s32.totalorder %s625, %s626
      %p637 = scmp.eq.s32.totalorder %s37, 0
      %p638 = por %p636, %p637
      %p639 = scmp.ne.s32.totalorder %s625, %s626
      %p640 = scmp.eq.s32.totalorder %s38, 1
      %p641 = por %p639, %p640
      %p643 = scmp.ne.s32.totalorder %s626, %s642
      %p644 = scmp.eq.s32.totalorder %s38, 0
      %p645 = por %p643, %p644
      %p646 = scmp.le.s32.totalorder 1, %s32
      %p647 = scmp.lt.s32.totalorder %s32, 3
      %p648 = pnand %p646, %p647
      %p649 = pneg %p648
      // Predicated region
      $region9: #{tpu_custom_call.1} parent=5 // pred_check
        _
      $region10: #{tpu_custom_call.1} parent=5 // pred_check_branch
        %651 = sbr.rel (%p648) target = $region12
      $region11: #{tpu_custom_call.1} parent=5 // pred_region
        %s652 = ssub.s32 %s32, 1
        // Predicated region
        $region13: #{tpu_custom_call.1} parent=11 // pred_check
          %p653 = pneg %p70
        $region14: #{tpu_custom_call.1} parent=11 // pred_check_branch
          %655 = sbr.rel (%p653) target = $region16
        $region15: #{tpu_custom_call.1} parent=11 // pred_region
          %s656 = smul.u32 2, %s42
          %p657 = scmp.lt.s32.totalorder %s656, 1
          %s658 = scalar_select %p657, %s656, 1
          %s659 = smul.addr %s658, 8
          %s660 = scalar_lea.vmem %s0, %s659
          %s661 = smul.u32 2, %s42
        $region16: #{tpu_custom_call.1} parent=11 // pred_fallthru
          _
        // Predicated region
        $region17: #{tpu_custom_call.1} parent=11 // pred_check
          %p662 = pneg %p91
        $region18: #{tpu_custom_call.1} parent=11 // pred_check_branch
          %664 = sbr.rel (%p662) target = $region20
        $region19: #{tpu_custom_call.1} parent=11 // pred_region
          _
        $region20: #{tpu_custom_call.1} parent=11 // pred_fallthru
          _
        // Predicated region
        $region21: #{tpu_custom_call.1} parent=11 // pred_check
          %p665 = pneg %p112
        $region22: #{tpu_custom_call.1} parent=11 // pred_check_branch
          %667 = sbr.rel (%p665) target = $region24
        $region23: #{tpu_custom_call.1} parent=11 // pred_region
          _
        $region24: #{tpu_custom_call.1} parent=11 // pred_fallthru
          _
        // Predicated region
        $region25: #{tpu_custom_call.1} parent=11 // pred_check
          %p668 = pneg %p133
        $region26: #{tpu_custom_call.1} parent=11 // pred_check_branch
          %670 = sbr.rel (%p668) target = $region28
        $region27: #{tpu_custom_call.1} parent=11 // pred_region
          _
        $region28: #{tpu_custom_call.1} parent=11 // pred_fallthru
          _
        // Predicated region
        $region29: #{tpu_custom_call.1} parent=11 // pred_check
          %p671 = pneg %p154
        $region30: #{tpu_custom_call.1} parent=11 // pred_check_branch
          %673 = sbr.rel (%p671) target = $region32
        $region31: #{tpu_custom_call.1} parent=11 // pred_region
          _
        $region32: #{tpu_custom_call.1} parent=11 // pred_fallthru
          _
        // Predicated region
        $region33: #{tpu_custom_call.1} parent=11 // pred_check
          %p674 = pneg %p591
        $region34: #{tpu_custom_call.1} parent=11 // pred_check_branch
          %676 = sbr.rel (%p674) target = $region36
        $region35: #{tpu_custom_call.1} parent=11 // pred_region
          _
        $region36: #{tpu_custom_call.1} parent=11 // pred_fallthru
          _
        // Predicated region
        $region37: #{tpu_custom_call.1} parent=11 // pred_check
          %p677 = pneg %p612
        $region38: #{tpu_custom_call.1} parent=11 // pred_check_branch
          %679 = sbr.rel (%p677) target = $region40
        $region39: #{tpu_custom_call.1} parent=11 // pred_region
          _
        $region40: #{tpu_custom_call.1} parent=11 // pred_fallthru
          _
      $region12: #{tpu_custom_call.1} parent=5 // pred_fallthru
        _
      %p680 = scmp.lt.s32.totalorder %s32, 2
      // Predicated region
      $region41: #{tpu_custom_call.1} parent=5 // pred_check
        %p681 = pneg %p680
      $region42: #{tpu_custom_call.1} parent=5 // pred_check_branch
        %683 = sbr.rel (%p681) target = $region44
      $region43: #{tpu_custom_call.1} parent=5 // pred_region
        // Predicated region
        $region45: #{tpu_custom_call.1} parent=43 // pred_check
          %p684 = pneg %p174
        $region46: #{tpu_custom_call.1} parent=43 // pred_check_branch
          %686 = sbr.rel (%p684) target = $region48
        $region47: #{tpu_custom_call.1} parent=43 // pred_region
          %p687 = scmp.lt.s32.totalorder %s39, 1
          %s688 = scalar_select %p687, %s39, 1
          %s689 = smul.addr %s688, 32
          %s690 = smul.addr %s689, 4
          %s691 = scalar_lea.vmem %s5, %s690
        $region48: #{tpu_custom_call.1} parent=43 // pred_fallthru
          _
        // Predicated region
        $region49: #{tpu_custom_call.1} parent=43 // pred_check
          %p692 = pneg %p200
        $region50: #{tpu_custom_call.1} parent=43 // pred_check_branch
          %694 = sbr.rel (%p692) target = $region52
        $region51: #{tpu_custom_call.1} parent=43 // pred_region
          %p695 = scmp.lt.s32.totalorder %s39, 1
          %s696 = scalar_select %p695, %s39, 1
          %s697 = smul.addr %s696, 4
          %s698 = scalar_lea.vmem %s6, %s697
        $region52: #{tpu_custom_call.1} parent=43 // pred_fallthru
          _
        // Predicated region
        $region53: #{tpu_custom_call.1} parent=43 // pred_check
          %p699 = pneg %p226
        $region54: #{tpu_custom_call.1} parent=43 // pred_check_branch
          %701 = sbr.rel (%p699) target = $region56
        $region55: #{tpu_custom_call.1} parent=43 // pred_region
          %p702 = scmp.lt.s32.totalorder %s39, 1
          %s703 = scalar_select %p702, %s39, 1
          %s704 = smul.addr %s703, 32
          %s705 = smul.addr %s704, 4
          %s706 = scalar_lea.vmem %s7, %s705
        $region56: #{tpu_custom_call.1} parent=43 // pred_fallthru
          _
        // Predicated region
        $region57: #{tpu_custom_call.1} parent=43 // pred_check
          %p707 = pneg %p252
        $region58: #{tpu_custom_call.1} parent=43 // pred_check_branch
          %709 = sbr.rel (%p707) target = $region60
        $region59: #{tpu_custom_call.1} parent=43 // pred_region
          %p710 = scmp.lt.s32.totalorder %s39, 1
          %s711 = scalar_select %p710, %s39, 1
          %s712 = smul.addr %s711, 4
          %s713 = scalar_lea.vmem %s8, %s712
        $region60: #{tpu_custom_call.1} parent=43 // pred_fallthru
          _
        // Predicated region
        $region61: #{tpu_custom_call.1} parent=43 // pred_check
          %p714 = pneg %p278
        $region62: #{tpu_custom_call.1} parent=43 // pred_check_branch
          %716 = sbr.rel (%p714) target = $region64
        $region63: #{tpu_custom_call.1} parent=43 // pred_region
          %p717 = scmp.lt.s32.totalorder %s39, 1
          %s718 = scalar_select %p717, %s39, 1
          %s719 = smul.addr %s718, 32
          %s720 = smul.addr %s719, 4
          %s721 = scalar_lea.vmem %s9, %s720
        $region64: #{tpu_custom_call.1} parent=43 // pred_fallthru
          _
        // Predicated region
        $region65: #{tpu_custom_call.1} parent=43 // pred_check
          %p722 = pneg %p304
        $region66: #{tpu_custom_call.1} parent=43 // pred_check_branch
          %724 = sbr.rel (%p722) target = $region68
        $region67: #{tpu_custom_call.1} parent=43 // pred_region
          %p725 = scmp.lt.s32.totalorder %s39, 1
          %s726 = scalar_select %p725, %s39, 1
          %s727 = smul.addr %s726, 4
          %s728 = scalar_lea.vmem %s10, %s727
        $region68: #{tpu_custom_call.1} parent=43 // pred_fallthru
          _
        // Predicated region
        $region69: #{tpu_custom_call.1} parent=43 // pred_check
          %p729 = pneg %p330
        $region70: #{tpu_custom_call.1} parent=43 // pred_check_branch
          %731 = sbr.rel (%p729) target = $region72
        $region71: #{tpu_custom_call.1} parent=43 // pred_region
          %p732 = scmp.lt.s32.totalorder %s39, 1
          %s733 = scalar_select %p732, %s39, 1
          %s734 = smul.addr %s733, 8
          %s735 = smul.addr %s734, 4
          %s736 = scalar_lea.vmem %s11, %s735
        $region72: #{tpu_custom_call.1} parent=43 // pred_fallthru
          _
        // Predicated region
        $region73: #{tpu_custom_call.1} parent=43 // pred_check
          %p737 = pneg %p356
        $region74: #{tpu_custom_call.1} parent=43 // pred_check_branch
          %739 = sbr.rel (%p737) target = $region76
        $region75: #{tpu_custom_call.1} parent=43 // pred_region
          %p740 = scmp.lt.s32.totalorder %s39, 1
          %s741 = scalar_select %p740, %s39, 1
          %s742 = scalar_lea.vmem %s12, %s741
        $region76: #{tpu_custom_call.1} parent=43 // pred_fallthru
          _
        // Predicated region
        $region77: #{tpu_custom_call.1} parent=43 // pred_check
          %p743 = pneg %p382
        $region78: #{tpu_custom_call.1} parent=43 // pred_check_branch
          %745 = sbr.rel (%p743) target = $region80
        $region79: #{tpu_custom_call.1} parent=43 // pred_region
          %p746 = scmp.lt.s32.totalorder %s39, 1
          %s747 = scalar_select %p746, %s39, 1
          %s748 = scalar_lea.vmem %s13, %s747
        $region80: #{tpu_custom_call.1} parent=43 // pred_fallthru
          _
        // Predicated region
        $region81: #{tpu_custom_call.1} parent=43 // pred_check
          %p749 = pneg %p408
        $region82: #{tpu_custom_call.1} parent=43 // pred_check_branch
          %751 = sbr.rel (%p749) target = $region84
        $region83: #{tpu_custom_call.1} parent=43 // pred_region
          %p752 = scmp.lt.s32.totalorder %s39, 1
          %s753 = scalar_select %p752, %s39, 1
          %s754 = scalar_lea.vmem %s14, %s753
        $region84: #{tpu_custom_call.1} parent=43 // pred_fallthru
          _
        // Predicated region
        $region85: #{tpu_custom_call.1} parent=43 // pred_check
          %p755 = pneg %p434
        $region86: #{tpu_custom_call.1} parent=43 // pred_check_branch
          %757 = sbr.rel (%p755) target = $region88
        $region87: #{tpu_custom_call.1} parent=43 // pred_region
          %p758 = scmp.lt.s32.totalorder %s39, 1
          %s759 = scalar_select %p758, %s39, 1
          %s760 = smul.addr %s759, 128
          %s761 = smul.addr %s760, 4
          %s762 = scalar_lea.vmem %s15, %s761
        $region88: #{tpu_custom_call.1} parent=43 // pred_fallthru
          _
        // Predicated region
        $region89: #{tpu_custom_call.1} parent=43 // pred_check
          %p763 = pneg %p460
        $region90: #{tpu_custom_call.1} parent=43 // pred_check_branch
          %765 = sbr.rel (%p763) target = $region92
        $region91: #{tpu_custom_call.1} parent=43 // pred_region
          %p766 = scmp.lt.s32.totalorder %s39, 1
          %s767 = scalar_select %p766, %s39, 1
          %s768 = smul.addr %s767, 16
          %s769 = scalar_lea.vmem %s16, %s768
        $region92: #{tpu_custom_call.1} parent=43 // pred_fallthru
          _
        // Predicated region
        $region93: #{tpu_custom_call.1} parent=43 // pred_check
          %p770 = pneg %p486
        $region94: #{tpu_custom_call.1} parent=43 // pred_check_branch
          %772 = sbr.rel (%p770) target = $region96
        $region95: #{tpu_custom_call.1} parent=43 // pred_region
          %p773 = scmp.lt.s32.totalorder %s39, 1
          %s774 = scalar_select %p773, %s39, 1
          %s775 = smul.addr %s774, 256
          %s776 = smul.addr %s775, 4
          %s777 = scalar_lea.vmem %s17, %s776
        $region96: #{tpu_custom_call.1} parent=43 // pred_fallthru
          _
        // Predicated region
        $region97: #{tpu_custom_call.1} parent=43 // pred_check
          %p778 = pneg %p512
        $region98: #{tpu_custom_call.1} parent=43 // pred_check_branch
          %780 = sbr.rel (%p778) target = $region100
        $region99: #{tpu_custom_call.1} parent=43 // pred_region
          %p781 = scmp.lt.s32.totalorder %s39, 1
          %s782 = scalar_select %p781, %s39, 1
          %s783 = scalar_lea.vmem %s18, %s782
        $region100: #{tpu_custom_call.1} parent=43 // pred_fallthru
          _
        // Predicated region
        $region101: #{tpu_custom_call.1} parent=43 // pred_check
          %p784 = pneg %p538
        $region102: #{tpu_custom_call.1} parent=43 // pred_check_branch
          %786 = sbr.rel (%p784) target = $region104
        $region103: #{tpu_custom_call.1} parent=43 // pred_region
          %p787 = scmp.lt.s32.totalorder %s39, 1
          %s788 = scalar_select %p787, %s39, 1
          %s789 = scalar_lea.vmem %s19, %s788
        $region104: #{tpu_custom_call.1} parent=43 // pred_fallthru
          _
        // Predicated region
        $region105: #{tpu_custom_call.1} parent=43 // pred_check
          %p790 = pneg %p564
        $region106: #{tpu_custom_call.1} parent=43 // pred_check_branch
          %792 = sbr.rel (%p790) target = $region108
        $region107: #{tpu_custom_call.1} parent=43 // pred_region
          %p793 = scmp.lt.s32.totalorder %s39, 1
          %s794 = scalar_select %p793, %s39, 1
          %s795 = scalar_lea.vmem %s20, %s794
        $region108: #{tpu_custom_call.1} parent=43 // pred_fallthru
          _
      $region44: #{tpu_custom_call.1} parent=5 // pred_fallthru
        _
      %p796 = scmp.le.s32.totalorder 1, %s32
      %p797 = scmp.lt.s32.totalorder %s32, 3
      %p798 = pnand %p796, %p797
      %p799 = pneg %p798
      // Predicated region
      $region109: #{tpu_custom_call.1} parent=5 // pred_check
        _
      $region110: #{tpu_custom_call.1} parent=5 // pred_check_branch
        %801 = sbr.rel (%p798) target = $region112
      $region111: #{tpu_custom_call.1} parent=5 // pred_region
        %s802 = ssub.s32 %s32, 1
        %s803 = smul.u32 2, %s42
        %p804 = scmp.lt.s32.totalorder %s803, 1
        %s805 = scalar_select %p804, %s803, 1
        %s806 = smul.addr %s805, 8
        %s807 = scalar_lea.vmem %s0, %s806
        %p808 = pneg %p70
        %p809 = pneg %p67
        %p810 = pneg %p91
        %p811 = pneg %p88
        %p812 = pneg %p112
        %p813 = pneg %p109
        %p814 = pneg %p133
        %p815 = pneg %p130
        %p816 = pneg %p154
        %p817 = pneg %p151
        %p818 = scmp.lt.s32.totalorder %s41, 1
        %s819 = scalar_select %p818, %s41, 1
        %s820 = smul.addr %s819, 32
        %s821 = smul.addr %s820, 4
        %s822 = scalar_lea.vmem %s5, %s821
        %p823 = pneg %p180
        %p824 = pneg %p177
        %p825 = scmp.lt.s32.totalorder %s41, 1
        %s826 = scalar_select %p825, %s41, 1
        %s827 = smul.addr %s826, 4
        %s828 = scalar_lea.vmem %s6, %s827
        %p829 = pneg %p206
        %p830 = pneg %p203
        %p831 = scmp.lt.s32.totalorder %s41, 1
        %s832 = scalar_select %p831, %s41, 1
        %s833 = smul.addr %s832, 32
        %s834 = smul.addr %s833, 4
        %s835 = scalar_lea.vmem %s7, %s834
        %p836 = pneg %p232
        %p837 = pneg %p229
        %p838 = scmp.lt.s32.totalorder %s41, 1
        %s839 = scalar_select %p838, %s41, 1
        %s840 = smul.addr %s839, 4
        %s841 = scalar_lea.vmem %s8, %s840
        %p842 = pneg %p258
        %p843 = pneg %p255
        %p844 = scmp.lt.s32.totalorder %s41, 1
        %s845 = scalar_select %p844, %s41, 1
        %s846 = smul.addr %s845, 32
        %s847 = smul.addr %s846, 4
        %s848 = scalar_lea.vmem %s9, %s847
        %p849 = pneg %p284
        %p850 = pneg %p281
        %p851 = scmp.lt.s32.totalorder %s41, 1
        %s852 = scalar_select %p851, %s41, 1
        %s853 = smul.addr %s852, 4
        %s854 = scalar_lea.vmem %s10, %s853
        %p855 = pneg %p310
        %p856 = pneg %p307
        %p857 = scmp.lt.s32.totalorder %s41, 1
        %s858 = scalar_select %p857, %s41, 1
        %s859 = smul.addr %s858, 8
        %s860 = smul.addr %s859, 4
        %s861 = scalar_lea.vmem %s11, %s860
        %p862 = pneg %p336
        %p863 = pneg %p333
        %p864 = scmp.lt.s32.totalorder %s41, 1
        %s865 = scalar_select %p864, %s41, 1
        %s866 = scalar_lea.vmem %s12, %s865
        %p867 = pneg %p362
        %p868 = pneg %p359
        %p869 = scmp.lt.s32.totalorder %s41, 1
        %s870 = scalar_select %p869, %s41, 1
        %s871 = scalar_lea.vmem %s13, %s870
        %p872 = pneg %p388
        %p873 = pneg %p385
        %p874 = scmp.lt.s32.totalorder %s41, 1
        %s875 = scalar_select %p874, %s41, 1
        %s876 = scalar_lea.vmem %s14, %s875
        %p877 = pneg %p414
        %p878 = pneg %p411
        %p879 = scmp.lt.s32.totalorder %s41, 1
        %s880 = scalar_select %p879, %s41, 1
        %s881 = smul.addr %s880, 128
        %s882 = smul.addr %s881, 4
        %s883 = scalar_lea.vmem %s15, %s882
        %p884 = pneg %p440
        %p885 = pneg %p437
        %p886 = scmp.lt.s32.totalorder %s41, 1
        %s887 = scalar_select %p886, %s41, 1
        %s888 = smul.addr %s887, 16
        %s889 = scalar_lea.vmem %s16, %s888
        %p890 = pneg %p466
        %p891 = pneg %p463
        %p892 = scmp.lt.s32.totalorder %s41, 1
        %s893 = scalar_select %p892, %s41, 1
        %s894 = smul.addr %s893, 256
        %s895 = smul.addr %s894, 4
        %s896 = scalar_lea.vmem %s17, %s895
        %p897 = pneg %p492
        %p898 = pneg %p489
        %p899 = scmp.lt.s32.totalorder %s41, 1
        %s900 = scalar_select %p899, %s41, 1
        %s901 = scalar_lea.vmem %s18, %s900
        %p902 = pneg %p518
        %p903 = pneg %p515
        %p904 = scmp.lt.s32.totalorder %s41, 1
        %s905 = scalar_select %p904, %s41, 1
        %s906 = scalar_lea.vmem %s19, %s905
        %p907 = pneg %p544
        %p908 = pneg %p541
        %p909 = scmp.lt.s32.totalorder %s41, 1
        %s910 = scalar_select %p909, %s41, 1
        %s911 = scalar_lea.vmem %s20, %s910
        %p912 = pneg %p570
        %p913 = pneg %p567
        %p914 = pneg %p591
        %p915 = pneg %p588
        %p916 = pneg %p612
        %p917 = pneg %p609
        %p918 = pneg %p638
        %p919 = pneg %p635
        %s920 = smul.u32 2, %s42
        %p921 = scmp.lt.s32.totalorder %s920, 1
        %s922 = scalar_select %p921, %s920, 1
        %s923 = smul.addr %s922, 8
        %s924 = scalar_lea.vmem %s0, %s923
        %s925 = smul.u32 2, %s42
        %p926 = scmp.lt.s32.totalorder %s41, 1
        %s927 = scalar_select %p926, %s41, 1
        %s928 = smul.addr %s927, 32
        %s929 = smul.addr %s928, 4
        %s930 = scalar_lea.vmem %s5, %s929
        %p931 = scmp.lt.s32.totalorder %s41, 1
        %s932 = scalar_select %p931, %s41, 1
        %s933 = smul.addr %s932, 4
        %s934 = scalar_lea.vmem %s6, %s933
        %p935 = scmp.lt.s32.totalorder %s41, 1
        %s936 = scalar_select %p935, %s41, 1
        %s937 = smul.addr %s936, 32
        %s938 = smul.addr %s937, 4
        %s939 = scalar_lea.vmem %s7, %s938
        %p940 = scmp.lt.s32.totalorder %s41, 1
        %s941 = scalar_select %p940, %s41, 1
        %s942 = smul.addr %s941, 4
        %s943 = scalar_lea.vmem %s8, %s942
        %p944 = scmp.lt.s32.totalorder %s41, 1
        %s945 = scalar_select %p944, %s41, 1
        %s946 = smul.addr %s945, 32
        %s947 = smul.addr %s946, 4
        %s948 = scalar_lea.vmem %s9, %s947
        %p949 = scmp.lt.s32.totalorder %s41, 1
        %s950 = scalar_select %p949, %s41, 1
        %s951 = smul.addr %s950, 4
        %s952 = scalar_lea.vmem %s10, %s951
        %p953 = scmp.lt.s32.totalorder %s41, 1
        %s954 = scalar_select %p953, %s41, 1
        %s955 = smul.addr %s954, 8
        %s956 = smul.addr %s955, 4
        %s957 = scalar_lea.vmem %s11, %s956
        %p958 = scmp.lt.s32.totalorder %s41, 1
        %s959 = scalar_select %p958, %s41, 1
        %s960 = scalar_lea.vmem %s12, %s959
        %p961 = scmp.lt.s32.totalorder %s41, 1
        %s962 = scalar_select %p961, %s41, 1
        %s963 = scalar_lea.vmem %s13, %s962
        %p964 = scmp.lt.s32.totalorder %s41, 1
        %s965 = scalar_select %p964, %s41, 1
        %s966 = scalar_lea.vmem %s14, %s965
        %p967 = scmp.lt.s32.totalorder %s41, 1
        %s968 = scalar_select %p967, %s41, 1
        %s969 = smul.addr %s968, 128
        %s970 = smul.addr %s969, 4
        %s971 = scalar_lea.vmem %s15, %s970
        %p972 = scmp.lt.s32.totalorder %s41, 1
        %s973 = scalar_select %p972, %s41, 1
        %s974 = smul.addr %s973, 16
        %s975 = scalar_lea.vmem %s16, %s974
        %p976 = scmp.lt.s32.totalorder %s41, 1
        %s977 = scalar_select %p976, %s41, 1
        %s978 = smul.addr %s977, 256
        %s979 = smul.addr %s978, 4
        %s980 = scalar_lea.vmem %s17, %s979
        %p981 = scmp.lt.s32.totalorder %s41, 1
        %s982 = scalar_select %p981, %s41, 1
        %s983 = scalar_lea.vmem %s18, %s982
        %p984 = scmp.lt.s32.totalorder %s41, 1
        %s985 = scalar_select %p984, %s41, 1
        %s986 = scalar_lea.vmem %s19, %s985
        %p987 = scmp.lt.s32.totalorder %s41, 1
        %s988 = scalar_select %p987, %s41, 1
        %s989 = scalar_lea.vmem %s20, %s988
        %s991 = smul.u32 %s42, 16
        %p992 = scmp.eq.s32.totalorder %s41, 0
        // Predicated region
        $region113: #{tpu_custom_call.1} parent=111 // pred_check
          %p993 = pneg %p992
        $region114: #{tpu_custom_call.1} parent=111 // pred_check_branch
          %995 = sbr.rel (%p993) target = $region116
        $region115: #{tpu_custom_call.1} parent=111 // pred_region
          %v996 = vld [vmem:[%s924] sm:$0xff]
          %v997 = vld [vmem:[%s924 + $0x8] sm:$0xff]
          %v998 = vpack.c.bf16 %v997, %v996
          %v999 = vld [vmem:[%s3] sm:$0xf]
          %v1000 = vld [vmem:[%s3 + $0x4] sm:$0xf]
          %v1001 = vld [vmem:[%s4] sm:$0x1]
          %v1003 = vlaneseq
          %v1004 = vshrl.u32 %v1003, 7
          %v1005 = vsub.s32 0, %v1004
          %v1006 = vrot.slane %v1001, %v1005
          %v1010 = vunpack.c.l.b16 %v999
          %v1011 = vunpack.c.l.b16 %v1000
          %v1012 = vpack.c.b16 %v1011, %v1010
          %vm1014 = vcmask 130048
          %v1016 = vsel %vm1014, %v998, 0
          %1018 = vmatprep.subr.bf16.mxu0 0
          %1019 = vmatpush1.bf16.msra.mxu0 0
          %1020 = vmatprep.subr.bf16.mxu0 0
          %1021 = vmatpush1.bf16.msra.mxu0 0
          %1022 = vmatprep.subr.bf16.mxu0 0
          %1023 = vmatpush1.bf16.msra.mxu0 0
          %1024 = vmatprep.subr.bf16.mxu0 0
          %1025 = vmatpush1.bf16.msra.mxu0 0
          %1026 = vmatprep.subr.bf16.mxu0 0
          %1027 = vmatpush1.bf16.msra.mxu0 0
          %1028 = vmatprep.subr.bf16.mxu0 0
          %1029 = vmatpush1.bf16.msra.mxu0 0
          %1030 = vmatprep.subr.bf16.mxu0 0
          %1031 = vmatpush1.bf16.msra.mxu0 0
          %1032 = vmatprep.subr.bf16.mxu0 0
          %1033 = vmatpush1.bf16.msra.mxu0 %v1012
          %1034 = vmatprep.subr.bf16.mxu0 0
          %1035 = vmatpush2.bf16.msra.mxu0 0
          %1036 = vmatprep.subr.bf16.mxu0 0
          %1037 = vmatpush2.bf16.msra.mxu0 0
          %1038 = vmatprep.subr.bf16.mxu0 0
          %1039 = vmatpush2.bf16.msra.mxu0 0
          %1040 = vmatprep.subr.bf16.mxu0 0
          %1041 = vmatpush2.bf16.msra.mxu0 0
          %1042 = vmatprep.subr.bf16.mxu0 0
          %1043 = vmatpush2.bf16.msra.mxu0 0
          %1044 = vmatprep.subr.bf16.mxu0 0
          %1045 = vmatpush2.bf16.msra.mxu0 0
          %1046 = vmatprep.subr.bf16.mxu0 0
          %1047 = vmatpush2.bf16.msra.mxu0 0
          %1048 = vmatprep.subr.bf16.mxu0 0
          %1049 = vmatpush2.bf16.msra.mxu0 0
          %1050 = vmatprep.mubr.bf16.mxu0 0
          %1051 = vmatmul.mubr.bf16.gmra.mxu0 %v1016
          %v1052 = vpop.f32.mrf.mxu0
          %v1053 = vadd.f32 %v1006, %v1052
          %v1054 = vpop.f32.mrf.mxu0
          %v1055 = vpop.f32.mrf.mxu0
          %v1056 = vadd.f32 %v1006, %v1055
          %v1057 = vpop.f32.mrf.mxu0
          %1058 = vdwg.mxu0
          %v1059 = vld [vmem:[%s1] sm:$0xff]
          %v1060 = vld [vmem:[%s1 + $0x8] sm:$0xff]
          %v1061 = vadd.f32 %v1053, %v1059
          %v1062 = vadd.f32 %v1056, %v1060
          %s1063 = scalar_lea.vmem [#allocation2], %s991
          %vm1064 = vcmask 523264
          %1065 = vst.msk [vmem:[%s1063] sm:$0xff] %vm1064, %v1061
          %1066 = vst.msk [vmem:[%s1063 + $0x8] sm:$0xff] %vm1064, %v1062
        $region116: #{tpu_custom_call.1} parent=111 // pred_fallthru
          _
        %s1067 = scalar_lea.vmem [#allocation2], %s991
        %v1068 = vld [vmem:[%s1067] sm:$0xff]
        %v1069 = vld [vmem:[%s1067 + $0x8] sm:$0xff]
        %v1070 = vpack.c.bf16 %v1069, %v1068
        %v1071 = vld [vmem:[%s2] sm:$0xff]
        %v1072 = vld [vmem:[%s2 + $0x8] sm:$0xff]
        %v1073 = vld [vmem:[%s930] sm:$0xf]
        %v1074 = vld [vmem:[%s930 + $0x4] sm:$0xf]
        %v1075 = vld [vmem:[%s930 + $0x8] sm:$0xf]
        %v1076 = vld [vmem:[%s930 + $0xc] sm:$0xf]
        %v1077 = vld [vmem:[%s930 + $0x10] sm:$0xf]
        %v1078 = vld [vmem:[%s930 + $0x14] sm:$0xf]
        %v1079 = vld [vmem:[%s930 + $0x18] sm:$0xf]
        %v1080 = vld [vmem:[%s930 + $0x1c] sm:$0xf]
        %v1081 = vld [vmem:[%s934] sm:$0x1]
        %v1083 = vlaneseq
        %v1084 = vshrl.u32 %v1083, 7
        %v1085 = vsub.s32 0, %v1084
        %v1086 = vrot.slane %v1081, %v1085
        %v1096 = vunpack.c.l.b16 %v1073
        %v1097 = vunpack.c.l.b16 %v1074
        %v1098 = vunpack.c.l.b16 %v1075
        %v1099 = vunpack.c.l.b16 %v1076
        %v1100 = vunpack.c.l.b16 %v1077
        %v1101 = vunpack.c.l.b16 %v1078
        %v1102 = vunpack.c.l.b16 %v1079
        %v1103 = vunpack.c.l.b16 %v1080
        %v1104 = vpack.c.b16 %v1097, %v1096
        %v1105 = vpack.c.b16 %v1099, %v1098
        %v1106 = vpack.c.b16 %v1101, %v1100
        %v1107 = vpack.c.b16 %v1103, %v1102
        %vm1112 = vcmask 523264
        %v1114 = vsel %vm1112, %v1070, 0
        %1116 = vmatprep.subr.bf16.mxu0 0
        %1117 = vmatpush1.bf16.msra.mxu0 0
        %1118 = vmatprep.subr.bf16.mxu0 0
        %1119 = vmatpush1.bf16.msra.mxu0 0
        %1120 = vmatprep.subr.bf16.mxu0 0
        %1121 = vmatpush1.bf16.msra.mxu0 0
        %1122 = vmatprep.subr.bf16.mxu0 0
        %1123 = vmatpush1.bf16.msra.mxu0 0
        %1124 = vmatprep.subr.bf16.mxu0 0
        %1125 = vmatpush1.bf16.msra.mxu0 %v1107
        %1126 = vmatprep.subr.bf16.mxu0 0
        %1127 = vmatpush1.bf16.msra.mxu0 %v1106
        %1128 = vmatprep.subr.bf16.mxu0 0
        %1129 = vmatpush1.bf16.msra.mxu0 %v1105
        %1130 = vmatprep.subr.bf16.mxu0 0
        %1131 = vmatpush1.bf16.msra.mxu0 %v1104
        %1132 = vmatprep.subr.bf16.mxu0 0
        %1133 = vmatpush2.bf16.msra.mxu0 0
        %1134 = vmatprep.subr.bf16.mxu0 0
        %1135 = vmatpush2.bf16.msra.mxu0 0
        %1136 = vmatprep.subr.bf16.mxu0 0
        %1137 = vmatpush2.bf16.msra.mxu0 0
        %1138 = vmatprep.subr.bf16.mxu0 0
        %1139 = vmatpush2.bf16.msra.mxu0 0
        %1140 = vmatprep.subr.bf16.mxu0 0
        %1141 = vmatpush2.bf16.msra.mxu0 0
        %1142 = vmatprep.subr.bf16.mxu0 0
        %1143 = vmatpush2.bf16.msra.mxu0 0
        %1144 = vmatprep.subr.bf16.mxu0 0
        %1145 = vmatpush2.bf16.msra.mxu0 0
        %1146 = vmatprep.subr.bf16.mxu0 0
        %1147 = vmatpush2.bf16.msra.mxu0 0
        %1148 = vmatprep.mubr.bf16.mxu0 0
        %1149 = vmatmul.mubr.bf16.gmra.mxu0 %v1114
        %v1150 = vpop.f32.mrf.mxu0
        %v1151 = vadd.f32 %v1086, %v1150
        %v1152 = vpop.f32.mrf.mxu0
        %v1153 = vpop.f32.mrf.mxu0
        %v1154 = vadd.f32 %v1086, %v1153
        %v1155 = vpop.f32.mrf.mxu0
        %1156 = vdwg.mxu0
        %v1157 = vld [vmem:[%s939] sm:$0xf]
        %v1158 = vld [vmem:[%s939 + $0x4] sm:$0xf]
        %v1159 = vld [vmem:[%s939 + $0x8] sm:$0xf]
        %v1160 = vld [vmem:[%s939 + $0xc] sm:$0xf]
        %v1161 = vld [vmem:[%s939 + $0x10] sm:$0xf]
        %v1162 = vld [vmem:[%s939 + $0x14] sm:$0xf]
        %v1163 = vld [vmem:[%s939 + $0x18] sm:$0xf]
        %v1164 = vld [vmem:[%s939 + $0x1c] sm:$0xf]
        %v1165 = vld [vmem:[%s943] sm:$0x1]
        %v1167 = vlaneseq
        %v1168 = vshrl.u32 %v1167, 7
        %v1169 = vsub.s32 0, %v1168
        %v1170 = vrot.slane %v1165, %v1169
        %v1180 = vunpack.c.l.b16 %v1157
        %v1181 = vunpack.c.l.b16 %v1158
        %v1182 = vunpack.c.l.b16 %v1159
        %v1183 = vunpack.c.l.b16 %v1160
        %v1184 = vunpack.c.l.b16 %v1161
        %v1185 = vunpack.c.l.b16 %v1162
        %v1186 = vunpack.c.l.b16 %v1163
        %v1187 = vunpack.c.l.b16 %v1164
        %v1188 = vpack.c.b16 %v1181, %v1180
        %v1189 = vpack.c.b16 %v1183, %v1182
        %v1190 = vpack.c.b16 %v1185, %v1184
        %v1191 = vpack.c.b16 %v1187, %v1186
        %1196 = vmatprep.subr.bf16.mxu0 0
        %1197 = vmatpush1.bf16.msra.mxu0 0
        %1198 = vmatprep.subr.bf16.mxu0 0
        %1199 = vmatpush1.bf16.msra.mxu0 0
        %1200 = vmatprep.subr.bf16.mxu0 0
        %1201 = vmatpush1.bf16.msra.mxu0 0
        %1202 = vmatprep.subr.bf16.mxu0 0
        %1203 = vmatpush1.bf16.msra.mxu0 0
        %1204 = vmatprep.subr.bf16.mxu0 0
        %1205 = vmatpush1.bf16.msra.mxu0 %v1191
        %1206 = vmatprep.subr.bf16.mxu0 0
        %1207 = vmatpush1.bf16.msra.mxu0 %v1190
        %1208 = vmatprep.subr.bf16.mxu0 0
        %1209 = vmatpush1.bf16.msra.mxu0 %v1189
        %1210 = vmatprep.subr.bf16.mxu0 0
        %1211 = vmatpush1.bf16.msra.mxu0 %v1188
        %1212 = vmatprep.subr.bf16.mxu0 0
        %1213 = vmatpush2.bf16.msra.mxu0 0
        %1214 = vmatprep.subr.bf16.mxu0 0
        %1215 = vmatpush2.bf16.msra.mxu0 0
        %1216 = vmatprep.subr.bf16.mxu0 0
        %1217 = vmatpush2.bf16.msra.mxu0 0
        %1218 = vmatprep.subr.bf16.mxu0 0
        %1219 = vmatpush2.bf16.msra.mxu0 0
        %1220 = vmatprep.subr.bf16.mxu0 0
        %1221 = vmatpush2.bf16.msra.mxu0 0
        %1222 = vmatprep.subr.bf16.mxu0 0
        %1223 = vmatpush2.bf16.msra.mxu0 0
        %1224 = vmatprep.subr.bf16.mxu0 0
        %1225 = vmatpush2.bf16.msra.mxu0 0
        %1226 = vmatprep.subr.bf16.mxu0 0
        %1227 = vmatpush2.bf16.msra.mxu0 0
        %1228 = vmatprep.mubr.bf16.mxu0 0
        %1229 = vmatmul.mubr.bf16.gmra.mxu0 %v1114
        %v1230 = vpop.f32.mrf.mxu0
        %v1231 = vadd.f32 %v1170, %v1230
        %v1232 = vpop.f32.mrf.mxu0
        %v1233 = vpop.f32.mrf.mxu0
        %v1234 = vadd.f32 %v1170, %v1233
        %v1235 = vpop.f32.mrf.mxu0
        %1236 = vdwg.mxu0
        %v1237 = vld [vmem:[%s948] sm:$0xf]
        %v1238 = vld [vmem:[%s948 + $0x4] sm:$0xf]
        %v1239 = vld [vmem:[%s948 + $0x8] sm:$0xf]
        %v1240 = vld [vmem:[%s948 + $0xc] sm:$0xf]
        %v1241 = vld [vmem:[%s948 + $0x10] sm:$0xf]
        %v1242 = vld [vmem:[%s948 + $0x14] sm:$0xf]
        %v1243 = vld [vmem:[%s948 + $0x18] sm:$0xf]
        %v1244 = vld [vmem:[%s948 + $0x1c] sm:$0xf]
        %v1245 = vld [vmem:[%s952] sm:$0x1]
        %v1247 = vlaneseq
        %v1248 = vshrl.u32 %v1247, 7
        %v1249 = vsub.s32 0, %v1248
        %v1250 = vrot.slane %v1245, %v1249
        %v1260 = vunpack.c.l.b16 %v1237
        %v1261 = vunpack.c.l.b16 %v1238
        %v1262 = vunpack.c.l.b16 %v1239
        %v1263 = vunpack.c.l.b16 %v1240
        %v1264 = vunpack.c.l.b16 %v1241
        %v1265 = vunpack.c.l.b16 %v1242
        %v1266 = vunpack.c.l.b16 %v1243
        %v1267 = vunpack.c.l.b16 %v1244
        %v1268 = vpack.c.b16 %v1261, %v1260
        %v1269 = vpack.c.b16 %v1263, %v1262
        %v1270 = vpack.c.b16 %v1265, %v1264
        %v1271 = vpack.c.b16 %v1267, %v1266
        %1276 = vmatprep.subr.bf16.mxu0 0
        %1277 = vmatpush1.bf16.msra.mxu0 0
        %1278 = vmatprep.subr.bf16.mxu0 0
        %1279 = vmatpush1.bf16.msra.mxu0 0
        %1280 = vmatprep.subr.bf16.mxu0 0
        %1281 = vmatpush1.bf16.msra.mxu0 0
        %1282 = vmatprep.subr.bf16.mxu0 0
        %1283 = vmatpush1.bf16.msra.mxu0 0
        %1284 = vmatprep.subr.bf16.mxu0 0
        %1285 = vmatpush1.bf16.msra.mxu0 %v1271
        %1286 = vmatprep.subr.bf16.mxu0 0
        %1287 = vmatpush1.bf16.msra.mxu0 %v1270
        %1288 = vmatprep.subr.bf16.mxu0 0
        %1289 = vmatpush1.bf16.msra.mxu0 %v1269
        %1290 = vmatprep.subr.bf16.mxu0 0
        %1291 = vmatpush1.bf16.msra.mxu0 %v1268
        %1292 = vmatprep.subr.bf16.mxu0 0
        %1293 = vmatpush2.bf16.msra.mxu0 0
        %1294 = vmatprep.subr.bf16.mxu0 0
        %1295 = vmatpush2.bf16.msra.mxu0 0
        %1296 = vmatprep.subr.bf16.mxu0 0
        %1297 = vmatpush2.bf16.msra.mxu0 0
        %1298 = vmatprep.subr.bf16.mxu0 0
        %1299 = vmatpush2.bf16.msra.mxu0 0
        %1300 = vmatprep.subr.bf16.mxu0 0
        %1301 = vmatpush2.bf16.msra.mxu0 0
        %1302 = vmatprep.subr.bf16.mxu0 0
        %1303 = vmatpush2.bf16.msra.mxu0 0
        %1304 = vmatprep.subr.bf16.mxu0 0
        %1305 = vmatpush2.bf16.msra.mxu0 0
        %1306 = vmatprep.subr.bf16.mxu0 0
        %1307 = vmatpush2.bf16.msra.mxu0 0
        %1308 = vmatprep.mubr.bf16.mxu0 0
        %1309 = vmatmul.mubr.bf16.gmra.mxu0 %v1114
        %v1310 = vpop.f32.mrf.mxu0
        %v1311 = vadd.f32 %v1250, %v1310
        %v1312 = vpop.f32.mrf.mxu0
        %v1313 = vpop.f32.mrf.mxu0
        %v1314 = vadd.f32 %v1250, %v1313
        %v1315 = vpop.f32.mrf.mxu0
        %1316 = vdwg.mxu0
        %v1317 = vmul.f32 %v1151, 0.25
        %v1318 = vmul.f32 %v1154, 0.25
        %v1319 = vpack.c.bf16 %v1318, %v1317
        %v1320 = vpack.c.bf16 %v1234, %v1231
        %vm1321 = vcmask 130048
        %v1323 = vsel %vm1321, %v1319, 0
        %v1326 = vsel %vm1321, %v1320, 0
        %1328 = vmatprep.subr.bf16.mxu0 0
        %1329 = vmatpush1.bf16.xpose.msra.mxu0 0
        %1330 = vmatprep.subr.bf16.mxu0 0
        %1331 = vmatpush1.bf16.xpose.msra.mxu0 0
        %1332 = vmatprep.subr.bf16.mxu0 0
        %1333 = vmatpush1.bf16.xpose.msra.mxu0 0
        %1334 = vmatprep.subr.bf16.mxu0 0
        %1335 = vmatpush1.bf16.xpose.msra.mxu0 0
        %1336 = vmatprep.subr.bf16.mxu0 0
        %1337 = vmatpush1.bf16.xpose.msra.mxu0 0
        %1338 = vmatprep.subr.bf16.mxu0 0
        %1339 = vmatpush1.bf16.xpose.msra.mxu0 0
        %1340 = vmatprep.subr.bf16.mxu0 0
        %1341 = vmatpush1.bf16.xpose.msra.mxu0 0
        %1342 = vmatprep.subr.bf16.mxu0 0
        %1343 = vmatpush1.bf16.xpose.msra.mxu0 %v1326
        %1344 = vmatprep.subr.bf16.mxu0 0
        %1345 = vmatpush2.bf16.xpose.msra.mxu0 0
        %1346 = vmatprep.subr.bf16.mxu0 0
        %1347 = vmatpush2.bf16.xpose.msra.mxu0 0
        %1348 = vmatprep.subr.bf16.mxu0 0
        %1349 = vmatpush2.bf16.xpose.msra.mxu0 0
        %1350 = vmatprep.subr.bf16.mxu0 0
        %1351 = vmatpush2.bf16.xpose.msra.mxu0 0
        %1352 = vmatprep.subr.bf16.mxu0 0
        %1353 = vmatpush2.bf16.xpose.msra.mxu0 0
        %1354 = vmatprep.subr.bf16.mxu0 0
        %1355 = vmatpush2.bf16.xpose.msra.mxu0 0
        %1356 = vmatprep.subr.bf16.mxu0 0
        %1357 = vmatpush2.bf16.xpose.msra.mxu0 0
        %1358 = vmatprep.subr.bf16.mxu0 0
        %1359 = vmatpush2.bf16.xpose.msra.mxu0 0
        %1360 = vmatprep.mubr.bf16.mxu0 0
        %1361 = vmatmul.mubr.bf16.gmra.mxu0 %v1323
        %v1362 = vpop.f32.mrf.mxu0
        %v1363 = vadd.f32 %v1071, %v1362
        %v1364 = vpop.f32.mrf.mxu0
        %v1365 = vpop.f32.mrf.mxu0
        %v1366 = vadd.f32 %v1072, %v1365
        %v1367 = vpop.f32.mrf.mxu0
        %1368 = vdwg.mxu0
        %v1369 = vsel %vm1321, %v1363, -inf
        %1370 = vmax.xlane.f32.xlu0 %v1369
        %v1371 = vpop.xlane.xlu0 %1370
        %v1372 = vsel %vm1321, %v1366, -inf
        %1373 = vmax.xlane.f32.xlu0 %v1372
        %v1374 = vpop.xlane.xlu0 %1373
        %v1375 = vsub.f32 %v1363, %v1371
        %v1376 = vsub.f32 %v1366, %v1374
        %v1377 = vmul.f32 %v1375, 1.442695
        %v1378 = vpow.pop %v1377
        %v1379 = vmul.f32 %v1376, 1.442695
        %v1380 = vpow.pop %v1379
        %v1381 = vsel %vm1321, %v1378, 0.0
        %1382 = vadd.xlane.f32.xlu0 %v1381
        %v1383 = vpop.xlane.xlu0 %1382
        %v1384 = vsel %vm1321, %v1380, 0.0
        %1385 = vadd.xlane.f32.xlu0 %v1384
        %v1386 = vpop.xlane.xlu0 %1385
        %v1387 = vrcp.pop %v1383
        %v1388 = vrcp.pop %v1386
        %v1389 = vmul.f32 %v1378, %v1387
        %v1390 = vmul.f32 %v1380, %v1388
        %v1391 = vpack.c.bf16 %v1390, %v1389
        %v1392 = vpack.c.bf16 %v1314, %v1311
        %v1394 = vsel %vm1321, %v1391, 0
        %1396 = vmatprep.subr.bf16.mxu0 0
        %1397 = vmatpush1.bf16.msra.mxu0 0
        %1398 = vmatprep.subr.bf16.mxu0 0
        %1399 = vmatpush1.bf16.msra.mxu0 0
        %1400 = vmatprep.subr.bf16.mxu0 0
        %1401 = vmatpush1.bf16.msra.mxu0 0
        %1402 = vmatprep.subr.bf16.mxu0 0
        %1403 = vmatpush1.bf16.msra.mxu0 0
        %1404 = vmatprep.subr.bf16.mxu0 0
        %1405 = vmatpush1.bf16.msra.mxu0 0
        %1406 = vmatprep.subr.bf16.mxu0 0
        %1407 = vmatpush1.bf16.msra.mxu0 0
        %1408 = vmatprep.subr.bf16.mxu0 0
        %1409 = vmatpush1.bf16.msra.mxu0 0
        %1410 = vmatprep.subr.bf16.mxu0 0
        %1411 = vmatpush1.bf16.msra.mxu0 %v1392
        %1412 = vmatprep.subr.bf16.mxu0 0
        %1413 = vmatpush2.bf16.msra.mxu0 0
        %1414 = vmatprep.subr.bf16.mxu0 0
        %1415 = vmatpush2.bf16.msra.mxu0 0
        %1416 = vmatprep.subr.bf16.mxu0 0
        %1417 = vmatpush2.bf16.msra.mxu0 0
        %1418 = vmatprep.subr.bf16.mxu0 0
        %1419 = vmatpush2.bf16.msra.mxu0 0
        %1420 = vmatprep.subr.bf16.mxu0 0
        %1421 = vmatpush2.bf16.msra.mxu0 0
        %1422 = vmatprep.subr.bf16.mxu0 0
        %1423 = vmatpush2.bf16.msra.mxu0 0
        %1424 = vmatprep.subr.bf16.mxu0 0
        %1425 = vmatpush2.bf16.msra.mxu0 0
        %1426 = vmatprep.subr.bf16.mxu0 0
        %1427 = vmatpush2.bf16.msra.mxu0 0
        %1428 = vmatprep.mubr.bf16.mxu0 0
        %1429 = vmatmul.mubr.bf16.gmra.mxu0 %v1394
        %v1430 = vpop.f32.mrf.mxu0
        %v1431 = vadd.f32 0.0, %v1430
        %v1432 = vpop.f32.mrf.mxu0
        %v1433 = vpop.f32.mrf.mxu0
        %v1434 = vadd.f32 0.0, %v1433
        %v1435 = vpop.f32.mrf.mxu0
        %1436 = vdwg.mxu0
        %v1437 = vpack.c.bf16 %v1434, %v1431
        %v1438 = vld [vmem:[%s957] sm:$0xf]
        %v1439 = vld [vmem:[%s957 + $0x4] sm:$0xf]
        %s1440 = scalar_lea.vmem %s930, 32
        %v1441 = vld [vmem:[%s1440] sm:$0xf]
        %v1442 = vld [vmem:[%s1440 + $0x4] sm:$0xf]
        %v1443 = vld [vmem:[%s1440 + $0x8] sm:$0xf]
        %v1444 = vld [vmem:[%s1440 + $0xc] sm:$0xf]
        %v1445 = vld [vmem:[%s1440 + $0x10] sm:$0xf]
        %v1446 = vld [vmem:[%s1440 + $0x14] sm:$0xf]
        %v1447 = vld [vmem:[%s1440 + $0x18] sm:$0xf]
        %v1448 = vld [vmem:[%s1440 + $0x1c] sm:$0xf]
        %s1449 = scalar_lea.vmem %s934, 1
        %v1450 = vld [vmem:[%s1449] sm:$0x1]
        %v1452 = vlaneseq
        %v1453 = vshrl.u32 %v1452, 7
        %v1454 = vsub.s32 0, %v1453
        %v1455 = vrot.slane %v1450, %v1454
        %v1465 = vunpack.c.l.b16 %v1441
        %v1466 = vunpack.c.l.b16 %v1442
        %v1467 = vunpack.c.l.b16 %v1443
        %v1468 = vunpack.c.l.b16 %v1444
        %v1469 = vunpack.c.l.b16 %v1445
        %v1470 = vunpack.c.l.b16 %v1446
        %v1471 = vunpack.c.l.b16 %v1447
        %v1472 = vunpack.c.l.b16 %v1448
        %v1473 = vpack.c.b16 %v1466, %v1465
        %v1474 = vpack.c.b16 %v1468, %v1467
        %v1475 = vpack.c.b16 %v1470, %v1469
        %v1476 = vpack.c.b16 %v1472, %v1471
        %1481 = vmatprep.subr.bf16.mxu0 0
        %1482 = vmatpush1.bf16.msra.mxu0 0
        %1483 = vmatprep.subr.bf16.mxu0 0
        %1484 = vmatpush1.bf16.msra.mxu0 0
        %1485 = vmatprep.subr.bf16.mxu0 0
        %1486 = vmatpush1.bf16.msra.mxu0 0
        %1487 = vmatprep.subr.bf16.mxu0 0
        %1488 = vmatpush1.bf16.msra.mxu0 0
        %1489 = vmatprep.subr.bf16.mxu0 0
        %1490 = vmatpush1.bf16.msra.mxu0 %v1476
        %1491 = vmatprep.subr.bf16.mxu0 0
        %1492 = vmatpush1.bf16.msra.mxu0 %v1475
        %1493 = vmatprep.subr.bf16.mxu0 0
        %1494 = vmatpush1.bf16.msra.mxu0 %v1474
        %1495 = vmatprep.subr.bf16.mxu0 0
        %1496 = vmatpush1.bf16.msra.mxu0 %v1473
        %1497 = vmatprep.subr.bf16.mxu0 0
        %1498 = vmatpush2.bf16.msra.mxu0 0
        %1499 = vmatprep.subr.bf16.mxu0 0
        %1500 = vmatpush2.bf16.msra.mxu0 0
        %1501 = vmatprep.subr.bf16.mxu0 0
        %1502 = vmatpush2.bf16.msra.mxu0 0
        %1503 = vmatprep.subr.bf16.mxu0 0
        %1504 = vmatpush2.bf16.msra.mxu0 0
        %1505 = vmatprep.subr.bf16.mxu0 0
        %1506 = vmatpush2.bf16.msra.mxu0 0
        %1507 = vmatprep.subr.bf16.mxu0 0
        %1508 = vmatpush2.bf16.msra.mxu0 0
        %1509 = vmatprep.subr.bf16.mxu0 0
        %1510 = vmatpush2.bf16.msra.mxu0 0
        %1511 = vmatprep.subr.bf16.mxu0 0
        %1512 = vmatpush2.bf16.msra.mxu0 0
        %1513 = vmatprep.mubr.bf16.mxu0 0
        %1514 = vmatmul.mubr.bf16.gmra.mxu0 %v1114
        %v1515 = vpop.f32.mrf.mxu0
        %v1516 = vadd.f32 %v1455, %v1515
        %v1517 = vpop.f32.mrf.mxu0
        %v1518 = vpop.f32.mrf.mxu0
        %v1519 = vadd.f32 %v1455, %v1518
        %v1520 = vpop.f32.mrf.mxu0
        %1521 = vdwg.mxu0
        %s1522 = scalar_lea.vmem %s939, 32
        %v1523 = vld [vmem:[%s1522] sm:$0xf]
        %v1524 = vld [vmem:[%s1522 + $0x4] sm:$0xf]
        %v1525 = vld [vmem:[%s1522 + $0x8] sm:$0xf]
        %v1526 = vld [vmem:[%s1522 + $0xc] sm:$0xf]
        %v1527 = vld [vmem:[%s1522 + $0x10] sm:$0xf]
        %v1528 = vld [vmem:[%s1522 + $0x14] sm:$0xf]
        %v1529 = vld [vmem:[%s1522 + $0x18] sm:$0xf]
        %v1530 = vld [vmem:[%s1522 + $0x1c] sm:$0xf]
        %s1531 = scalar_lea.vmem %s943, 1
        %v1532 = vld [vmem:[%s1531] sm:$0x1]
        %v1534 = vlaneseq
        %v1535 = vshrl.u32 %v1534, 7
        %v1536 = vsub.s32 0, %v1535
        %v1537 = vrot.slane %v1532, %v1536
        %v1547 = vunpack.c.l.b16 %v1523
        %v1548 = vunpack.c.l.b16 %v1524
        %v1549 = vunpack.c.l.b16 %v1525
        %v1550 = vunpack.c.l.b16 %v1526
        %v1551 = vunpack.c.l.b16 %v1527
        %v1552 = vunpack.c.l.b16 %v1528
        %v1553 = vunpack.c.l.b16 %v1529
        %v1554 = vunpack.c.l.b16 %v1530
        %v1555 = vpack.c.b16 %v1548, %v1547
        %v1556 = vpack.c.b16 %v1550, %v1549
        %v1557 = vpack.c.b16 %v1552, %v1551
        %v1558 = vpack.c.b16 %v1554, %v1553
        %1563 = vmatprep.subr.bf16.mxu0 0
        %1564 = vmatpush1.bf16.msra.mxu0 0
        %1565 = vmatprep.subr.bf16.mxu0 0
        %1566 = vmatpush1.bf16.msra.mxu0 0
        %1567 = vmatprep.subr.bf16.mxu0 0
        %1568 = vmatpush1.bf16.msra.mxu0 0
        %1569 = vmatprep.subr.bf16.mxu0 0
        %1570 = vmatpush1.bf16.msra.mxu0 0
        %1571 = vmatprep.subr.bf16.mxu0 0
        %1572 = vmatpush1.bf16.msra.mxu0 %v1558
        %1573 = vmatprep.subr.bf16.mxu0 0
        %1574 = vmatpush1.bf16.msra.mxu0 %v1557
        %1575 = vmatprep.subr.bf16.mxu0 0
        %1576 = vmatpush1.bf16.msra.mxu0 %v1556
        %1577 = vmatprep.subr.bf16.mxu0 0
        %1578 = vmatpush1.bf16.msra.mxu0 %v1555
        %1579 = vmatprep.subr.bf16.mxu0 0
        %1580 = vmatpush2.bf16.msra.mxu0 0
        %1581 = vmatprep.subr.bf16.mxu0 0
        %1582 = vmatpush2.bf16.msra.mxu0 0
        %1583 = vmatprep.subr.bf16.mxu0 0
        %1584 = vmatpush2.bf16.msra.mxu0 0
        %1585 = vmatprep.subr.bf16.mxu0 0
        %1586 = vmatpush2.bf16.msra.mxu0 0
        %1587 = vmatprep.subr.bf16.mxu0 0
        %1588 = vmatpush2.bf16.msra.mxu0 0
        %1589 = vmatprep.subr.bf16.mxu0 0
        %1590 = vmatpush2.bf16.msra.mxu0 0
        %1591 = vmatprep.subr.bf16.mxu0 0
        %1592 = vmatpush2.bf16.msra.mxu0 0
        %1593 = vmatprep.subr.bf16.mxu0 0
        %1594 = vmatpush2.bf16.msra.mxu0 0
        %1595 = vmatprep.mubr.bf16.mxu0 0
        %1596 = vmatmul.mubr.bf16.gmra.mxu0 %v1114
        %v1597 = vpop.f32.mrf.mxu0
        %v1598 = vadd.f32 %v1537, %v1597
        %v1599 = vpop.f32.mrf.mxu0
        %v1600 = vpop.f32.mrf.mxu0
        %v1601 = vadd.f32 %v1537, %v1600
        %v1602 = vpop.f32.mrf.mxu0
        %1603 = vdwg.mxu0
        %s1604 = scalar_lea.vmem %s948, 32
        %v1605 = vld [vmem:[%s1604] sm:$0xf]
        %v1606 = vld [vmem:[%s1604 + $0x4] sm:$0xf]
        %v1607 = vld [vmem:[%s1604 + $0x8] sm:$0xf]
        %v1608 = vld [vmem:[%s1604 + $0xc] sm:$0xf]
        %v1609 = vld [vmem:[%s1604 + $0x10] sm:$0xf]
        %v1610 = vld [vmem:[%s1604 + $0x14] sm:$0xf]
        %v1611 = vld [vmem:[%s1604 + $0x18] sm:$0xf]
        %v1612 = vld [vmem:[%s1604 + $0x1c] sm:$0xf]
        %s1613 = scalar_lea.vmem %s952, 1
        %v1614 = vld [vmem:[%s1613] sm:$0x1]
        %v1616 = vlaneseq
        %v1617 = vshrl.u32 %v1616, 7
        %v1618 = vsub.s32 0, %v1617
        %v1619 = vrot.slane %v1614, %v1618
        %v1629 = vunpack.c.l.b16 %v1605
        %v1630 = vunpack.c.l.b16 %v1606
        %v1631 = vunpack.c.l.b16 %v1607
        %v1632 = vunpack.c.l.b16 %v1608
        %v1633 = vunpack.c.l.b16 %v1609
        %v1634 = vunpack.c.l.b16 %v1610
        %v1635 = vunpack.c.l.b16 %v1611
        %v1636 = vunpack.c.l.b16 %v1612
        %v1637 = vpack.c.b16 %v1630, %v1629
        %v1638 = vpack.c.b16 %v1632, %v1631
        %v1639 = vpack.c.b16 %v1634, %v1633
        %v1640 = vpack.c.b16 %v1636, %v1635
        %1645 = vmatprep.subr.bf16.mxu0 0
        %1646 = vmatpush1.bf16.msra.mxu0 0
        %1647 = vmatprep.subr.bf16.mxu0 0
        %1648 = vmatpush1.bf16.msra.mxu0 0
        %1649 = vmatprep.subr.bf16.mxu0 0
        %1650 = vmatpush1.bf16.msra.mxu0 0
        %1651 = vmatprep.subr.bf16.mxu0 0
        %1652 = vmatpush1.bf16.msra.mxu0 0
        %1653 = vmatprep.subr.bf16.mxu0 0
        %1654 = vmatpush1.bf16.msra.mxu0 %v1640
        %1655 = vmatprep.subr.bf16.mxu0 0
        %1656 = vmatpush1.bf16.msra.mxu0 %v1639
        %1657 = vmatprep.subr.bf16.mxu0 0
        %1658 = vmatpush1.bf16.msra.mxu0 %v1638
        %1659 = vmatprep.subr.bf16.mxu0 0
        %1660 = vmatpush1.bf16.msra.mxu0 %v1637
        %1661 = vmatprep.subr.bf16.mxu0 0
        %1662 = vmatpush2.bf16.msra.mxu0 0
        %1663 = vmatprep.subr.bf16.mxu0 0
        %1664 = vmatpush2.bf16.msra.mxu0 0
        %1665 = vmatprep.subr.bf16.mxu0 0
        %1666 = vmatpush2.bf16.msra.mxu0 0
        %1667 = vmatprep.subr.bf16.mxu0 0
        %1668 = vmatpush2.bf16.msra.mxu0 0
        %1669 = vmatprep.subr.bf16.mxu0 0
        %1670 = vmatpush2.bf16.msra.mxu0 0
        %1671 = vmatprep.subr.bf16.mxu0 0
        %1672 = vmatpush2.bf16.msra.mxu0 0
        %1673 = vmatprep.subr.bf16.mxu0 0
        %1674 = vmatpush2.bf16.msra.mxu0 0
        %1675 = vmatprep.subr.bf16.mxu0 0
        %1676 = vmatpush2.bf16.msra.mxu0 0
        %1677 = vmatprep.mubr.bf16.mxu0 0
        %1678 = vmatmul.mubr.bf16.gmra.mxu0 %v1114
        %v1679 = vpop.f32.mrf.mxu0
        %v1680 = vadd.f32 %v1619, %v1679
        %v1681 = vpop.f32.mrf.mxu0
        %v1682 = vpop.f32.mrf.mxu0
        %v1683 = vadd.f32 %v1619, %v1682
        %v1684 = vpop.f32.mrf.mxu0
        %1685 = vdwg.mxu0
        %v1686 = vmul.f32 %v1516, 0.25
        %v1687 = vmul.f32 %v1519, 0.25
        %v1688 = vpack.c.bf16 %v1687, %v1686
        %v1689 = vpack.c.bf16 %v1601, %v1598
        %v1691 = vsel %vm1321, %v1688, 0
        %v1694 = vsel %vm1321, %v1689, 0
        %1696 = vmatprep.subr.bf16.mxu0 0
        %1697 = vmatpush1.bf16.xpose.msra.mxu0 0
        %1698 = vmatprep.subr.bf16.mxu0 0
        %1699 = vmatpush1.bf16.xpose.msra.mxu0 0
        %1700 = vmatprep.subr.bf16.mxu0 0
        %1701 = vmatpush1.bf16.xpose.msra.mxu0 0
        %1702 = vmatprep.subr.bf16.mxu0 0
        %1703 = vmatpush1.bf16.xpose.msra.mxu0 0
        %1704 = vmatprep.subr.bf16.mxu0 0
        %1705 = vmatpush1.bf16.xpose.msra.mxu0 0
        %1706 = vmatprep.subr.bf16.mxu0 0
        %1707 = vmatpush1.bf16.xpose.msra.mxu0 0
        %1708 = vmatprep.subr.bf16.mxu0 0
        %1709 = vmatpush1.bf16.xpose.msra.mxu0 0
        %1710 = vmatprep.subr.bf16.mxu0 0
        %1711 = vmatpush1.bf16.xpose.msra.mxu0 %v1694
        %1712 = vmatprep.subr.bf16.mxu0 0
        %1713 = vmatpush2.bf16.xpose.msra.mxu0 0
        %1714 = vmatprep.subr.bf16.mxu0 0
        %1715 = vmatpush2.bf16.xpose.msra.mxu0 0
        %1716 = vmatprep.subr.bf16.mxu0 0
        %1717 = vmatpush2.bf16.xpose.msra.mxu0 0
        %1718 = vmatprep.subr.bf16.mxu0 0
        %1719 = vmatpush2.bf16.xpose.msra.mxu0 0
        %1720 = vmatprep.subr.bf16.mxu0 0
        %1721 = vmatpush2.bf16.xpose.msra.mxu0 0
        %1722 = vmatprep.subr.bf16.mxu0 0
        %1723 = vmatpush2.bf16.xpose.msra.mxu0 0
        %1724 = vmatprep.subr.bf16.mxu0 0
        %1725 = vmatpush2.bf16.xpose.msra.mxu0 0
        %1726 = vmatprep.subr.bf16.mxu0 0
        %1727 = vmatpush2.bf16.xpose.msra.mxu0 0
        %1728 = vmatprep.mubr.bf16.mxu0 0
        %1729 = vmatmul.mubr.bf16.gmra.mxu0 %v1691
        %v1730 = vpop.f32.mrf.mxu0
        %v1731 = vadd.f32 %v1071, %v1730
        %v1732 = vpop.f32.mrf.mxu0
        %v1733 = vpop.f32.mrf.mxu0
        %v1734 = vadd.f32 %v1072, %v1733
        %v1735 = vpop.f32.mrf.mxu0
        %1736 = vdwg.mxu0
        %v1737 = vsel %vm1321, %v1731, -inf
        %1738 = vmax.xlane.f32.xlu0 %v1737
        %v1739 = vpop.xlane.xlu0 %1738
        %v1740 = vsel %vm1321, %v1734, -inf
        %1741 = vmax.xlane.f32.xlu0 %v1740
        %v1742 = vpop.xlane.xlu0 %1741
        %v1743 = vsub.f32 %v1731, %v1739
        %v1744 = vsub.f32 %v1734, %v1742
        %v1745 = vmul.f32 %v1743, 1.442695
        %v1746 = vpow.pop %v1745
        %v1747 = vmul.f32 %v1744, 1.442695
        %v1748 = vpow.pop %v1747
        %v1749 = vsel %vm1321, %v1746, 0.0
        %1750 = vadd.xlane.f32.xlu0 %v1749
        %v1751 = vpop.xlane.xlu0 %1750
        %v1752 = vsel %vm1321, %v1748, 0.0
        %1753 = vadd.xlane.f32.xlu0 %v1752
        %v1754 = vpop.xlane.xlu0 %1753
        %v1755 = vrcp.pop %v1751
        %v1756 = vrcp.pop %v1754
        %v1757 = vmul.f32 %v1746, %v1755
        %v1758 = vmul.f32 %v1748, %v1756
        %v1759 = vpack.c.bf16 %v1758, %v1757
        %v1760 = vpack.c.bf16 %v1683, %v1680
        %v1762 = vsel %vm1321, %v1759, 0
        %1764 = vmatprep.subr.bf16.mxu0 0
        %1765 = vmatpush1.bf16.msra.mxu0 0
        %1766 = vmatprep.subr.bf16.mxu0 0
        %1767 = vmatpush1.bf16.msra.mxu0 0
        %1768 = vmatprep.subr.bf16.mxu0 0
        %1769 = vmatpush1.bf16.msra.mxu0 0
        %1770 = vmatprep.subr.bf16.mxu0 0
        %1771 = vmatpush1.bf16.msra.mxu0 0
        %1772 = vmatprep.subr.bf16.mxu0 0
        %1773 = vmatpush1.bf16.msra.mxu0 0
        %1774 = vmatprep.subr.bf16.mxu0 0
        %1775 = vmatpush1.bf16.msra.mxu0 0
        %1776 = vmatprep.subr.bf16.mxu0 0
        %1777 = vmatpush1.bf16.msra.mxu0 0
        %1778 = vmatprep.subr.bf16.mxu0 0
        %1779 = vmatpush1.bf16.msra.mxu0 %v1760
        %1780 = vmatprep.subr.bf16.mxu0 0
        %1781 = vmatpush2.bf16.msra.mxu0 0
        %1782 = vmatprep.subr.bf16.mxu0 0
        %1783 = vmatpush2.bf16.msra.mxu0 0
        %1784 = vmatprep.subr.bf16.mxu0 0
        %1785 = vmatpush2.bf16.msra.mxu0 0
        %1786 = vmatprep.subr.bf16.mxu0 0
        %1787 = vmatpush2.bf16.msra.mxu0 0
        %1788 = vmatprep.subr.bf16.mxu0 0
        %1789 = vmatpush2.bf16.msra.mxu0 0
        %1790 = vmatprep.subr.bf16.mxu0 0
        %1791 = vmatpush2.bf16.msra.mxu0 0
        %1792 = vmatprep.subr.bf16.mxu0 0
        %1793 = vmatpush2.bf16.msra.mxu0 0
        %1794 = vmatprep.subr.bf16.mxu0 0
        %1795 = vmatpush2.bf16.msra.mxu0 0
        %1796 = vmatprep.mubr.bf16.mxu0 0
        %1797 = vmatmul.mubr.bf16.gmra.mxu0 %v1762
        %v1798 = vpop.f32.mrf.mxu0
        %v1799 = vadd.f32 0.0, %v1798
        %v1800 = vpop.f32.mrf.mxu0
        %v1801 = vpop.f32.mrf.mxu0
        %v1802 = vadd.f32 0.0, %v1801
        %v1803 = vpop.f32.mrf.mxu0
        %1804 = vdwg.mxu0
        %v1805 = vpack.c.bf16 %v1802, %v1799
        %s1806 = scalar_lea.vmem %s957, 8
        %v1807 = vld [vmem:[%s1806] sm:$0xf]
        %v1808 = vld [vmem:[%s1806 + $0x4] sm:$0xf]
        %v1811 = vunpack.c.l.b16 %v1807
        %v1812 = vunpack.c.l.b16 %v1808
        %v1813 = vpack.c.b16 %v1812, %v1811
        %v1816 = vsel %vm1321, %v1805, 0
        %1818 = vmatprep.subr.bf16.mxu0 0
        %1819 = vmatpush1.bf16.msra.mxu0 0
        %1820 = vmatprep.subr.bf16.mxu0 0
        %1821 = vmatpush1.bf16.msra.mxu0 0
        %1822 = vmatprep.subr.bf16.mxu0 0
        %1823 = vmatpush1.bf16.msra.mxu0 0
        %1824 = vmatprep.subr.bf16.mxu0 0
        %1825 = vmatpush1.bf16.msra.mxu0 0
        %1826 = vmatprep.subr.bf16.mxu0 0
        %1827 = vmatpush1.bf16.msra.mxu0 0
        %1828 = vmatprep.subr.bf16.mxu0 0
        %1829 = vmatpush1.bf16.msra.mxu0 0
        %1830 = vmatprep.subr.bf16.mxu0 0
        %1831 = vmatpush1.bf16.msra.mxu0 0
        %1832 = vmatprep.subr.bf16.mxu0 0
        %1833 = vmatpush1.bf16.msra.mxu0 %v1813
        %1834 = vmatprep.subr.bf16.mxu0 0
        %1835 = vmatpush2.bf16.msra.mxu0 0
        %1836 = vmatprep.subr.bf16.mxu0 0
        %1837 = vmatpush2.bf16.msra.mxu0 0
        %1838 = vmatprep.subr.bf16.mxu0 0
        %1839 = vmatpush2.bf16.msra.mxu0 0
        %1840 = vmatprep.subr.bf16.mxu0 0
        %1841 = vmatpush2.bf16.msra.mxu0 0
        %1842 = vmatprep.subr.bf16.mxu0 0
        %1843 = vmatpush2.bf16.msra.mxu0 0
        %1844 = vmatprep.subr.bf16.mxu0 0
        %1845 = vmatpush2.bf16.msra.mxu0 0
        %1846 = vmatprep.subr.bf16.mxu0 0
        %1847 = vmatpush2.bf16.msra.mxu0 0
        %1848 = vmatprep.subr.bf16.mxu0 0
        %1849 = vmatpush2.bf16.msra.mxu0 0
        %1850 = vmatprep.mubr.bf16.mxu0 0
        %1851 = vmatmul.mubr.bf16.gmra.mxu0 %v1816
        %v1852 = vpop.f32.mrf.mxu0
        %v1853 = vadd.f32 0.0, %v1852
        %v1854 = vpop.f32.mrf.mxu0
        %v1855 = vpop.f32.mrf.mxu0
        %v1856 = vadd.f32 0.0, %v1855
        %v1857 = vpop.f32.mrf.mxu0
        %1858 = vdwg.mxu0
        %v1861 = vunpack.c.l.b16 %v1438
        %v1862 = vunpack.c.l.b16 %v1439
        %v1863 = vpack.c.b16 %v1862, %v1861
        %v1866 = vsel %vm1321, %v1437, 0
        %1868 = vmatprep.subr.bf16.mxu0 0
        %1869 = vmatpush1.bf16.msra.mxu0 0
        %1870 = vmatprep.subr.bf16.mxu0 0
        %1871 = vmatpush1.bf16.msra.mxu0 0
        %1872 = vmatprep.subr.bf16.mxu0 0
        %1873 = vmatpush1.bf16.msra.mxu0 0
        %1874 = vmatprep.subr.bf16.mxu0 0
        %1875 = vmatpush1.bf16.msra.mxu0 0
        %1876 = vmatprep.subr.bf16.mxu0 0
        %1877 = vmatpush1.bf16.msra.mxu0 0
        %1878 = vmatprep.subr.bf16.mxu0 0
        %1879 = vmatpush1.bf16.msra.mxu0 0
        %1880 = vmatprep.subr.bf16.mxu0 0
        %1881 = vmatpush1.bf16.msra.mxu0 0
        %1882 = vmatprep.subr.bf16.mxu0 0
        %1883 = vmatpush1.bf16.msra.mxu0 %v1863
        %1884 = vmatprep.subr.bf16.mxu0 0
        %1885 = vmatpush2.bf16.msra.mxu0 0
        %1886 = vmatprep.subr.bf16.mxu0 0
        %1887 = vmatpush2.bf16.msra.mxu0 0
        %1888 = vmatprep.subr.bf16.mxu0 0
        %1889 = vmatpush2.bf16.msra.mxu0 0
        %1890 = vmatprep.subr.bf16.mxu0 0
        %1891 = vmatpush2.bf16.msra.mxu0 0
        %1892 = vmatprep.subr.bf16.mxu0 0
        %1893 = vmatpush2.bf16.msra.mxu0 0
        %1894 = vmatprep.subr.bf16.mxu0 0
        %1895 = vmatpush2.bf16.msra.mxu0 0
        %1896 = vmatprep.subr.bf16.mxu0 0
        %1897 = vmatpush2.bf16.msra.mxu0 0
        %1898 = vmatprep.subr.bf16.mxu0 0
        %1899 = vmatpush2.bf16.msra.mxu0 0
        %1900 = vmatprep.mubr.bf16.mxu0 0
        %1901 = vmatmul.mubr.bf16.gmra.mxu0 %v1866
        %v1902 = vpop.f32.mrf.mxu0
        %v1903 = vadd.f32 %v1853, %v1902
        %v1904 = vpop.f32.mrf.mxu0
        %v1905 = vpop.f32.mrf.mxu0
        %v1906 = vadd.f32 %v1856, %v1905
        %v1907 = vpop.f32.mrf.mxu0
        %1908 = vdwg.mxu0
        %s1909 = scalar_lea.vmem %s930, 64
        %v1910 = vld [vmem:[%s1909] sm:$0xf]
        %v1911 = vld [vmem:[%s1909 + $0x4] sm:$0xf]
        %v1912 = vld [vmem:[%s1909 + $0x8] sm:$0xf]
        %v1913 = vld [vmem:[%s1909 + $0xc] sm:$0xf]
        %v1914 = vld [vmem:[%s1909 + $0x10] sm:$0xf]
        %v1915 = vld [vmem:[%s1909 + $0x14] sm:$0xf]
        %v1916 = vld [vmem:[%s1909 + $0x18] sm:$0xf]
        %v1917 = vld [vmem:[%s1909 + $0x1c] sm:$0xf]
        %s1918 = scalar_lea.vmem %s934, 2
        %v1919 = vld [vmem:[%s1918] sm:$0x1]
        %v1921 = vlaneseq
        %v1922 = vshrl.u32 %v1921, 7
        %v1923 = vsub.s32 0, %v1922
        %v1924 = vrot.slane %v1919, %v1923
        %v1934 = vunpack.c.l.b16 %v1910
        %v1935 = vunpack.c.l.b16 %v1911
        %v1936 = vunpack.c.l.b16 %v1912
        %v1937 = vunpack.c.l.b16 %v1913
        %v1938 = vunpack.c.l.b16 %v1914
        %v1939 = vunpack.c.l.b16 %v1915
        %v1940 = vunpack.c.l.b16 %v1916
        %v1941 = vunpack.c.l.b16 %v1917
        %v1942 = vpack.c.b16 %v1935, %v1934
        %v1943 = vpack.c.b16 %v1937, %v1936
        %v1944 = vpack.c.b16 %v1939, %v1938
        %v1945 = vpack.c.b16 %v1941, %v1940
        %1950 = vmatprep.subr.bf16.mxu0 0
        %1951 = vmatpush1.bf16.msra.mxu0 0
        %1952 = vmatprep.subr.bf16.mxu0 0
        %1953 = vmatpush1.bf16.msra.mxu0 0
        %1954 = vmatprep.subr.bf16.mxu0 0
        %1955 = vmatpush1.bf16.msra.mxu0 0
        %1956 = vmatprep.subr.bf16.mxu0 0
        %1957 = vmatpush1.bf16.msra.mxu0 0
        %1958 = vmatprep.subr.bf16.mxu0 0
        %1959 = vmatpush1.bf16.msra.mxu0 %v1945
        %1960 = vmatprep.subr.bf16.mxu0 0
        %1961 = vmatpush1.bf16.msra.mxu0 %v1944
        %1962 = vmatprep.subr.bf16.mxu0 0
        %1963 = vmatpush1.bf16.msra.mxu0 %v1943
        %1964 = vmatprep.subr.bf16.mxu0 0
        %1965 = vmatpush1.bf16.msra.mxu0 %v1942
        %1966 = vmatprep.subr.bf16.mxu0 0
        %1967 = vmatpush2.bf16.msra.mxu0 0
        %1968 = vmatprep.subr.bf16.mxu0 0
        %1969 = vmatpush2.bf16.msra.mxu0 0
        %1970 = vmatprep.subr.bf16.mxu0 0
        %1971 = vmatpush2.bf16.msra.mxu0 0
        %1972 = vmatprep.subr.bf16.mxu0 0
        %1973 = vmatpush2.bf16.msra.mxu0 0
        %1974 = vmatprep.subr.bf16.mxu0 0
        %1975 = vmatpush2.bf16.msra.mxu0 0
        %1976 = vmatprep.subr.bf16.mxu0 0
        %1977 = vmatpush2.bf16.msra.mxu0 0
        %1978 = vmatprep.subr.bf16.mxu0 0
        %1979 = vmatpush2.bf16.msra.mxu0 0
        %1980 = vmatprep.subr.bf16.mxu0 0
        %1981 = vmatpush2.bf16.msra.mxu0 0
        %1982 = vmatprep.mubr.bf16.mxu0 0
        %1983 = vmatmul.mubr.bf16.gmra.mxu0 %v1114
        %v1984 = vpop.f32.mrf.mxu0
        %v1985 = vadd.f32 %v1924, %v1984
        %v1986 = vpop.f32.mrf.mxu0
        %v1987 = vpop.f32.mrf.mxu0
        %v1988 = vadd.f32 %v1924, %v1987
        %v1989 = vpop.f32.mrf.mxu0
        %1990 = vdwg.mxu0
        %s1991 = scalar_lea.vmem %s939, 64
        %v1992 = vld [vmem:[%s1991] sm:$0xf]
        %v1993 = vld [vmem:[%s1991 + $0x4] sm:$0xf]
        %v1994 = vld [vmem:[%s1991 + $0x8] sm:$0xf]
        %v1995 = vld [vmem:[%s1991 + $0xc] sm:$0xf]
        %v1996 = vld [vmem:[%s1991 + $0x10] sm:$0xf]
        %v1997 = vld [vmem:[%s1991 + $0x14] sm:$0xf]
        %v1998 = vld [vmem:[%s1991 + $0x18] sm:$0xf]
        %v1999 = vld [vmem:[%s1991 + $0x1c] sm:$0xf]
        %s2000 = scalar_lea.vmem %s943, 2
        %v2001 = vld [vmem:[%s2000] sm:$0x1]
        %v2003 = vlaneseq
        %v2004 = vshrl.u32 %v2003, 7
        %v2005 = vsub.s32 0, %v2004
        %v2006 = vrot.slane %v2001, %v2005
        %v2016 = vunpack.c.l.b16 %v1992
        %v2017 = vunpack.c.l.b16 %v1993
        %v2018 = vunpack.c.l.b16 %v1994
        %v2019 = vunpack.c.l.b16 %v1995
        %v2020 = vunpack.c.l.b16 %v1996
        %v2021 = vunpack.c.l.b16 %v1997
        %v2022 = vunpack.c.l.b16 %v1998
        %v2023 = vunpack.c.l.b16 %v1999
        %v2024 = vpack.c.b16 %v2017, %v2016
        %v2025 = vpack.c.b16 %v2019, %v2018
        %v2026 = vpack.c.b16 %v2021, %v2020
        %v2027 = vpack.c.b16 %v2023, %v2022
        %2032 = vmatprep.subr.bf16.mxu0 0
        %2033 = vmatpush1.bf16.msra.mxu0 0
        %2034 = vmatprep.subr.bf16.mxu0 0
        %2035 = vmatpush1.bf16.msra.mxu0 0
        %2036 = vmatprep.subr.bf16.mxu0 0
        %2037 = vmatpush1.bf16.msra.mxu0 0
        %2038 = vmatprep.subr.bf16.mxu0 0
        %2039 = vmatpush1.bf16.msra.mxu0 0
        %2040 = vmatprep.subr.bf16.mxu0 0
        %2041 = vmatpush1.bf16.msra.mxu0 %v2027
        %2042 = vmatprep.subr.bf16.mxu0 0
        %2043 = vmatpush1.bf16.msra.mxu0 %v2026
        %2044 = vmatprep.subr.bf16.mxu0 0
        %2045 = vmatpush1.bf16.msra.mxu0 %v2025
        %2046 = vmatprep.subr.bf16.mxu0 0
        %2047 = vmatpush1.bf16.msra.mxu0 %v2024
        %2048 = vmatprep.subr.bf16.mxu0 0
        %2049 = vmatpush2.bf16.msra.mxu0 0
        %2050 = vmatprep.subr.bf16.mxu0 0
        %2051 = vmatpush2.bf16.msra.mxu0 0
        %2052 = vmatprep.subr.bf16.mxu0 0
        %2053 = vmatpush2.bf16.msra.mxu0 0
        %2054 = vmatprep.subr.bf16.mxu0 0
        %2055 = vmatpush2.bf16.msra.mxu0 0
        %2056 = vmatprep.subr.bf16.mxu0 0
        %2057 = vmatpush2.bf16.msra.mxu0 0
        %2058 = vmatprep.subr.bf16.mxu0 0
        %2059 = vmatpush2.bf16.msra.mxu0 0
        %2060 = vmatprep.subr.bf16.mxu0 0
        %2061 = vmatpush2.bf16.msra.mxu0 0
        %2062 = vmatprep.subr.bf16.mxu0 0
        %2063 = vmatpush2.bf16.msra.mxu0 0
        %2064 = vmatprep.mubr.bf16.mxu0 0
        %2065 = vmatmul.mubr.bf16.gmra.mxu0 %v1114
        %v2066 = vpop.f32.mrf.mxu0
        %v2067 = vadd.f32 %v2006, %v2066
        %v2068 = vpop.f32.mrf.mxu0
        %v2069 = vpop.f32.mrf.mxu0
        %v2070 = vadd.f32 %v2006, %v2069
        %v2071 = vpop.f32.mrf.mxu0
        %2072 = vdwg.mxu0
        %s2073 = scalar_lea.vmem %s948, 64
        %v2074 = vld [vmem:[%s2073] sm:$0xf]
        %v2075 = vld [vmem:[%s2073 + $0x4] sm:$0xf]
        %v2076 = vld [vmem:[%s2073 + $0x8] sm:$0xf]
        %v2077 = vld [vmem:[%s2073 + $0xc] sm:$0xf]
        %v2078 = vld [vmem:[%s2073 + $0x10] sm:$0xf]
        %v2079 = vld [vmem:[%s2073 + $0x14] sm:$0xf]
        %v2080 = vld [vmem:[%s2073 + $0x18] sm:$0xf]
        %v2081 = vld [vmem:[%s2073 + $0x1c] sm:$0xf]
        %s2082 = scalar_lea.vmem %s952, 2
        %v2083 = vld [vmem:[%s2082] sm:$0x1]
        %v2085 = vlaneseq
        %v2086 = vshrl.u32 %v2085, 7
        %v2087 = vsub.s32 0, %v2086
        %v2088 = vrot.slane %v2083, %v2087
        %v2098 = vunpack.c.l.b16 %v2074
        %v2099 = vunpack.c.l.b16 %v2075
        %v2100 = vunpack.c.l.b16 %v2076
        %v2101 = vunpack.c.l.b16 %v2077
        %v2102 = vunpack.c.l.b16 %v2078
        %v2103 = vunpack.c.l.b16 %v2079
        %v2104 = vunpack.c.l.b16 %v2080
        %v2105 = vunpack.c.l.b16 %v2081
        %v2106 = vpack.c.b16 %v2099, %v2098
        %v2107 = vpack.c.b16 %v2101, %v2100
        %v2108 = vpack.c.b16 %v2103, %v2102
        %v2109 = vpack.c.b16 %v2105, %v2104
        %2114 = vmatprep.subr.bf16.mxu0 0
        %2115 = vmatpush1.bf16.msra.mxu0 0
        %2116 = vmatprep.subr.bf16.mxu0 0
        %2117 = vmatpush1.bf16.msra.mxu0 0
        %2118 = vmatprep.subr.bf16.mxu0 0
        %2119 = vmatpush1.bf16.msra.mxu0 0
        %2120 = vmatprep.subr.bf16.mxu0 0
        %2121 = vmatpush1.bf16.msra.mxu0 0
        %2122 = vmatprep.subr.bf16.mxu0 0
        %2123 = vmatpush1.bf16.msra.mxu0 %v2109
        %2124 = vmatprep.subr.bf16.mxu0 0
        %2125 = vmatpush1.bf16.msra.mxu0 %v2108
        %2126 = vmatprep.subr.bf16.mxu0 0
        %2127 = vmatpush1.bf16.msra.mxu0 %v2107
        %2128 = vmatprep.subr.bf16.mxu0 0
        %2129 = vmatpush1.bf16.msra.mxu0 %v2106
        %2130 = vmatprep.subr.bf16.mxu0 0
        %2131 = vmatpush2.bf16.msra.mxu0 0
        %2132 = vmatprep.subr.bf16.mxu0 0
        %2133 = vmatpush2.bf16.msra.mxu0 0
        %2134 = vmatprep.subr.bf16.mxu0 0
        %2135 = vmatpush2.bf16.msra.mxu0 0
        %2136 = vmatprep.subr.bf16.mxu0 0
        %2137 = vmatpush2.bf16.msra.mxu0 0
        %2138 = vmatprep.subr.bf16.mxu0 0
        %2139 = vmatpush2.bf16.msra.mxu0 0
        %2140 = vmatprep.subr.bf16.mxu0 0
        %2141 = vmatpush2.bf16.msra.mxu0 0
        %2142 = vmatprep.subr.bf16.mxu0 0
        %2143 = vmatpush2.bf16.msra.mxu0 0
        %2144 = vmatprep.subr.bf16.mxu0 0
        %2145 = vmatpush2.bf16.msra.mxu0 0
        %2146 = vmatprep.mubr.bf16.mxu0 0
        %2147 = vmatmul.mubr.bf16.gmra.mxu0 %v1114
        %v2148 = vpop.f32.mrf.mxu0
        %v2149 = vadd.f32 %v2088, %v2148
        %v2150 = vpop.f32.mrf.mxu0
        %v2151 = vpop.f32.mrf.mxu0
        %v2152 = vadd.f32 %v2088, %v2151
        %v2153 = vpop.f32.mrf.mxu0
        %2154 = vdwg.mxu0
        %v2155 = vmul.f32 %v1985, 0.25
        %v2156 = vmul.f32 %v1988, 0.25
        %v2157 = vpack.c.bf16 %v2156, %v2155
        %v2158 = vpack.c.bf16 %v2070, %v2067
        %v2160 = vsel %vm1321, %v2157, 0
        %v2163 = vsel %vm1321, %v2158, 0
        %2165 = vmatprep.subr.bf16.mxu0 0
        %2166 = vmatpush1.bf16.xpose.msra.mxu0 0
        %2167 = vmatprep.subr.bf16.mxu0 0
        %2168 = vmatpush1.bf16.xpose.msra.mxu0 0
        %2169 = vmatprep.subr.bf16.mxu0 0
        %2170 = vmatpush1.bf16.xpose.msra.mxu0 0
        %2171 = vmatprep.subr.bf16.mxu0 0
        %2172 = vmatpush1.bf16.xpose.msra.mxu0 0
        %2173 = vmatprep.subr.bf16.mxu0 0
        %2174 = vmatpush1.bf16.xpose.msra.mxu0 0
        %2175 = vmatprep.subr.bf16.mxu0 0
        %2176 = vmatpush1.bf16.xpose.msra.mxu0 0
        %2177 = vmatprep.subr.bf16.mxu0 0
        %2178 = vmatpush1.bf16.xpose.msra.mxu0 0
        %2179 = vmatprep.subr.bf16.mxu0 0
        %2180 = vmatpush1.bf16.xpose.msra.mxu0 %v2163
        %2181 = vmatprep.subr.bf16.mxu0 0
        %2182 = vmatpush2.bf16.xpose.msra.mxu0 0
        %2183 = vmatprep.subr.bf16.mxu0 0
        %2184 = vmatpush2.bf16.xpose.msra.mxu0 0
        %2185 = vmatprep.subr.bf16.mxu0 0
        %2186 = vmatpush2.bf16.xpose.msra.mxu0 0
        %2187 = vmatprep.subr.bf16.mxu0 0
        %2188 = vmatpush2.bf16.xpose.msra.mxu0 0
        %2189 = vmatprep.subr.bf16.mxu0 0
        %2190 = vmatpush2.bf16.xpose.msra.mxu0 0
        %2191 = vmatprep.subr.bf16.mxu0 0
        %2192 = vmatpush2.bf16.xpose.msra.mxu0 0
        %2193 = vmatprep.subr.bf16.mxu0 0
        %2194 = vmatpush2.bf16.xpose.msra.mxu0 0
        %2195 = vmatprep.subr.bf16.mxu0 0
        %2196 = vmatpush2.bf16.xpose.msra.mxu0 0
        %2197 = vmatprep.mubr.bf16.mxu0 0
        %2198 = vmatmul.mubr.bf16.gmra.mxu0 %v2160
        %v2199 = vpop.f32.mrf.mxu0
        %v2200 = vadd.f32 %v1071, %v2199
        %v2201 = vpop.f32.mrf.mxu0
        %v2202 = vpop.f32.mrf.mxu0
        %v2203 = vadd.f32 %v1072, %v2202
        %v2204 = vpop.f32.mrf.mxu0
        %2205 = vdwg.mxu0
        %v2206 = vsel %vm1321, %v2200, -inf
        %2207 = vmax.xlane.f32.xlu0 %v2206
        %v2208 = vpop.xlane.xlu0 %2207
        %v2209 = vsel %vm1321, %v2203, -inf
        %2210 = vmax.xlane.f32.xlu0 %v2209
        %v2211 = vpop.xlane.xlu0 %2210
        %v2212 = vsub.f32 %v2200, %v2208
        %v2213 = vsub.f32 %v2203, %v2211
        %v2214 = vmul.f32 %v2212, 1.442695
        %v2215 = vpow.pop %v2214
        %v2216 = vmul.f32 %v2213, 1.442695
        %v2217 = vpow.pop %v2216
        %v2218 = vsel %vm1321, %v2215, 0.0
        %2219 = vadd.xlane.f32.xlu0 %v2218
        %v2220 = vpop.xlane.xlu0 %2219
        %v2221 = vsel %vm1321, %v2217, 0.0
        %2222 = vadd.xlane.f32.xlu0 %v2221
        %v2223 = vpop.xlane.xlu0 %2222
        %v2224 = vrcp.pop %v2220
        %v2225 = vrcp.pop %v2223
        %v2226 = vmul.f32 %v2215, %v2224
        %v2227 = vmul.f32 %v2217, %v2225
        %v2228 = vpack.c.bf16 %v2227, %v2226
        %v2229 = vpack.c.bf16 %v2152, %v2149
        %v2231 = vsel %vm1321, %v2228, 0
        %2233 = vmatprep.subr.bf16.mxu0 0
        %2234 = vmatpush1.bf16.msra.mxu0 0
        %2235 = vmatprep.subr.bf16.mxu0 0
        %2236 = vmatpush1.bf16.msra.mxu0 0
        %2237 = vmatprep.subr.bf16.mxu0 0
        %2238 = vmatpush1.bf16.msra.mxu0 0
        %2239 = vmatprep.subr.bf16.mxu0 0
        %2240 = vmatpush1.bf16.msra.mxu0 0
        %2241 = vmatprep.subr.bf16.mxu0 0
        %2242 = vmatpush1.bf16.msra.mxu0 0
        %2243 = vmatprep.subr.bf16.mxu0 0
        %2244 = vmatpush1.bf16.msra.mxu0 0
        %2245 = vmatprep.subr.bf16.mxu0 0
        %2246 = vmatpush1.bf16.msra.mxu0 0
        %2247 = vmatprep.subr.bf16.mxu0 0
        %2248 = vmatpush1.bf16.msra.mxu0 %v2229
        %2249 = vmatprep.subr.bf16.mxu0 0
        %2250 = vmatpush2.bf16.msra.mxu0 0
        %2251 = vmatprep.subr.bf16.mxu0 0
        %2252 = vmatpush2.bf16.msra.mxu0 0
        %2253 = vmatprep.subr.bf16.mxu0 0
        %2254 = vmatpush2.bf16.msra.mxu0 0
        %2255 = vmatprep.subr.bf16.mxu0 0
        %2256 = vmatpush2.bf16.msra.mxu0 0
        %2257 = vmatprep.subr.bf16.mxu0 0
        %2258 = vmatpush2.bf16.msra.mxu0 0
        %2259 = vmatprep.subr.bf16.mxu0 0
        %2260 = vmatpush2.bf16.msra.mxu0 0
        %2261 = vmatprep.subr.bf16.mxu0 0
        %2262 = vmatpush2.bf16.msra.mxu0 0
        %2263 = vmatprep.subr.bf16.mxu0 0
        %2264 = vmatpush2.bf16.msra.mxu0 0
        %2265 = vmatprep.mubr.bf16.mxu0 0
        %2266 = vmatmul.mubr.bf16.gmra.mxu0 %v2231
        %v2267 = vpop.f32.mrf.mxu0
        %v2268 = vadd.f32 0.0, %v2267
        %v2269 = vpop.f32.mrf.mxu0
        %v2270 = vpop.f32.mrf.mxu0
        %v2271 = vadd.f32 0.0, %v2270
        %v2272 = vpop.f32.mrf.mxu0
        %2273 = vdwg.mxu0
        %v2274 = vpack.c.bf16 %v2271, %v2268
        %s2275 = scalar_lea.vmem %s957, 16
        %v2276 = vld [vmem:[%s2275] sm:$0xf]
        %v2277 = vld [vmem:[%s2275 + $0x4] sm:$0xf]
        %v2280 = vunpack.c.l.b16 %v2276
        %v2281 = vunpack.c.l.b16 %v2277
        %v2282 = vpack.c.b16 %v2281, %v2280
        %v2285 = vsel %vm1321, %v2274, 0
        %2287 = vmatprep.subr.bf16.mxu0 0
        %2288 = vmatpush1.bf16.msra.mxu0 0
        %2289 = vmatprep.subr.bf16.mxu0 0
        %2290 = vmatpush1.bf16.msra.mxu0 0
        %2291 = vmatprep.subr.bf16.mxu0 0
        %2292 = vmatpush1.bf16.msra.mxu0 0
        %2293 = vmatprep.subr.bf16.mxu0 0
        %2294 = vmatpush1.bf16.msra.mxu0 0
        %2295 = vmatprep.subr.bf16.mxu0 0
        %2296 = vmatpush1.bf16.msra.mxu0 0
        %2297 = vmatprep.subr.bf16.mxu0 0
        %2298 = vmatpush1.bf16.msra.mxu0 0
        %2299 = vmatprep.subr.bf16.mxu0 0
        %2300 = vmatpush1.bf16.msra.mxu0 0
        %2301 = vmatprep.subr.bf16.mxu0 0
        %2302 = vmatpush1.bf16.msra.mxu0 %v2282
        %2303 = vmatprep.subr.bf16.mxu0 0
        %2304 = vmatpush2.bf16.msra.mxu0 0
        %2305 = vmatprep.subr.bf16.mxu0 0
        %2306 = vmatpush2.bf16.msra.mxu0 0
        %2307 = vmatprep.subr.bf16.mxu0 0
        %2308 = vmatpush2.bf16.msra.mxu0 0
        %2309 = vmatprep.subr.bf16.mxu0 0
        %2310 = vmatpush2.bf16.msra.mxu0 0
        %2311 = vmatprep.subr.bf16.mxu0 0
        %2312 = vmatpush2.bf16.msra.mxu0 0
        %2313 = vmatprep.subr.bf16.mxu0 0
        %2314 = vmatpush2.bf16.msra.mxu0 0
        %2315 = vmatprep.subr.bf16.mxu0 0
        %2316 = vmatpush2.bf16.msra.mxu0 0
        %2317 = vmatprep.subr.bf16.mxu0 0
        %2318 = vmatpush2.bf16.msra.mxu0 0
        %2319 = vmatprep.mubr.bf16.mxu0 0
        %2320 = vmatmul.mubr.bf16.gmra.mxu0 %v2285
        %v2321 = vpop.f32.mrf.mxu0
        %v2322 = vadd.f32 0.0, %v2321
        %v2323 = vpop.f32.mrf.mxu0
        %v2324 = vpop.f32.mrf.mxu0
        %v2325 = vadd.f32 0.0, %v2324
        %v2326 = vpop.f32.mrf.mxu0
        %2327 = vdwg.mxu0
        %v2328 = vadd.f32 %v1903, %v2322
        %v2329 = vadd.f32 %v1906, %v2325
        %s2330 = scalar_lea.vmem %s930, 96
        %v2331 = vld [vmem:[%s2330] sm:$0xf]
        %v2332 = vld [vmem:[%s2330 + $0x4] sm:$0xf]
        %v2333 = vld [vmem:[%s2330 + $0x8] sm:$0xf]
        %v2334 = vld [vmem:[%s2330 + $0xc] sm:$0xf]
        %v2335 = vld [vmem:[%s2330 + $0x10] sm:$0xf]
        %v2336 = vld [vmem:[%s2330 + $0x14] sm:$0xf]
        %v2337 = vld [vmem:[%s2330 + $0x18] sm:$0xf]
        %v2338 = vld [vmem:[%s2330 + $0x1c] sm:$0xf]
        %s2339 = scalar_lea.vmem %s934, 3
        %v2340 = vld [vmem:[%s2339] sm:$0x1]
        %v2342 = vlaneseq
        %v2343 = vshrl.u32 %v2342, 7
        %v2344 = vsub.s32 0, %v2343
        %v2345 = vrot.slane %v2340, %v2344
        %v2355 = vunpack.c.l.b16 %v2331
        %v2356 = vunpack.c.l.b16 %v2332
        %v2357 = vunpack.c.l.b16 %v2333
        %v2358 = vunpack.c.l.b16 %v2334
        %v2359 = vunpack.c.l.b16 %v2335
        %v2360 = vunpack.c.l.b16 %v2336
        %v2361 = vunpack.c.l.b16 %v2337
        %v2362 = vunpack.c.l.b16 %v2338
        %v2363 = vpack.c.b16 %v2356, %v2355
        %v2364 = vpack.c.b16 %v2358, %v2357
        %v2365 = vpack.c.b16 %v2360, %v2359
        %v2366 = vpack.c.b16 %v2362, %v2361
        %2371 = vmatprep.subr.bf16.mxu0 0
        %2372 = vmatpush1.bf16.msra.mxu0 0
        %2373 = vmatprep.subr.bf16.mxu0 0
        %2374 = vmatpush1.bf16.msra.mxu0 0
        %2375 = vmatprep.subr.bf16.mxu0 0
        %2376 = vmatpush1.bf16.msra.mxu0 0
        %2377 = vmatprep.subr.bf16.mxu0 0
        %2378 = vmatpush1.bf16.msra.mxu0 0
        %2379 = vmatprep.subr.bf16.mxu0 0
        %2380 = vmatpush1.bf16.msra.mxu0 %v2366
        %2381 = vmatprep.subr.bf16.mxu0 0
        %2382 = vmatpush1.bf16.msra.mxu0 %v2365
        %2383 = vmatprep.subr.bf16.mxu0 0
        %2384 = vmatpush1.bf16.msra.mxu0 %v2364
        %2385 = vmatprep.subr.bf16.mxu0 0
        %2386 = vmatpush1.bf16.msra.mxu0 %v2363
        %2387 = vmatprep.subr.bf16.mxu0 0
        %2388 = vmatpush2.bf16.msra.mxu0 0
        %2389 = vmatprep.subr.bf16.mxu0 0
        %2390 = vmatpush2.bf16.msra.mxu0 0
        %2391 = vmatprep.subr.bf16.mxu0 0
        %2392 = vmatpush2.bf16.msra.mxu0 0
        %2393 = vmatprep.subr.bf16.mxu0 0
        %2394 = vmatpush2.bf16.msra.mxu0 0
        %2395 = vmatprep.subr.bf16.mxu0 0
        %2396 = vmatpush2.bf16.msra.mxu0 0
        %2397 = vmatprep.subr.bf16.mxu0 0
        %2398 = vmatpush2.bf16.msra.mxu0 0
        %2399 = vmatprep.subr.bf16.mxu0 0
        %2400 = vmatpush2.bf16.msra.mxu0 0
        %2401 = vmatprep.subr.bf16.mxu0 0
        %2402 = vmatpush2.bf16.msra.mxu0 0
        %2403 = vmatprep.mubr.bf16.mxu0 0
        %2404 = vmatmul.mubr.bf16.gmra.mxu0 %v1114
        %v2405 = vpop.f32.mrf.mxu0
        %v2406 = vadd.f32 %v2345, %v2405
        %v2407 = vpop.f32.mrf.mxu0
        %v2408 = vpop.f32.mrf.mxu0
        %v2409 = vadd.f32 %v2345, %v2408
        %v2410 = vpop.f32.mrf.mxu0
        %2411 = vdwg.mxu0
        %s2412 = scalar_lea.vmem %s939, 96
        %v2413 = vld [vmem:[%s2412] sm:$0xf]
        %v2414 = vld [vmem:[%s2412 + $0x4] sm:$0xf]
        %v2415 = vld [vmem:[%s2412 + $0x8] sm:$0xf]
        %v2416 = vld [vmem:[%s2412 + $0xc] sm:$0xf]
        %v2417 = vld [vmem:[%s2412 + $0x10] sm:$0xf]
        %v2418 = vld [vmem:[%s2412 + $0x14] sm:$0xf]
        %v2419 = vld [vmem:[%s2412 + $0x18] sm:$0xf]
        %v2420 = vld [vmem:[%s2412 + $0x1c] sm:$0xf]
        %s2421 = scalar_lea.vmem %s943, 3
        %v2422 = vld [vmem:[%s2421] sm:$0x1]
        %v2424 = vlaneseq
        %v2425 = vshrl.u32 %v2424, 7
        %v2426 = vsub.s32 0, %v2425
        %v2427 = vrot.slane %v2422, %v2426
        %v2437 = vunpack.c.l.b16 %v2413
        %v2438 = vunpack.c.l.b16 %v2414
        %v2439 = vunpack.c.l.b16 %v2415
        %v2440 = vunpack.c.l.b16 %v2416
        %v2441 = vunpack.c.l.b16 %v2417
        %v2442 = vunpack.c.l.b16 %v2418
        %v2443 = vunpack.c.l.b16 %v2419
        %v2444 = vunpack.c.l.b16 %v2420
        %v2445 = vpack.c.b16 %v2438, %v2437
        %v2446 = vpack.c.b16 %v2440, %v2439
        %v2447 = vpack.c.b16 %v2442, %v2441
        %v2448 = vpack.c.b16 %v2444, %v2443
        %2453 = vmatprep.subr.bf16.mxu0 0
        %2454 = vmatpush1.bf16.msra.mxu0 0
        %2455 = vmatprep.subr.bf16.mxu0 0
        %2456 = vmatpush1.bf16.msra.mxu0 0
        %2457 = vmatprep.subr.bf16.mxu0 0
        %2458 = vmatpush1.bf16.msra.mxu0 0
        %2459 = vmatprep.subr.bf16.mxu0 0
        %2460 = vmatpush1.bf16.msra.mxu0 0
        %2461 = vmatprep.subr.bf16.mxu0 0
        %2462 = vmatpush1.bf16.msra.mxu0 %v2448
        %2463 = vmatprep.subr.bf16.mxu0 0
        %2464 = vmatpush1.bf16.msra.mxu0 %v2447
        %2465 = vmatprep.subr.bf16.mxu0 0
        %2466 = vmatpush1.bf16.msra.mxu0 %v2446
        %2467 = vmatprep.subr.bf16.mxu0 0
        %2468 = vmatpush1.bf16.msra.mxu0 %v2445
        %2469 = vmatprep.subr.bf16.mxu0 0
        %2470 = vmatpush2.bf16.msra.mxu0 0
        %2471 = vmatprep.subr.bf16.mxu0 0
        %2472 = vmatpush2.bf16.msra.mxu0 0
        %2473 = vmatprep.subr.bf16.mxu0 0
        %2474 = vmatpush2.bf16.msra.mxu0 0
        %2475 = vmatprep.subr.bf16.mxu0 0
        %2476 = vmatpush2.bf16.msra.mxu0 0
        %2477 = vmatprep.subr.bf16.mxu0 0
        %2478 = vmatpush2.bf16.msra.mxu0 0
        %2479 = vmatprep.subr.bf16.mxu0 0
        %2480 = vmatpush2.bf16.msra.mxu0 0
        %2481 = vmatprep.subr.bf16.mxu0 0
        %2482 = vmatpush2.bf16.msra.mxu0 0
        %2483 = vmatprep.subr.bf16.mxu0 0
        %2484 = vmatpush2.bf16.msra.mxu0 0
        %2485 = vmatprep.mubr.bf16.mxu0 0
        %2486 = vmatmul.mubr.bf16.gmra.mxu0 %v1114
        %v2487 = vpop.f32.mrf.mxu0
        %v2488 = vadd.f32 %v2427, %v2487
        %v2489 = vpop.f32.mrf.mxu0
        %v2490 = vpop.f32.mrf.mxu0
        %v2491 = vadd.f32 %v2427, %v2490
        %v2492 = vpop.f32.mrf.mxu0
        %2493 = vdwg.mxu0
        %s2494 = scalar_lea.vmem %s948, 96
        %v2495 = vld [vmem:[%s2494] sm:$0xf]
        %v2496 = vld [vmem:[%s2494 + $0x4] sm:$0xf]
        %v2497 = vld [vmem:[%s2494 + $0x8] sm:$0xf]
        %v2498 = vld [vmem:[%s2494 + $0xc] sm:$0xf]
        %v2499 = vld [vmem:[%s2494 + $0x10] sm:$0xf]
        %v2500 = vld [vmem:[%s2494 + $0x14] sm:$0xf]
        %v2501 = vld [vmem:[%s2494 + $0x18] sm:$0xf]
        %v2502 = vld [vmem:[%s2494 + $0x1c] sm:$0xf]
        %s2503 = scalar_lea.vmem %s952, 3
        %v2504 = vld [vmem:[%s2503] sm:$0x1]
        %v2506 = vlaneseq
        %v2507 = vshrl.u32 %v2506, 7
        %v2508 = vsub.s32 0, %v2507
        %v2509 = vrot.slane %v2504, %v2508
        %v2519 = vunpack.c.l.b16 %v2495
        %v2520 = vunpack.c.l.b16 %v2496
        %v2521 = vunpack.c.l.b16 %v2497
        %v2522 = vunpack.c.l.b16 %v2498
        %v2523 = vunpack.c.l.b16 %v2499
        %v2524 = vunpack.c.l.b16 %v2500
        %v2525 = vunpack.c.l.b16 %v2501
        %v2526 = vunpack.c.l.b16 %v2502
        %v2527 = vpack.c.b16 %v2520, %v2519
        %v2528 = vpack.c.b16 %v2522, %v2521
        %v2529 = vpack.c.b16 %v2524, %v2523
        %v2530 = vpack.c.b16 %v2526, %v2525
        %2535 = vmatprep.subr.bf16.mxu0 0
        %2536 = vmatpush1.bf16.msra.mxu0 0
        %2537 = vmatprep.subr.bf16.mxu0 0
        %2538 = vmatpush1.bf16.msra.mxu0 0
        %2539 = vmatprep.subr.bf16.mxu0 0
        %2540 = vmatpush1.bf16.msra.mxu0 0
        %2541 = vmatprep.subr.bf16.mxu0 0
        %2542 = vmatpush1.bf16.msra.mxu0 0
        %2543 = vmatprep.subr.bf16.mxu0 0
        %2544 = vmatpush1.bf16.msra.mxu0 %v2530
        %2545 = vmatprep.subr.bf16.mxu0 0
        %2546 = vmatpush1.bf16.msra.mxu0 %v2529
        %2547 = vmatprep.subr.bf16.mxu0 0
        %2548 = vmatpush1.bf16.msra.mxu0 %v2528
        %2549 = vmatprep.subr.bf16.mxu0 0
        %2550 = vmatpush1.bf16.msra.mxu0 %v2527
        %2551 = vmatprep.subr.bf16.mxu0 0
        %2552 = vmatpush2.bf16.msra.mxu0 0
        %2553 = vmatprep.subr.bf16.mxu0 0
        %2554 = vmatpush2.bf16.msra.mxu0 0
        %2555 = vmatprep.subr.bf16.mxu0 0
        %2556 = vmatpush2.bf16.msra.mxu0 0
        %2557 = vmatprep.subr.bf16.mxu0 0
        %2558 = vmatpush2.bf16.msra.mxu0 0
        %2559 = vmatprep.subr.bf16.mxu0 0
        %2560 = vmatpush2.bf16.msra.mxu0 0
        %2561 = vmatprep.subr.bf16.mxu0 0
        %2562 = vmatpush2.bf16.msra.mxu0 0
        %2563 = vmatprep.subr.bf16.mxu0 0
        %2564 = vmatpush2.bf16.msra.mxu0 0
        %2565 = vmatprep.subr.bf16.mxu0 0
        %2566 = vmatpush2.bf16.msra.mxu0 0
        %2567 = vmatprep.mubr.bf16.mxu0 0
        %2568 = vmatmul.mubr.bf16.gmra.mxu0 %v1114
        %v2569 = vpop.f32.mrf.mxu0
        %v2570 = vadd.f32 %v2509, %v2569
        %v2571 = vpop.f32.mrf.mxu0
        %v2572 = vpop.f32.mrf.mxu0
        %v2573 = vadd.f32 %v2509, %v2572
        %v2574 = vpop.f32.mrf.mxu0
        %2575 = vdwg.mxu0
        %v2576 = vmul.f32 %v2406, 0.25
        %v2577 = vmul.f32 %v2409, 0.25
        %v2578 = vpack.c.bf16 %v2577, %v2576
        %v2579 = vpack.c.bf16 %v2491, %v2488
        %v2581 = vsel %vm1321, %v2578, 0
        %v2584 = vsel %vm1321, %v2579, 0
        %2586 = vmatprep.subr.bf16.mxu0 0
        %2587 = vmatpush1.bf16.xpose.msra.mxu0 0
        %2588 = vmatprep.subr.bf16.mxu0 0
        %2589 = vmatpush1.bf16.xpose.msra.mxu0 0
        %2590 = vmatprep.subr.bf16.mxu0 0
        %2591 = vmatpush1.bf16.xpose.msra.mxu0 0
        %2592 = vmatprep.subr.bf16.mxu0 0
        %2593 = vmatpush1.bf16.xpose.msra.mxu0 0
        %2594 = vmatprep.subr.bf16.mxu0 0
        %2595 = vmatpush1.bf16.xpose.msra.mxu0 0
        %2596 = vmatprep.subr.bf16.mxu0 0
        %2597 = vmatpush1.bf16.xpose.msra.mxu0 0
        %2598 = vmatprep.subr.bf16.mxu0 0
        %2599 = vmatpush1.bf16.xpose.msra.mxu0 0
        %2600 = vmatprep.subr.bf16.mxu0 0
        %2601 = vmatpush1.bf16.xpose.msra.mxu0 %v2584
        %2602 = vmatprep.subr.bf16.mxu0 0
        %2603 = vmatpush2.bf16.xpose.msra.mxu0 0
        %2604 = vmatprep.subr.bf16.mxu0 0
        %2605 = vmatpush2.bf16.xpose.msra.mxu0 0
        %2606 = vmatprep.subr.bf16.mxu0 0
        %2607 = vmatpush2.bf16.xpose.msra.mxu0 0
        %2608 = vmatprep.subr.bf16.mxu0 0
        %2609 = vmatpush2.bf16.xpose.msra.mxu0 0
        %2610 = vmatprep.subr.bf16.mxu0 0
        %2611 = vmatpush2.bf16.xpose.msra.mxu0 0
        %2612 = vmatprep.subr.bf16.mxu0 0
        %2613 = vmatpush2.bf16.xpose.msra.mxu0 0
        %2614 = vmatprep.subr.bf16.mxu0 0
        %2615 = vmatpush2.bf16.xpose.msra.mxu0 0
        %2616 = vmatprep.subr.bf16.mxu0 0
        %2617 = vmatpush2.bf16.xpose.msra.mxu0 0
        %2618 = vmatprep.mubr.bf16.mxu0 0
        %2619 = vmatmul.mubr.bf16.gmra.mxu0 %v2581
        %v2620 = vpop.f32.mrf.mxu0
        %v2621 = vadd.f32 %v1071, %v2620
        %v2622 = vpop.f32.mrf.mxu0
        %v2623 = vpop.f32.mrf.mxu0
        %v2624 = vadd.f32 %v1072, %v2623
        %v2625 = vpop.f32.mrf.mxu0
        %2626 = vdwg.mxu0
        %v2627 = vsel %vm1321, %v2621, -inf
        %2628 = vmax.xlane.f32.xlu0 %v2627
        %v2629 = vpop.xlane.xlu0 %2628
        %v2630 = vsel %vm1321, %v2624, -inf
        %2631 = vmax.xlane.f32.xlu0 %v2630
        %v2632 = vpop.xlane.xlu0 %2631
        %v2633 = vsub.f32 %v2621, %v2629
        %v2634 = vsub.f32 %v2624, %v2632
        %v2635 = vmul.f32 %v2633, 1.442695
        %v2636 = vpow.pop %v2635
        %v2637 = vmul.f32 %v2634, 1.442695
        %v2638 = vpow.pop %v2637
        %v2639 = vsel %vm1321, %v2636, 0.0
        %2640 = vadd.xlane.f32.xlu0 %v2639
        %v2641 = vpop.xlane.xlu0 %2640
        %v2642 = vsel %vm1321, %v2638, 0.0
        %2643 = vadd.xlane.f32.xlu0 %v2642
        %v2644 = vpop.xlane.xlu0 %2643
        %v2645 = vrcp.pop %v2641
        %v2646 = vrcp.pop %v2644
        %v2647 = vmul.f32 %v2636, %v2645
        %v2648 = vmul.f32 %v2638, %v2646
        %v2649 = vpack.c.bf16 %v2648, %v2647
        %v2650 = vpack.c.bf16 %v2573, %v2570
        %v2652 = vsel %vm1321, %v2649, 0
        %2654 = vmatprep.subr.bf16.mxu0 0
        %2655 = vmatpush1.bf16.msra.mxu0 0
        %2656 = vmatprep.subr.bf16.mxu0 0
        %2657 = vmatpush1.bf16.msra.mxu0 0
        %2658 = vmatprep.subr.bf16.mxu0 0
        %2659 = vmatpush1.bf16.msra.mxu0 0
        %2660 = vmatprep.subr.bf16.mxu0 0
        %2661 = vmatpush1.bf16.msra.mxu0 0
        %2662 = vmatprep.subr.bf16.mxu0 0
        %2663 = vmatpush1.bf16.msra.mxu0 0
        %2664 = vmatprep.subr.bf16.mxu0 0
        %2665 = vmatpush1.bf16.msra.mxu0 0
        %2666 = vmatprep.subr.bf16.mxu0 0
        %2667 = vmatpush1.bf16.msra.mxu0 0
        %2668 = vmatprep.subr.bf16.mxu0 0
        %2669 = vmatpush1.bf16.msra.mxu0 %v2650
        %2670 = vmatprep.subr.bf16.mxu0 0
        %2671 = vmatpush2.bf16.msra.mxu0 0
        %2672 = vmatprep.subr.bf16.mxu0 0
        %2673 = vmatpush2.bf16.msra.mxu0 0
        %2674 = vmatprep.subr.bf16.mxu0 0
        %2675 = vmatpush2.bf16.msra.mxu0 0
        %2676 = vmatprep.subr.bf16.mxu0 0
        %2677 = vmatpush2.bf16.msra.mxu0 0
        %2678 = vmatprep.subr.bf16.mxu0 0
        %2679 = vmatpush2.bf16.msra.mxu0 0
        %2680 = vmatprep.subr.bf16.mxu0 0
        %2681 = vmatpush2.bf16.msra.mxu0 0
        %2682 = vmatprep.subr.bf16.mxu0 0
        %2683 = vmatpush2.bf16.msra.mxu0 0
        %2684 = vmatprep.subr.bf16.mxu0 0
        %2685 = vmatpush2.bf16.msra.mxu0 0
        %2686 = vmatprep.mubr.bf16.mxu0 0
        %2687 = vmatmul.mubr.bf16.gmra.mxu0 %v2652
        %v2688 = vpop.f32.mrf.mxu0
        %v2689 = vadd.f32 0.0, %v2688
        %v2690 = vpop.f32.mrf.mxu0
        %v2691 = vpop.f32.mrf.mxu0
        %v2692 = vadd.f32 0.0, %v2691
        %v2693 = vpop.f32.mrf.mxu0
        %2694 = vdwg.mxu0
        %v2695 = vpack.c.bf16 %v2692, %v2689
        %s2696 = scalar_lea.vmem %s957, 24
        %v2697 = vld [vmem:[%s2696] sm:$0xf]
        %v2698 = vld [vmem:[%s2696 + $0x4] sm:$0xf]
        %v2701 = vunpack.c.l.b16 %v2697
        %v2702 = vunpack.c.l.b16 %v2698
        %v2703 = vpack.c.b16 %v2702, %v2701
        %v2706 = vsel %vm1321, %v2695, 0
        %2708 = vmatprep.subr.bf16.mxu0 0
        %2709 = vmatpush1.bf16.msra.mxu0 0
        %2710 = vmatprep.subr.bf16.mxu0 0
        %2711 = vmatpush1.bf16.msra.mxu0 0
        %2712 = vmatprep.subr.bf16.mxu0 0
        %2713 = vmatpush1.bf16.msra.mxu0 0
        %2714 = vmatprep.subr.bf16.mxu0 0
        %2715 = vmatpush1.bf16.msra.mxu0 0
        %2716 = vmatprep.subr.bf16.mxu0 0
        %2717 = vmatpush1.bf16.msra.mxu0 0
        %2718 = vmatprep.subr.bf16.mxu0 0
        %2719 = vmatpush1.bf16.msra.mxu0 0
        %2720 = vmatprep.subr.bf16.mxu0 0
        %2721 = vmatpush1.bf16.msra.mxu0 0
        %2722 = vmatprep.subr.bf16.mxu0 0
        %2723 = vmatpush1.bf16.msra.mxu0 %v2703
        %2724 = vmatprep.subr.bf16.mxu0 0
        %2725 = vmatpush2.bf16.msra.mxu0 0
        %2726 = vmatprep.subr.bf16.mxu0 0
        %2727 = vmatpush2.bf16.msra.mxu0 0
        %2728 = vmatprep.subr.bf16.mxu0 0
        %2729 = vmatpush2.bf16.msra.mxu0 0
        %2730 = vmatprep.subr.bf16.mxu0 0
        %2731 = vmatpush2.bf16.msra.mxu0 0
        %2732 = vmatprep.subr.bf16.mxu0 0
        %2733 = vmatpush2.bf16.msra.mxu0 0
        %2734 = vmatprep.subr.bf16.mxu0 0
        %2735 = vmatpush2.bf16.msra.mxu0 0
        %2736 = vmatprep.subr.bf16.mxu0 0
        %2737 = vmatpush2.bf16.msra.mxu0 0
        %2738 = vmatprep.subr.bf16.mxu0 0
        %2739 = vmatpush2.bf16.msra.mxu0 0
        %2740 = vmatprep.mubr.bf16.mxu0 0
        %2741 = vmatmul.mubr.bf16.gmra.mxu0 %v2706
        %v2742 = vpop.f32.mrf.mxu0
        %v2743 = vadd.f32 0.0, %v2742
        %v2744 = vpop.f32.mrf.mxu0
        %v2745 = vpop.f32.mrf.mxu0
        %v2746 = vadd.f32 0.0, %v2745
        %v2747 = vpop.f32.mrf.mxu0
        %2748 = vdwg.mxu0
        %v2749 = vadd.f32 %v2328, %v2743
        %v2750 = vadd.f32 %v2329, %v2746
        %v2751 = vld [vmem:[%s960] sm:$0x1]
        %v2753 = vlaneseq
        %v2754 = vshrl.u32 %v2753, 7
        %v2755 = vsub.s32 0, %v2754
        %v2756 = vrot.slane %v2751, %v2755
        %v2758 = vadd.f32 %v2749, %v2756
        %v2759 = vadd.f32 %v2750, %v2756
        %v2760 = vadd.f32 %v1068, %v2758
        %v2761 = vadd.f32 %v1069, %v2759
        %v2762 = vld [vmem:[%s963] sm:$0x1]
        %v2763 = vld [vmem:[%s966] sm:$0x1]
        %v2764 = vsel %vm1112, %v2760, 0.0
        %2765 = vadd.xlane.f32.xlu0 %v2764
        %v2766 = vpop.xlane.xlu0 %2765
        %v2767 = vsel %vm1112, %v2761, 0.0
        %2768 = vadd.xlane.f32.xlu0 %v2767
        %v2769 = vpop.xlane.xlu0 %2768
        %v2770 = vrcp.pop 64.0
        %v2771 = vmul.f32 %v2766, %v2770
        %v2772 = vmul.f32 %v2769, %v2770
        %v2773 = vsub.f32 %v2760, %v2771
        %v2774 = vsub.f32 %v2761, %v2772
        %v2775 = vmul.f32 %v2773, %v2773
        %v2776 = vmul.f32 %v2774, %v2774
        %v2777 = vsel %vm1112, %v2775, 0.0
        %2778 = vadd.xlane.f32.xlu0 %v2777
        %v2779 = vpop.xlane.xlu0 %2778
        %v2780 = vsel %vm1112, %v2776, 0.0
        %2781 = vadd.xlane.f32.xlu0 %v2780
        %v2782 = vpop.xlane.xlu0 %2781
        %v2783 = vmul.f32 %v2779, %v2770
        %v2784 = vmul.f32 %v2782, %v2770
        %v2785 = vadd.f32 %v2783, 1e-05
        %v2786 = vadd.f32 %v2784, 1e-05
        %v2787 = vrsqrt.pop %v2785
        %v2788 = vrsqrt.pop %v2786
        %v2789 = vmul.f32 %v2773, %v2787
        %v2790 = vmul.f32 %v2774, %v2788
        %v2792 = vlaneseq
        %v2793 = vshrl.u32 %v2792, 7
        %v2794 = vsub.s32 0, %v2793
        %v2795 = vrot.slane %v2762, %v2794
        %v2797 = vmul.f32 %v2789, %v2795
        %v2798 = vmul.f32 %v2790, %v2795
        %v2800 = vlaneseq
        %v2801 = vshrl.u32 %v2800, 7
        %v2802 = vsub.s32 0, %v2801
        %v2803 = vrot.slane %v2763, %v2802
        %v2805 = vadd.f32 %v2797, %v2803
        %v2806 = vadd.f32 %v2798, %v2803
        %v2807 = vpack.c.bf16 %v2806, %v2805
        %v2808 = vld [vmem:[%s971] sm:$0xff]
        %v2809 = vld [vmem:[%s971 + $0x8] sm:$0xff]
        %v2810 = vld [vmem:[%s971 + $0x10] sm:$0xff]
        %v2811 = vld [vmem:[%s971 + $0x18] sm:$0xff]
        %v2812 = vld [vmem:[%s971 + $0x20] sm:$0xff]
        %v2813 = vld [vmem:[%s971 + $0x28] sm:$0xff]
        %v2814 = vld [vmem:[%s971 + $0x30] sm:$0xff]
        %v2815 = vld [vmem:[%s971 + $0x38] sm:$0xff]
        %v2816 = vld [vmem:[%s971 + $0x40] sm:$0xff]
        %v2817 = vld [vmem:[%s971 + $0x48] sm:$0xff]
        %v2818 = vld [vmem:[%s971 + $0x50] sm:$0xff]
        %v2819 = vld [vmem:[%s971 + $0x58] sm:$0xff]
        %v2820 = vld [vmem:[%s971 + $0x60] sm:$0xff]
        %v2821 = vld [vmem:[%s971 + $0x68] sm:$0xff]
        %v2822 = vld [vmem:[%s971 + $0x70] sm:$0xff]
        %v2823 = vld [vmem:[%s971 + $0x78] sm:$0xff]
        %v2824 = vld [vmem:[%s971 + $0x80] sm:$0xff]
        %v2825 = vld [vmem:[%s971 + $0x88] sm:$0xff]
        %v2826 = vld [vmem:[%s971 + $0x90] sm:$0xff]
        %v2827 = vld [vmem:[%s971 + $0x98] sm:$0xff]
        %v2828 = vld [vmem:[%s971 + $0xa0] sm:$0xff]
        %v2829 = vld [vmem:[%s971 + $0xa8] sm:$0xff]
        %v2830 = vld [vmem:[%s971 + $0xb0] sm:$0xff]
        %v2831 = vld [vmem:[%s971 + $0xb8] sm:$0xff]
        %v2832 = vld [vmem:[%s971 + $0xc0] sm:$0xff]
        %v2833 = vld [vmem:[%s971 + $0xc8] sm:$0xff]
        %v2834 = vld [vmem:[%s971 + $0xd0] sm:$0xff]
        %v2835 = vld [vmem:[%s971 + $0xd8] sm:$0xff]
        %v2836 = vld [vmem:[%s971 + $0xe0] sm:$0xff]
        %v2837 = vld [vmem:[%s971 + $0xe8] sm:$0xff]
        %v2838 = vld [vmem:[%s971 + $0xf0] sm:$0xff]
        %v2839 = vld [vmem:[%s971 + $0xf8] sm:$0xff]
        %v2840 = vld [vmem:[%s971 + $0x100] sm:$0xff]
        %v2841 = vld [vmem:[%s971 + $0x108] sm:$0xff]
        %v2842 = vld [vmem:[%s971 + $0x110] sm:$0xff]
        %v2843 = vld [vmem:[%s971 + $0x118] sm:$0xff]
        %v2844 = vld [vmem:[%s971 + $0x120] sm:$0xff]
        %v2845 = vld [vmem:[%s971 + $0x128] sm:$0xff]
        %v2846 = vld [vmem:[%s971 + $0x130] sm:$0xff]
        %v2847 = vld [vmem:[%s971 + $0x138] sm:$0xff]
        %v2848 = vld [vmem:[%s971 + $0x140] sm:$0xff]
        %v2849 = vld [vmem:[%s971 + $0x148] sm:$0xff]
        %v2850 = vld [vmem:[%s971 + $0x150] sm:$0xff]
        %v2851 = vld [vmem:[%s971 + $0x158] sm:$0xff]
        %v2852 = vld [vmem:[%s971 + $0x160] sm:$0xff]
        %v2853 = vld [vmem:[%s971 + $0x168] sm:$0xff]
        %v2854 = vld [vmem:[%s971 + $0x170] sm:$0xff]
        %v2855 = vld [vmem:[%s971 + $0x178] sm:$0xff]
        %v2856 = vld [vmem:[%s971 + $0x180] sm:$0xff]
        %v2857 = vld [vmem:[%s971 + $0x188] sm:$0xff]
        %v2858 = vld [vmem:[%s971 + $0x190] sm:$0xff]
        %v2859 = vld [vmem:[%s971 + $0x198] sm:$0xff]
        %v2860 = vld [vmem:[%s971 + $0x1a0] sm:$0xff]
        %v2861 = vld [vmem:[%s971 + $0x1a8] sm:$0xff]
        %v2862 = vld [vmem:[%s971 + $0x1b0] sm:$0xff]
        %v2863 = vld [vmem:[%s971 + $0x1b8] sm:$0xff]
        %v2864 = vld [vmem:[%s971 + $0x1c0] sm:$0xff]
        %v2865 = vld [vmem:[%s971 + $0x1c8] sm:$0xff]
        %v2866 = vld [vmem:[%s971 + $0x1d0] sm:$0xff]
        %v2867 = vld [vmem:[%s971 + $0x1d8] sm:$0xff]
        %v2868 = vld [vmem:[%s971 + $0x1e0] sm:$0xff]
        %v2869 = vld [vmem:[%s971 + $0x1e8] sm:$0xff]
        %v2870 = vld [vmem:[%s971 + $0x1f0] sm:$0xff]
        %v2871 = vld [vmem:[%s971 + $0x1f8] sm:$0xff]
        %v2872 = vld [vmem:[%s975] sm:$0xff]
        %v2873 = vld [vmem:[%s975 + $0x8] sm:$0xff]
        %v2876 = vlaneseq
        %v2877 = vshrl.u32 %v2876, 7
        %v2878 = vsub.s32 0, %v2877
        %v2879 = vrot.slane %v2872, %v2878
        %v2880 = vlaneseq
        %v2881 = vshrl.u32 %v2880, 7
        %v2882 = vsub.s32 1, %v2881
        %v2883 = vrot.slane %v2872, %v2882
        %v2884 = vlaneseq
        %v2885 = vshrl.u32 %v2884, 7
        %v2886 = vsub.s32 2, %v2885
        %v2887 = vrot.slane %v2872, %v2886
        %v2888 = vlaneseq
        %v2889 = vshrl.u32 %v2888, 7
        %v2890 = vsub.s32 3, %v2889
        %v2891 = vrot.slane %v2872, %v2890
        %v2892 = vlaneseq
        %v2893 = vshrl.u32 %v2892, 7
        %v2894 = vsub.s32 4, %v2893
        %v2895 = vrot.slane %v2872, %v2894
        %v2896 = vlaneseq
        %v2897 = vshrl.u32 %v2896, 7
        %v2898 = vsub.s32 5, %v2897
        %v2899 = vrot.slane %v2872, %v2898
        %v2900 = vlaneseq
        %v2901 = vshrl.u32 %v2900, 7
        %v2902 = vsub.s32 6, %v2901
        %v2903 = vrot.slane %v2872, %v2902
        %v2904 = vlaneseq
        %v2905 = vshrl.u32 %v2904, 7
        %v2906 = vsub.s32 7, %v2905
        %v2907 = vrot.slane %v2872, %v2906
        %v2908 = vlaneseq
        %v2909 = vshrl.u32 %v2908, 7
        %v2910 = vsub.s32 0, %v2909
        %v2911 = vrot.slane %v2873, %v2910
        %v2912 = vlaneseq
        %v2913 = vshrl.u32 %v2912, 7
        %v2914 = vsub.s32 1, %v2913
        %v2915 = vrot.slane %v2873, %v2914
        %v2916 = vlaneseq
        %v2917 = vshrl.u32 %v2916, 7
        %v2918 = vsub.s32 2, %v2917
        %v2919 = vrot.slane %v2873, %v2918
        %v2920 = vlaneseq
        %v2921 = vshrl.u32 %v2920, 7
        %v2922 = vsub.s32 3, %v2921
        %v2923 = vrot.slane %v2873, %v2922
        %v2924 = vlaneseq
        %v2925 = vshrl.u32 %v2924, 7
        %v2926 = vsub.s32 4, %v2925
        %v2927 = vrot.slane %v2873, %v2926
        %v2928 = vlaneseq
        %v2929 = vshrl.u32 %v2928, 7
        %v2930 = vsub.s32 5, %v2929
        %v2931 = vrot.slane %v2873, %v2930
        %v2932 = vlaneseq
        %v2933 = vshrl.u32 %v2932, 7
        %v2934 = vsub.s32 6, %v2933
        %v2935 = vrot.slane %v2873, %v2934
        %v2936 = vlaneseq
        %v2937 = vshrl.u32 %v2936, 7
        %v2938 = vsub.s32 7, %v2937
        %v2939 = vrot.slane %v2873, %v2938
        %v3020 = vunpack.c.l.b16 %v2808
        %v3021 = vunpack.c.h.b16 %v2808
        %v3022 = vunpack.c.l.b16 %v2809
        %v3023 = vunpack.c.h.b16 %v2809
        %v3024 = vunpack.c.l.b16 %v2810
        %v3025 = vunpack.c.h.b16 %v2810
        %v3026 = vunpack.c.l.b16 %v2811
        %v3027 = vunpack.c.h.b16 %v2811
        %v3028 = vunpack.c.l.b16 %v2812
        %v3029 = vunpack.c.h.b16 %v2812
        %v3030 = vunpack.c.l.b16 %v2813
        %v3031 = vunpack.c.h.b16 %v2813
        %v3032 = vunpack.c.l.b16 %v2814
        %v3033 = vunpack.c.h.b16 %v2814
        %v3034 = vunpack.c.l.b16 %v2815
        %v3035 = vunpack.c.h.b16 %v2815
        %v3036 = vunpack.c.l.b16 %v2816
        %v3037 = vunpack.c.h.b16 %v2816
        %v3038 = vunpack.c.l.b16 %v2817
        %v3039 = vunpack.c.h.b16 %v2817
        %v3040 = vunpack.c.l.b16 %v2818
        %v3041 = vunpack.c.h.b16 %v2818
        %v3042 = vunpack.c.l.b16 %v2819
        %v3043 = vunpack.c.h.b16 %v2819
        %v3044 = vunpack.c.l.b16 %v2820
        %v3045 = vunpack.c.h.b16 %v2820
        %v3046 = vunpack.c.l.b16 %v2821
        %v3047 = vunpack.c.h.b16 %v2821
        %v3048 = vunpack.c.l.b16 %v2822
        %v3049 = vunpack.c.h.b16 %v2822
        %v3050 = vunpack.c.l.b16 %v2823
        %v3051 = vunpack.c.h.b16 %v2823
        %v3052 = vunpack.c.l.b16 %v2824
        %v3053 = vunpack.c.h.b16 %v2824
        %v3054 = vunpack.c.l.b16 %v2825
        %v3055 = vunpack.c.h.b16 %v2825
        %v3056 = vunpack.c.l.b16 %v2826
        %v3057 = vunpack.c.h.b16 %v2826
        %v3058 = vunpack.c.l.b16 %v2827
        %v3059 = vunpack.c.h.b16 %v2827
        %v3060 = vunpack.c.l.b16 %v2828
        %v3061 = vunpack.c.h.b16 %v2828
        %v3062 = vunpack.c.l.b16 %v2829
        %v3063 = vunpack.c.h.b16 %v2829
        %v3064 = vunpack.c.l.b16 %v2830
        %v3065 = vunpack.c.h.b16 %v2830
        %v3066 = vunpack.c.l.b16 %v2831
        %v3067 = vunpack.c.h.b16 %v2831
        %v3068 = vunpack.c.l.b16 %v2832
        %v3069 = vunpack.c.h.b16 %v2832
        %v3070 = vunpack.c.l.b16 %v2833
        %v3071 = vunpack.c.h.b16 %v2833
        %v3072 = vunpack.c.l.b16 %v2834
        %v3073 = vunpack.c.h.b16 %v2834
        %v3074 = vunpack.c.l.b16 %v2835
        %v3075 = vunpack.c.h.b16 %v2835
        %v3076 = vunpack.c.l.b16 %v2836
        %v3077 = vunpack.c.h.b16 %v2836
        %v3078 = vunpack.c.l.b16 %v2837
        %v3079 = vunpack.c.h.b16 %v2837
        %v3080 = vunpack.c.l.b16 %v2838
        %v3081 = vunpack.c.h.b16 %v2838
        %v3082 = vunpack.c.l.b16 %v2839
        %v3083 = vunpack.c.h.b16 %v2839
        %v3084 = vunpack.c.l.b16 %v2840
        %v3085 = vunpack.c.h.b16 %v2840
        %v3086 = vunpack.c.l.b16 %v2841
        %v3087 = vunpack.c.h.b16 %v2841
        %v3088 = vunpack.c.l.b16 %v2842
        %v3089 = vunpack.c.h.b16 %v2842
        %v3090 = vunpack.c.l.b16 %v2843
        %v3091 = vunpack.c.h.b16 %v2843
        %v3092 = vunpack.c.l.b16 %v2844
        %v3093 = vunpack.c.h.b16 %v2844
        %v3094 = vunpack.c.l.b16 %v2845
        %v3095 = vunpack.c.h.b16 %v2845
        %v3096 = vunpack.c.l.b16 %v2846
        %v3097 = vunpack.c.h.b16 %v2846
        %v3098 = vunpack.c.l.b16 %v2847
        %v3099 = vunpack.c.h.b16 %v2847
        %v3100 = vunpack.c.l.b16 %v2848
        %v3101 = vunpack.c.h.b16 %v2848
        %v3102 = vunpack.c.l.b16 %v2849
        %v3103 = vunpack.c.h.b16 %v2849
        %v3104 = vunpack.c.l.b16 %v2850
        %v3105 = vunpack.c.h.b16 %v2850
        %v3106 = vunpack.c.l.b16 %v2851
        %v3107 = vunpack.c.h.b16 %v2851
        %v3108 = vunpack.c.l.b16 %v2852
        %v3109 = vunpack.c.h.b16 %v2852
        %v3110 = vunpack.c.l.b16 %v2853
        %v3111 = vunpack.c.h.b16 %v2853
        %v3112 = vunpack.c.l.b16 %v2854
        %v3113 = vunpack.c.h.b16 %v2854
        %v3114 = vunpack.c.l.b16 %v2855
        %v3115 = vunpack.c.h.b16 %v2855
        %v3116 = vunpack.c.l.b16 %v2856
        %v3117 = vunpack.c.h.b16 %v2856
        %v3118 = vunpack.c.l.b16 %v2857
        %v3119 = vunpack.c.h.b16 %v2857
        %v3120 = vunpack.c.l.b16 %v2858
        %v3121 = vunpack.c.h.b16 %v2858
        %v3122 = vunpack.c.l.b16 %v2859
        %v3123 = vunpack.c.h.b16 %v2859
        %v3124 = vunpack.c.l.b16 %v2860
        %v3125 = vunpack.c.h.b16 %v2860
        %v3126 = vunpack.c.l.b16 %v2861
        %v3127 = vunpack.c.h.b16 %v2861
        %v3128 = vunpack.c.l.b16 %v2862
        %v3129 = vunpack.c.h.b16 %v2862
        %v3130 = vunpack.c.l.b16 %v2863
        %v3131 = vunpack.c.h.b16 %v2863
        %v3132 = vunpack.c.l.b16 %v2864
        %v3133 = vunpack.c.h.b16 %v2864
        %v3134 = vunpack.c.l.b16 %v2865
        %v3135 = vunpack.c.h.b16 %v2865
        %v3136 = vunpack.c.l.b16 %v2866
        %v3137 = vunpack.c.h.b16 %v2866
        %v3138 = vunpack.c.l.b16 %v2867
        %v3139 = vunpack.c.h.b16 %v2867
        %v3140 = vunpack.c.l.b16 %v2868
        %v3141 = vunpack.c.h.b16 %v2868
        %v3142 = vunpack.c.l.b16 %v2869
        %v3143 = vunpack.c.h.b16 %v2869
        %v3144 = vunpack.c.l.b16 %v2870
        %v3145 = vunpack.c.h.b16 %v2870
        %v3146 = vunpack.c.l.b16 %v2871
        %v3147 = vunpack.c.h.b16 %v2871
        %v3148 = vpack.c.b16 %v3036, %v3020
        %v3149 = vpack.c.b16 %v3037, %v3021
        %v3150 = vpack.c.b16 %v3038, %v3022
        %v3151 = vpack.c.b16 %v3039, %v3023
        %v3152 = vpack.c.b16 %v3040, %v3024
        %v3153 = vpack.c.b16 %v3041, %v3025
        %v3154 = vpack.c.b16 %v3042, %v3026
        %v3155 = vpack.c.b16 %v3043, %v3027
        %v3156 = vpack.c.b16 %v3044, %v3028
        %v3157 = vpack.c.b16 %v3045, %v3029
        %v3158 = vpack.c.b16 %v3046, %v3030
        %v3159 = vpack.c.b16 %v3047, %v3031
        %v3160 = vpack.c.b16 %v3048, %v3032
        %v3161 = vpack.c.b16 %v3049, %v3033
        %v3162 = vpack.c.b16 %v3050, %v3034
        %v3163 = vpack.c.b16 %v3051, %v3035
        %v3164 = vpack.c.b16 %v3068, %v3052
        %v3165 = vpack.c.b16 %v3069, %v3053
        %v3166 = vpack.c.b16 %v3070, %v3054
        %v3167 = vpack.c.b16 %v3071, %v3055
        %v3168 = vpack.c.b16 %v3072, %v3056
        %v3169 = vpack.c.b16 %v3073, %v3057
        %v3170 = vpack.c.b16 %v3074, %v3058
        %v3171 = vpack.c.b16 %v3075, %v3059
        %v3172 = vpack.c.b16 %v3076, %v3060
        %v3173 = vpack.c.b16 %v3077, %v3061
        %v3174 = vpack.c.b16 %v3078, %v3062
        %v3175 = vpack.c.b16 %v3079, %v3063
        %v3176 = vpack.c.b16 %v3080, %v3064
        %v3177 = vpack.c.b16 %v3081, %v3065
        %v3178 = vpack.c.b16 %v3082, %v3066
        %v3179 = vpack.c.b16 %v3083, %v3067
        %v3180 = vpack.c.b16 %v3100, %v3084
        %v3181 = vpack.c.b16 %v3101, %v3085
        %v3182 = vpack.c.b16 %v3102, %v3086
        %v3183 = vpack.c.b16 %v3103, %v3087
        %v3184 = vpack.c.b16 %v3104, %v3088
        %v3185 = vpack.c.b16 %v3105, %v3089
        %v3186 = vpack.c.b16 %v3106, %v3090
        %v3187 = vpack.c.b16 %v3107, %v3091
        %v3188 = vpack.c.b16 %v3108, %v3092
        %v3189 = vpack.c.b16 %v3109, %v3093
        %v3190 = vpack.c.b16 %v3110, %v3094
        %v3191 = vpack.c.b16 %v3111, %v3095
        %v3192 = vpack.c.b16 %v3112, %v3096
        %v3193 = vpack.c.b16 %v3113, %v3097
        %v3194 = vpack.c.b16 %v3114, %v3098
        %v3195 = vpack.c.b16 %v3115, %v3099
        %v3196 = vpack.c.b16 %v3132, %v3116
        %v3197 = vpack.c.b16 %v3133, %v3117
        %v3198 = vpack.c.b16 %v3134, %v3118
        %v3199 = vpack.c.b16 %v3135, %v3119
        %v3200 = vpack.c.b16 %v3136, %v3120
        %v3201 = vpack.c.b16 %v3137, %v3121
        %v3202 = vpack.c.b16 %v3138, %v3122
        %v3203 = vpack.c.b16 %v3139, %v3123
        %v3204 = vpack.c.b16 %v3140, %v3124
        %v3205 = vpack.c.b16 %v3141, %v3125
        %v3206 = vpack.c.b16 %v3142, %v3126
        %v3207 = vpack.c.b16 %v3143, %v3127
        %v3208 = vpack.c.b16 %v3144, %v3128
        %v3209 = vpack.c.b16 %v3145, %v3129
        %v3210 = vpack.c.b16 %v3146, %v3130
        %v3211 = vpack.c.b16 %v3147, %v3131
        %v3277 = vsel %vm1112, %v2807, 0
        %3279 = vmatprep.subr.bf16.mxu0 0
        %3280 = vmatpush1.bf16.msra.mxu0 0
        %3281 = vmatprep.subr.bf16.mxu0 0
        %3282 = vmatpush1.bf16.msra.mxu0 0
        %3283 = vmatprep.subr.bf16.mxu0 0
        %3284 = vmatpush1.bf16.msra.mxu0 0
        %3285 = vmatprep.subr.bf16.mxu0 0
        %3286 = vmatpush1.bf16.msra.mxu0 0
        %3287 = vmatprep.subr.bf16.mxu0 %v3197
        %3288 = vmatpush1.bf16.msra.mxu0 %v3196
        %3289 = vmatprep.subr.bf16.mxu0 %v3181
        %3290 = vmatpush1.bf16.msra.mxu0 %v3180
        %3291 = vmatprep.subr.bf16.mxu0 %v3165
        %3292 = vmatpush1.bf16.msra.mxu0 %v3164
        %3293 = vmatprep.subr.bf16.mxu0 %v3149
        %3294 = vmatpush1.bf16.msra.mxu0 %v3148
        %3295 = vmatprep.subr.bf16.mxu0 0
        %3296 = vmatpush2.bf16.msra.mxu0 0
        %3297 = vmatprep.subr.bf16.mxu0 0
        %3298 = vmatpush2.bf16.msra.mxu0 0
        %3299 = vmatprep.subr.bf16.mxu0 0
        %3300 = vmatpush2.bf16.msra.mxu0 0
        %3301 = vmatprep.subr.bf16.mxu0 0
        %3302 = vmatpush2.bf16.msra.mxu0 0
        %3303 = vmatprep.subr.bf16.mxu0 0
        %3304 = vmatpush2.bf16.msra.mxu0 0
        %3305 = vmatprep.subr.bf16.mxu0 0
        %3306 = vmatpush2.bf16.msra.mxu0 0
        %3307 = vmatprep.subr.bf16.mxu0 0
        %3308 = vmatpush2.bf16.msra.mxu0 0
        %3309 = vmatprep.subr.bf16.mxu0 0
        %3310 = vmatpush2.bf16.msra.mxu0 0
        %3311 = vmatprep.mubr.bf16.mxu0 0
        %3312 = vmatmul.mubr.bf16.gmra.mxu0 %v3277
        %v3313 = vpop.f32.mrf.mxu0
        %v3314 = vadd.f32 %v2879, %v3313
        %v3315 = vpop.f32.mrf.mxu0
        %v3316 = vadd.f32 %v2883, %v3315
        %v3317 = vpop.f32.mrf.mxu0
        %v3318 = vadd.f32 %v2879, %v3317
        %v3319 = vpop.f32.mrf.mxu0
        %v3320 = vadd.f32 %v2883, %v3319
        %3321 = vdwg.mxu0
        %3322 = vmatprep.subr.bf16.mxu0 0
        %3323 = vmatpush1.bf16.msra.mxu0 0
        %3324 = vmatprep.subr.bf16.mxu0 0
        %3325 = vmatpush1.bf16.msra.mxu0 0
        %3326 = vmatprep.subr.bf16.mxu0 0
        %3327 = vmatpush1.bf16.msra.mxu0 0
        %3328 = vmatprep.subr.bf16.mxu0 0
        %3329 = vmatpush1.bf16.msra.mxu0 0
        %3330 = vmatprep.subr.bf16.mxu0 %v3199
        %3331 = vmatpush1.bf16.msra.mxu0 %v3198
        %3332 = vmatprep.subr.bf16.mxu0 %v3183
        %3333 = vmatpush1.bf16.msra.mxu0 %v3182
        %3334 = vmatprep.subr.bf16.mxu0 %v3167
        %3335 = vmatpush1.bf16.msra.mxu0 %v3166
        %3336 = vmatprep.subr.bf16.mxu0 %v3151
        %3337 = vmatpush1.bf16.msra.mxu0 %v3150
        %3338 = vmatprep.subr.bf16.mxu0 0
        %3339 = vmatpush2.bf16.msra.mxu0 0
        %3340 = vmatprep.subr.bf16.mxu0 0
        %3341 = vmatpush2.bf16.msra.mxu0 0
        %3342 = vmatprep.subr.bf16.mxu0 0
        %3343 = vmatpush2.bf16.msra.mxu0 0
        %3344 = vmatprep.subr.bf16.mxu0 0
        %3345 = vmatpush2.bf16.msra.mxu0 0
        %3346 = vmatprep.subr.bf16.mxu0 0
        %3347 = vmatpush2.bf16.msra.mxu0 0
        %3348 = vmatprep.subr.bf16.mxu0 0
        %3349 = vmatpush2.bf16.msra.mxu0 0
        %3350 = vmatprep.subr.bf16.mxu0 0
        %3351 = vmatpush2.bf16.msra.mxu0 0
        %3352 = vmatprep.subr.bf16.mxu0 0
        %3353 = vmatpush2.bf16.msra.mxu0 0
        %3354 = vmatprep.mubr.bf16.mxu0 0
        %3355 = vmatmul.mubr.bf16.gmra.mxu0 %v3277
        %v3356 = vpop.f32.mrf.mxu0
        %v3357 = vadd.f32 %v2887, %v3356
        %v3358 = vpop.f32.mrf.mxu0
        %v3359 = vadd.f32 %v2891, %v3358
        %v3360 = vpop.f32.mrf.mxu0
        %v3361 = vadd.f32 %v2887, %v3360
        %v3362 = vpop.f32.mrf.mxu0
        %v3363 = vadd.f32 %v2891, %v3362
        %3364 = vdwg.mxu0
        %3365 = vmatprep.subr.bf16.mxu0 0
        %3366 = vmatpush1.bf16.msra.mxu0 0
        %3367 = vmatprep.subr.bf16.mxu0 0
        %3368 = vmatpush1.bf16.msra.mxu0 0
        %3369 = vmatprep.subr.bf16.mxu0 0
        %3370 = vmatpush1.bf16.msra.mxu0 0
        %3371 = vmatprep.subr.bf16.mxu0 0
        %3372 = vmatpush1.bf16.msra.mxu0 0
        %3373 = vmatprep.subr.bf16.mxu0 %v3201
        %3374 = vmatpush1.bf16.msra.mxu0 %v3200
        %3375 = vmatprep.subr.bf16.mxu0 %v3185
        %3376 = vmatpush1.bf16.msra.mxu0 %v3184
        %3377 = vmatprep.subr.bf16.mxu0 %v3169
        %3378 = vmatpush1.bf16.msra.mxu0 %v3168
        %3379 = vmatprep.subr.bf16.mxu0 %v3153
        %3380 = vmatpush1.bf16.msra.mxu0 %v3152
        %3381 = vmatprep.subr.bf16.mxu0 0
        %3382 = vmatpush2.bf16.msra.mxu0 0
        %3383 = vmatprep.subr.bf16.mxu0 0
        %3384 = vmatpush2.bf16.msra.mxu0 0
        %3385 = vmatprep.subr.bf16.mxu0 0
        %3386 = vmatpush2.bf16.msra.mxu0 0
        %3387 = vmatprep.subr.bf16.mxu0 0
        %3388 = vmatpush2.bf16.msra.mxu0 0
        %3389 = vmatprep.subr.bf16.mxu0 0
        %3390 = vmatpush2.bf16.msra.mxu0 0
        %3391 = vmatprep.subr.bf16.mxu0 0
        %3392 = vmatpush2.bf16.msra.mxu0 0
        %3393 = vmatprep.subr.bf16.mxu0 0
        %3394 = vmatpush2.bf16.msra.mxu0 0
        %3395 = vmatprep.subr.bf16.mxu0 0
        %3396 = vmatpush2.bf16.msra.mxu0 0
        %3397 = vmatprep.mubr.bf16.mxu0 0
        %3398 = vmatmul.mubr.bf16.gmra.mxu0 %v3277
        %v3399 = vpop.f32.mrf.mxu0
        %v3400 = vadd.f32 %v2895, %v3399
        %v3401 = vpop.f32.mrf.mxu0
        %v3402 = vadd.f32 %v2899, %v3401
        %v3403 = vpop.f32.mrf.mxu0
        %v3404 = vadd.f32 %v2895, %v3403
        %v3405 = vpop.f32.mrf.mxu0
        %v3406 = vadd.f32 %v2899, %v3405
        %3407 = vdwg.mxu0
        %3408 = vmatprep.subr.bf16.mxu0 0
        %3409 = vmatpush1.bf16.msra.mxu0 0
        %3410 = vmatprep.subr.bf16.mxu0 0
        %3411 = vmatpush1.bf16.msra.mxu0 0
        %3412 = vmatprep.subr.bf16.mxu0 0
        %3413 = vmatpush1.bf16.msra.mxu0 0
        %3414 = vmatprep.subr.bf16.mxu0 0
        %3415 = vmatpush1.bf16.msra.mxu0 0
        %3416 = vmatprep.subr.bf16.mxu0 %v3203
        %3417 = vmatpush1.bf16.msra.mxu0 %v3202
        %3418 = vmatprep.subr.bf16.mxu0 %v3187
        %3419 = vmatpush1.bf16.msra.mxu0 %v3186
        %3420 = vmatprep.subr.bf16.mxu0 %v3171
        %3421 = vmatpush1.bf16.msra.mxu0 %v3170
        %3422 = vmatprep.subr.bf16.mxu0 %v3155
        %3423 = vmatpush1.bf16.msra.mxu0 %v3154
        %3424 = vmatprep.subr.bf16.mxu0 0
        %3425 = vmatpush2.bf16.msra.mxu0 0
        %3426 = vmatprep.subr.bf16.mxu0 0
        %3427 = vmatpush2.bf16.msra.mxu0 0
        %3428 = vmatprep.subr.bf16.mxu0 0
        %3429 = vmatpush2.bf16.msra.mxu0 0
        %3430 = vmatprep.subr.bf16.mxu0 0
        %3431 = vmatpush2.bf16.msra.mxu0 0
        %3432 = vmatprep.subr.bf16.mxu0 0
        %3433 = vmatpush2.bf16.msra.mxu0 0
        %3434 = vmatprep.subr.bf16.mxu0 0
        %3435 = vmatpush2.bf16.msra.mxu0 0
        %3436 = vmatprep.subr.bf16.mxu0 0
        %3437 = vmatpush2.bf16.msra.mxu0 0
        %3438 = vmatprep.subr.bf16.mxu0 0
        %3439 = vmatpush2.bf16.msra.mxu0 0
        %3440 = vmatprep.mubr.bf16.mxu0 0
        %3441 = vmatmul.mubr.bf16.gmra.mxu0 %v3277
        %v3442 = vpop.f32.mrf.mxu0
        %v3443 = vadd.f32 %v2903, %v3442
        %v3444 = vpop.f32.mrf.mxu0
        %v3445 = vadd.f32 %v2907, %v3444
        %v3446 = vpop.f32.mrf.mxu0
        %v3447 = vadd.f32 %v2903, %v3446
        %v3448 = vpop.f32.mrf.mxu0
        %v3449 = vadd.f32 %v2907, %v3448
        %3450 = vdwg.mxu0
        %3451 = vmatprep.subr.bf16.mxu0 0
        %3452 = vmatpush1.bf16.msra.mxu0 0
        %3453 = vmatprep.subr.bf16.mxu0 0
        %3454 = vmatpush1.bf16.msra.mxu0 0
        %3455 = vmatprep.subr.bf16.mxu0 0
        %3456 = vmatpush1.bf16.msra.mxu0 0
        %3457 = vmatprep.subr.bf16.mxu0 0
        %3458 = vmatpush1.bf16.msra.mxu0 0
        %3459 = vmatprep.subr.bf16.mxu0 %v3205
        %3460 = vmatpush1.bf16.msra.mxu0 %v3204
        %3461 = vmatprep.subr.bf16.mxu0 %v3189
        %3462 = vmatpush1.bf16.msra.mxu0 %v3188
        %3463 = vmatprep.subr.bf16.mxu0 %v3173
        %3464 = vmatpush1.bf16.msra.mxu0 %v3172
        %3465 = vmatprep.subr.bf16.mxu0 %v3157
        %3466 = vmatpush1.bf16.msra.mxu0 %v3156
        %3467 = vmatprep.subr.bf16.mxu0 0
        %3468 = vmatpush2.bf16.msra.mxu0 0
        %3469 = vmatprep.subr.bf16.mxu0 0
        %3470 = vmatpush2.bf16.msra.mxu0 0
        %3471 = vmatprep.subr.bf16.mxu0 0
        %3472 = vmatpush2.bf16.msra.mxu0 0
        %3473 = vmatprep.subr.bf16.mxu0 0
        %3474 = vmatpush2.bf16.msra.mxu0 0
        %3475 = vmatprep.subr.bf16.mxu0 0
        %3476 = vmatpush2.bf16.msra.mxu0 0
        %3477 = vmatprep.subr.bf16.mxu0 0
        %3478 = vmatpush2.bf16.msra.mxu0 0
        %3479 = vmatprep.subr.bf16.mxu0 0
        %3480 = vmatpush2.bf16.msra.mxu0 0
        %3481 = vmatprep.subr.bf16.mxu0 0
        %3482 = vmatpush2.bf16.msra.mxu0 0
        %3483 = vmatprep.mubr.bf16.mxu0 0
        %3484 = vmatmul.mubr.bf16.gmra.mxu0 %v3277
        %v3485 = vpop.f32.mrf.mxu0
        %v3486 = vadd.f32 %v2911, %v3485
        %v3487 = vpop.f32.mrf.mxu0
        %v3488 = vadd.f32 %v2915, %v3487
        %v3489 = vpop.f32.mrf.mxu0
        %v3490 = vadd.f32 %v2911, %v3489
        %v3491 = vpop.f32.mrf.mxu0
        %v3492 = vadd.f32 %v2915, %v3491
        %3493 = vdwg.mxu0
        %3494 = vmatprep.subr.bf16.mxu0 0
        %3495 = vmatpush1.bf16.msra.mxu0 0
        %3496 = vmatprep.subr.bf16.mxu0 0
        %3497 = vmatpush1.bf16.msra.mxu0 0
        %3498 = vmatprep.subr.bf16.mxu0 0
        %3499 = vmatpush1.bf16.msra.mxu0 0
        %3500 = vmatprep.subr.bf16.mxu0 0
        %3501 = vmatpush1.bf16.msra.mxu0 0
        %3502 = vmatprep.subr.bf16.mxu0 %v3207
        %3503 = vmatpush1.bf16.msra.mxu0 %v3206
        %3504 = vmatprep.subr.bf16.mxu0 %v3191
        %3505 = vmatpush1.bf16.msra.mxu0 %v3190
        %3506 = vmatprep.subr.bf16.mxu0 %v3175
        %3507 = vmatpush1.bf16.msra.mxu0 %v3174
        %3508 = vmatprep.subr.bf16.mxu0 %v3159
        %3509 = vmatpush1.bf16.msra.mxu0 %v3158
        %3510 = vmatprep.subr.bf16.mxu0 0
        %3511 = vmatpush2.bf16.msra.mxu0 0
        %3512 = vmatprep.subr.bf16.mxu0 0
        %3513 = vmatpush2.bf16.msra.mxu0 0
        %3514 = vmatprep.subr.bf16.mxu0 0
        %3515 = vmatpush2.bf16.msra.mxu0 0
        %3516 = vmatprep.subr.bf16.mxu0 0
        %3517 = vmatpush2.bf16.msra.mxu0 0
        %3518 = vmatprep.subr.bf16.mxu0 0
        %3519 = vmatpush2.bf16.msra.mxu0 0
        %3520 = vmatprep.subr.bf16.mxu0 0
        %3521 = vmatpush2.bf16.msra.mxu0 0
        %3522 = vmatprep.subr.bf16.mxu0 0
        %3523 = vmatpush2.bf16.msra.mxu0 0
        %3524 = vmatprep.subr.bf16.mxu0 0
        %3525 = vmatpush2.bf16.msra.mxu0 0
        %3526 = vmatprep.mubr.bf16.mxu0 0
        %3527 = vmatmul.mubr.bf16.gmra.mxu0 %v3277
        %v3528 = vpop.f32.mrf.mxu0
        %v3529 = vadd.f32 %v2919, %v3528
        %v3530 = vpop.f32.mrf.mxu0
        %v3531 = vadd.f32 %v2923, %v3530
        %v3532 = vpop.f32.mrf.mxu0
        %v3533 = vadd.f32 %v2919, %v3532
        %v3534 = vpop.f32.mrf.mxu0
        %v3535 = vadd.f32 %v2923, %v3534
        %3536 = vdwg.mxu0
        %3537 = vmatprep.subr.bf16.mxu0 0
        %3538 = vmatpush1.bf16.msra.mxu0 0
        %3539 = vmatprep.subr.bf16.mxu0 0
        %3540 = vmatpush1.bf16.msra.mxu0 0
        %3541 = vmatprep.subr.bf16.mxu0 0
        %3542 = vmatpush1.bf16.msra.mxu0 0
        %3543 = vmatprep.subr.bf16.mxu0 0
        %3544 = vmatpush1.bf16.msra.mxu0 0
        %3545 = vmatprep.subr.bf16.mxu0 %v3209
        %3546 = vmatpush1.bf16.msra.mxu0 %v3208
        %3547 = vmatprep.subr.bf16.mxu0 %v3193
        %3548 = vmatpush1.bf16.msra.mxu0 %v3192
        %3549 = vmatprep.subr.bf16.mxu0 %v3177
        %3550 = vmatpush1.bf16.msra.mxu0 %v3176
        %3551 = vmatprep.subr.bf16.mxu0 %v3161
        %3552 = vmatpush1.bf16.msra.mxu0 %v3160
        %3553 = vmatprep.subr.bf16.mxu0 0
        %3554 = vmatpush2.bf16.msra.mxu0 0
        %3555 = vmatprep.subr.bf16.mxu0 0
        %3556 = vmatpush2.bf16.msra.mxu0 0
        %3557 = vmatprep.subr.bf16.mxu0 0
        %3558 = vmatpush2.bf16.msra.mxu0 0
        %3559 = vmatprep.subr.bf16.mxu0 0
        %3560 = vmatpush2.bf16.msra.mxu0 0
        %3561 = vmatprep.subr.bf16.mxu0 0
        %3562 = vmatpush2.bf16.msra.mxu0 0
        %3563 = vmatprep.subr.bf16.mxu0 0
        %3564 = vmatpush2.bf16.msra.mxu0 0
        %3565 = vmatprep.subr.bf16.mxu0 0
        %3566 = vmatpush2.bf16.msra.mxu0 0
        %3567 = vmatprep.subr.bf16.mxu0 0
        %3568 = vmatpush2.bf16.msra.mxu0 0
        %3569 = vmatprep.mubr.bf16.mxu0 0
        %3570 = vmatmul.mubr.bf16.gmra.mxu0 %v3277
        %v3571 = vpop.f32.mrf.mxu0
        %v3572 = vadd.f32 %v2927, %v3571
        %v3573 = vpop.f32.mrf.mxu0
        %v3574 = vadd.f32 %v2931, %v3573
        %v3575 = vpop.f32.mrf.mxu0
        %v3576 = vadd.f32 %v2927, %v3575
        %v3577 = vpop.f32.mrf.mxu0
        %v3578 = vadd.f32 %v2931, %v3577
        %3579 = vdwg.mxu0
        %3580 = vmatprep.subr.bf16.mxu0 0
        %3581 = vmatpush1.bf16.msra.mxu0 0
        %3582 = vmatprep.subr.bf16.mxu0 0
        %3583 = vmatpush1.bf16.msra.mxu0 0
        %3584 = vmatprep.subr.bf16.mxu0 0
        %3585 = vmatpush1.bf16.msra.mxu0 0
        %3586 = vmatprep.subr.bf16.mxu0 0
        %3587 = vmatpush1.bf16.msra.mxu0 0
        %3588 = vmatprep.subr.bf16.mxu0 %v3211
        %3589 = vmatpush1.bf16.msra.mxu0 %v3210
        %3590 = vmatprep.subr.bf16.mxu0 %v3195
        %3591 = vmatpush1.bf16.msra.mxu0 %v3194
        %3592 = vmatprep.subr.bf16.mxu0 %v3179
        %3593 = vmatpush1.bf16.msra.mxu0 %v3178
        %3594 = vmatprep.subr.bf16.mxu0 %v3163
        %3595 = vmatpush1.bf16.msra.mxu0 %v3162
        %3596 = vmatprep.subr.bf16.mxu0 0
        %3597 = vmatpush2.bf16.msra.mxu0 0
        %3598 = vmatprep.subr.bf16.mxu0 0
        %3599 = vmatpush2.bf16.msra.mxu0 0
        %3600 = vmatprep.subr.bf16.mxu0 0
        %3601 = vmatpush2.bf16.msra.mxu0 0
        %3602 = vmatprep.subr.bf16.mxu0 0
        %3603 = vmatpush2.bf16.msra.mxu0 0
        %3604 = vmatprep.subr.bf16.mxu0 0
        %3605 = vmatpush2.bf16.msra.mxu0 0
        %3606 = vmatprep.subr.bf16.mxu0 0
        %3607 = vmatpush2.bf16.msra.mxu0 0
        %3608 = vmatprep.subr.bf16.mxu0 0
        %3609 = vmatpush2.bf16.msra.mxu0 0
        %3610 = vmatprep.subr.bf16.mxu0 0
        %3611 = vmatpush2.bf16.msra.mxu0 0
        %3612 = vmatprep.mubr.bf16.mxu0 0
        %3613 = vmatmul.mubr.bf16.gmra.mxu0 %v3277
        %v3614 = vpop.f32.mrf.mxu0
        %v3615 = vadd.f32 %v2935, %v3614
        %v3616 = vpop.f32.mrf.mxu0
        %v3617 = vadd.f32 %v2939, %v3616
        %v3618 = vpop.f32.mrf.mxu0
        %v3619 = vadd.f32 %v2935, %v3618
        %v3620 = vpop.f32.mrf.mxu0
        %v3621 = vadd.f32 %v2939, %v3620
        %3622 = vdwg.mxu0
        %v3623 = vmax.f32 %v3314, 0.0
        %v3624 = vmax.f32 %v3316, 0.0
        %v3625 = vmax.f32 %v3357, 0.0
        %v3626 = vmax.f32 %v3359, 0.0
        %v3627 = vmax.f32 %v3400, 0.0
        %v3628 = vmax.f32 %v3402, 0.0
        %v3629 = vmax.f32 %v3443, 0.0
        %v3630 = vmax.f32 %v3445, 0.0
        %v3631 = vmax.f32 %v3486, 0.0
        %v3632 = vmax.f32 %v3488, 0.0
        %v3633 = vmax.f32 %v3529, 0.0
        %v3634 = vmax.f32 %v3531, 0.0
        %v3635 = vmax.f32 %v3572, 0.0
        %v3636 = vmax.f32 %v3574, 0.0
        %v3637 = vmax.f32 %v3615, 0.0
        %v3638 = vmax.f32 %v3617, 0.0
        %v3639 = vmax.f32 %v3318, 0.0
        %v3640 = vmax.f32 %v3320, 0.0
        %v3641 = vmax.f32 %v3361, 0.0
        %v3642 = vmax.f32 %v3363, 0.0
        %v3643 = vmax.f32 %v3404, 0.0
        %v3644 = vmax.f32 %v3406, 0.0
        %v3645 = vmax.f32 %v3447, 0.0
        %v3646 = vmax.f32 %v3449, 0.0
        %v3647 = vmax.f32 %v3490, 0.0
        %v3648 = vmax.f32 %v3492, 0.0
        %v3649 = vmax.f32 %v3533, 0.0
        %v3650 = vmax.f32 %v3535, 0.0
        %v3651 = vmax.f32 %v3576, 0.0
        %v3652 = vmax.f32 %v3578, 0.0
        %v3653 = vmax.f32 %v3619, 0.0
        %v3654 = vmax.f32 %v3621, 0.0
        %v3655 = vpack.c.bf16 %v3639, %v3623
        %v3656 = vpack.c.bf16 %v3640, %v3624
        %v3657 = vpack.c.bf16 %v3641, %v3625
        %v3658 = vpack.c.bf16 %v3642, %v3626
        %v3659 = vpack.c.bf16 %v3643, %v3627
        %v3660 = vpack.c.bf16 %v3644, %v3628
        %v3661 = vpack.c.bf16 %v3645, %v3629
        %v3662 = vpack.c.bf16 %v3646, %v3630
        %v3663 = vpack.c.bf16 %v3647, %v3631
        %v3664 = vpack.c.bf16 %v3648, %v3632
        %v3665 = vpack.c.bf16 %v3649, %v3633
        %v3666 = vpack.c.bf16 %v3650, %v3634
        %v3667 = vpack.c.bf16 %v3651, %v3635
        %v3668 = vpack.c.bf16 %v3652, %v3636
        %v3669 = vpack.c.bf16 %v3653, %v3637
        %v3670 = vpack.c.bf16 %v3654, %v3638
        %v3671 = vld [vmem:[%s980] sm:$0xf]
        %v3672 = vld [vmem:[%s980 + $0x4] sm:$0xf]
        %v3673 = vld [vmem:[%s980 + $0x8] sm:$0xf]
        %v3674 = vld [vmem:[%s980 + $0xc] sm:$0xf]
        %v3675 = vld [vmem:[%s980 + $0x10] sm:$0xf]
        %v3676 = vld [vmem:[%s980 + $0x14] sm:$0xf]
        %v3677 = vld [vmem:[%s980 + $0x18] sm:$0xf]
        %v3678 = vld [vmem:[%s980 + $0x1c] sm:$0xf]
        %v3679 = vld [vmem:[%s980 + $0x20] sm:$0xf]
        %v3680 = vld [vmem:[%s980 + $0x24] sm:$0xf]
        %v3681 = vld [vmem:[%s980 + $0x28] sm:$0xf]
        %v3682 = vld [vmem:[%s980 + $0x2c] sm:$0xf]
        %v3683 = vld [vmem:[%s980 + $0x30] sm:$0xf]
        %v3684 = vld [vmem:[%s980 + $0x34] sm:$0xf]
        %v3685 = vld [vmem:[%s980 + $0x38] sm:$0xf]
        %v3686 = vld [vmem:[%s980 + $0x3c] sm:$0xf]
        %v3687 = vld [vmem:[%s980 + $0x40] sm:$0xf]
        %v3688 = vld [vmem:[%s980 + $0x44] sm:$0xf]
        %v3689 = vld [vmem:[%s980 + $0x48] sm:$0xf]
        %v3690 = vld [vmem:[%s980 + $0x4c] sm:$0xf]
        %v3691 = vld [vmem:[%s980 + $0x50] sm:$0xf]
        %v3692 = vld [vmem:[%s980 + $0x54] sm:$0xf]
        %v3693 = vld [vmem:[%s980 + $0x58] sm:$0xf]
        %v3694 = vld [vmem:[%s980 + $0x5c] sm:$0xf]
        %v3695 = vld [vmem:[%s980 + $0x60] sm:$0xf]
        %v3696 = vld [vmem:[%s980 + $0x64] sm:$0xf]
        %v3697 = vld [vmem:[%s980 + $0x68] sm:$0xf]
        %v3698 = vld [vmem:[%s980 + $0x6c] sm:$0xf]
        %v3699 = vld [vmem:[%s980 + $0x70] sm:$0xf]
        %v3700 = vld [vmem:[%s980 + $0x74] sm:$0xf]
        %v3701 = vld [vmem:[%s980 + $0x78] sm:$0xf]
        %v3702 = vld [vmem:[%s980 + $0x7c] sm:$0xf]
        %v3703 = vld [vmem:[%s980 + $0x80] sm:$0xf]
        %v3704 = vld [vmem:[%s980 + $0x84] sm:$0xf]
        %v3705 = vld [vmem:[%s980 + $0x88] sm:$0xf]
        %v3706 = vld [vmem:[%s980 + $0x8c] sm:$0xf]
        %v3707 = vld [vmem:[%s980 + $0x90] sm:$0xf]
        %v3708 = vld [vmem:[%s980 + $0x94] sm:$0xf]
        %v3709 = vld [vmem:[%s980 + $0x98] sm:$0xf]
        %v3710 = vld [vmem:[%s980 + $0x9c] sm:$0xf]
        %v3711 = vld [vmem:[%s980 + $0xa0] sm:$0xf]
        %v3712 = vld [vmem:[%s980 + $0xa4] sm:$0xf]
        %v3713 = vld [vmem:[%s980 + $0xa8] sm:$0xf]
        %v3714 = vld [vmem:[%s980 + $0xac] sm:$0xf]
        %v3715 = vld [vmem:[%s980 + $0xb0] sm:$0xf]
        %v3716 = vld [vmem:[%s980 + $0xb4] sm:$0xf]
        %v3717 = vld [vmem:[%s980 + $0xb8] sm:$0xf]
        %v3718 = vld [vmem:[%s980 + $0xbc] sm:$0xf]
        %v3719 = vld [vmem:[%s980 + $0xc0] sm:$0xf]
        %v3720 = vld [vmem:[%s980 + $0xc4] sm:$0xf]
        %v3721 = vld [vmem:[%s980 + $0xc8] sm:$0xf]
        %v3722 = vld [vmem:[%s980 + $0xcc] sm:$0xf]
        %v3723 = vld [vmem:[%s980 + $0xd0] sm:$0xf]
        %v3724 = vld [vmem:[%s980 + $0xd4] sm:$0xf]
        %v3725 = vld [vmem:[%s980 + $0xd8] sm:$0xf]
        %v3726 = vld [vmem:[%s980 + $0xdc] sm:$0xf]
        %v3727 = vld [vmem:[%s980 + $0xe0] sm:$0xf]
        %v3728 = vld [vmem:[%s980 + $0xe4] sm:$0xf]
        %v3729 = vld [vmem:[%s980 + $0xe8] sm:$0xf]
        %v3730 = vld [vmem:[%s980 + $0xec] sm:$0xf]
        %v3731 = vld [vmem:[%s980 + $0xf0] sm:$0xf]
        %v3732 = vld [vmem:[%s980 + $0xf4] sm:$0xf]
        %v3733 = vld [vmem:[%s980 + $0xf8] sm:$0xf]
        %v3734 = vld [vmem:[%s980 + $0xfc] sm:$0xf]
        %v3735 = vld [vmem:[%s980 + $0x100] sm:$0xf]
        %v3736 = vld [vmem:[%s980 + $0x104] sm:$0xf]
        %v3737 = vld [vmem:[%s980 + $0x108] sm:$0xf]
        %v3738 = vld [vmem:[%s980 + $0x10c] sm:$0xf]
        %v3739 = vld [vmem:[%s980 + $0x110] sm:$0xf]
        %v3740 = vld [vmem:[%s980 + $0x114] sm:$0xf]
        %v3741 = vld [vmem:[%s980 + $0x118] sm:$0xf]
        %v3742 = vld [vmem:[%s980 + $0x11c] sm:$0xf]
        %v3743 = vld [vmem:[%s980 + $0x120] sm:$0xf]
        %v3744 = vld [vmem:[%s980 + $0x124] sm:$0xf]
        %v3745 = vld [vmem:[%s980 + $0x128] sm:$0xf]
        %v3746 = vld [vmem:[%s980 + $0x12c] sm:$0xf]
        %v3747 = vld [vmem:[%s980 + $0x130] sm:$0xf]
        %v3748 = vld [vmem:[%s980 + $0x134] sm:$0xf]
        %v3749 = vld [vmem:[%s980 + $0x138] sm:$0xf]
        %v3750 = vld [vmem:[%s980 + $0x13c] sm:$0xf]
        %v3751 = vld [vmem:[%s980 + $0x140] sm:$0xf]
        %v3752 = vld [vmem:[%s980 + $0x144] sm:$0xf]
        %v3753 = vld [vmem:[%s980 + $0x148] sm:$0xf]
        %v3754 = vld [vmem:[%s980 + $0x14c] sm:$0xf]
        %v3755 = vld [vmem:[%s980 + $0x150] sm:$0xf]
        %v3756 = vld [vmem:[%s980 + $0x154] sm:$0xf]
        %v3757 = vld [vmem:[%s980 + $0x158] sm:$0xf]
        %v3758 = vld [vmem:[%s980 + $0x15c] sm:$0xf]
        %v3759 = vld [vmem:[%s980 + $0x160] sm:$0xf]
        %v3760 = vld [vmem:[%s980 + $0x164] sm:$0xf]
        %v3761 = vld [vmem:[%s980 + $0x168] sm:$0xf]
        %v3762 = vld [vmem:[%s980 + $0x16c] sm:$0xf]
        %v3763 = vld [vmem:[%s980 + $0x170] sm:$0xf]
        %v3764 = vld [vmem:[%s980 + $0x174] sm:$0xf]
        %v3765 = vld [vmem:[%s980 + $0x178] sm:$0xf]
        %v3766 = vld [vmem:[%s980 + $0x17c] sm:$0xf]
        %v3767 = vld [vmem:[%s980 + $0x180] sm:$0xf]
        %v3768 = vld [vmem:[%s980 + $0x184] sm:$0xf]
        %v3769 = vld [vmem:[%s980 + $0x188] sm:$0xf]
        %v3770 = vld [vmem:[%s980 + $0x18c] sm:$0xf]
        %v3771 = vld [vmem:[%s980 + $0x190] sm:$0xf]
        %v3772 = vld [vmem:[%s980 + $0x194] sm:$0xf]
        %v3773 = vld [vmem:[%s980 + $0x198] sm:$0xf]
        %v3774 = vld [vmem:[%s980 + $0x19c] sm:$0xf]
        %v3775 = vld [vmem:[%s980 + $0x1a0] sm:$0xf]
        %v3776 = vld [vmem:[%s980 + $0x1a4] sm:$0xf]
        %v3777 = vld [vmem:[%s980 + $0x1a8] sm:$0xf]
        %v3778 = vld [vmem:[%s980 + $0x1ac] sm:$0xf]
        %v3779 = vld [vmem:[%s980 + $0x1b0] sm:$0xf]
        %v3780 = vld [vmem:[%s980 + $0x1b4] sm:$0xf]
        %v3781 = vld [vmem:[%s980 + $0x1b8] sm:$0xf]
        %v3782 = vld [vmem:[%s980 + $0x1bc] sm:$0xf]
        %v3783 = vld [vmem:[%s980 + $0x1c0] sm:$0xf]
        %v3784 = vld [vmem:[%s980 + $0x1c4] sm:$0xf]
        %v3785 = vld [vmem:[%s980 + $0x1c8] sm:$0xf]
        %v3786 = vld [vmem:[%s980 + $0x1cc] sm:$0xf]
        %v3787 = vld [vmem:[%s980 + $0x1d0] sm:$0xf]
        %v3788 = vld [vmem:[%s980 + $0x1d4] sm:$0xf]
        %v3789 = vld [vmem:[%s980 + $0x1d8] sm:$0xf]
        %v3790 = vld [vmem:[%s980 + $0x1dc] sm:$0xf]
        %v3791 = vld [vmem:[%s980 + $0x1e0] sm:$0xf]
        %v3792 = vld [vmem:[%s980 + $0x1e4] sm:$0xf]
        %v3793 = vld [vmem:[%s980 + $0x1e8] sm:$0xf]
        %v3794 = vld [vmem:[%s980 + $0x1ec] sm:$0xf]
        %v3795 = vld [vmem:[%s980 + $0x1f0] sm:$0xf]
        %v3796 = vld [vmem:[%s980 + $0x1f4] sm:$0xf]
        %v3797 = vld [vmem:[%s980 + $0x1f8] sm:$0xf]
        %v3798 = vld [vmem:[%s980 + $0x1fc] sm:$0xf]
        %v3799 = vld [vmem:[%s980 + $0x200] sm:$0xf]
        %v3800 = vld [vmem:[%s980 + $0x204] sm:$0xf]
        %v3801 = vld [vmem:[%s980 + $0x208] sm:$0xf]
        %v3802 = vld [vmem:[%s980 + $0x20c] sm:$0xf]
        %v3803 = vld [vmem:[%s980 + $0x210] sm:$0xf]
        %v3804 = vld [vmem:[%s980 + $0x214] sm:$0xf]
        %v3805 = vld [vmem:[%s980 + $0x218] sm:$0xf]
        %v3806 = vld [vmem:[%s980 + $0x21c] sm:$0xf]
        %v3807 = vld [vmem:[%s980 + $0x220] sm:$0xf]
        %v3808 = vld [vmem:[%s980 + $0x224] sm:$0xf]
        %v3809 = vld [vmem:[%s980 + $0x228] sm:$0xf]
        %v3810 = vld [vmem:[%s980 + $0x22c] sm:$0xf]
        %v3811 = vld [vmem:[%s980 + $0x230] sm:$0xf]
        %v3812 = vld [vmem:[%s980 + $0x234] sm:$0xf]
        %v3813 = vld [vmem:[%s980 + $0x238] sm:$0xf]
        %v3814 = vld [vmem:[%s980 + $0x23c] sm:$0xf]
        %v3815 = vld [vmem:[%s980 + $0x240] sm:$0xf]
        %v3816 = vld [vmem:[%s980 + $0x244] sm:$0xf]
        %v3817 = vld [vmem:[%s980 + $0x248] sm:$0xf]
        %v3818 = vld [vmem:[%s980 + $0x24c] sm:$0xf]
        %v3819 = vld [vmem:[%s980 + $0x250] sm:$0xf]
        %v3820 = vld [vmem:[%s980 + $0x254] sm:$0xf]
        %v3821 = vld [vmem:[%s980 + $0x258] sm:$0xf]
        %v3822 = vld [vmem:[%s980 + $0x25c] sm:$0xf]
        %v3823 = vld [vmem:[%s980 + $0x260] sm:$0xf]
        %v3824 = vld [vmem:[%s980 + $0x264] sm:$0xf]
        %v3825 = vld [vmem:[%s980 + $0x268] sm:$0xf]
        %v3826 = vld [vmem:[%s980 + $0x26c] sm:$0xf]
        %v3827 = vld [vmem:[%s980 + $0x270] sm:$0xf]
        %v3828 = vld [vmem:[%s980 + $0x274] sm:$0xf]
        %v3829 = vld [vmem:[%s980 + $0x278] sm:$0xf]
        %v3830 = vld [vmem:[%s980 + $0x27c] sm:$0xf]
        %v3831 = vld [vmem:[%s980 + $0x280] sm:$0xf]
        %v3832 = vld [vmem:[%s980 + $0x284] sm:$0xf]
        %v3833 = vld [vmem:[%s980 + $0x288] sm:$0xf]
        %v3834 = vld [vmem:[%s980 + $0x28c] sm:$0xf]
        %v3835 = vld [vmem:[%s980 + $0x290] sm:$0xf]
        %v3836 = vld [vmem:[%s980 + $0x294] sm:$0xf]
        %v3837 = vld [vmem:[%s980 + $0x298] sm:$0xf]
        %v3838 = vld [vmem:[%s980 + $0x29c] sm:$0xf]
        %v3839 = vld [vmem:[%s980 + $0x2a0] sm:$0xf]
        %v3840 = vld [vmem:[%s980 + $0x2a4] sm:$0xf]
        %v3841 = vld [vmem:[%s980 + $0x2a8] sm:$0xf]
        %v3842 = vld [vmem:[%s980 + $0x2ac] sm:$0xf]
        %v3843 = vld [vmem:[%s980 + $0x2b0] sm:$0xf]
        %v3844 = vld [vmem:[%s980 + $0x2b4] sm:$0xf]
        %v3845 = vld [vmem:[%s980 + $0x2b8] sm:$0xf]
        %v3846 = vld [vmem:[%s980 + $0x2bc] sm:$0xf]
        %v3847 = vld [vmem:[%s980 + $0x2c0] sm:$0xf]
        %v3848 = vld [vmem:[%s980 + $0x2c4] sm:$0xf]
        %v3849 = vld [vmem:[%s980 + $0x2c8] sm:$0xf]
        %v3850 = vld [vmem:[%s980 + $0x2cc] sm:$0xf]
        %v3851 = vld [vmem:[%s980 + $0x2d0] sm:$0xf]
        %v3852 = vld [vmem:[%s980 + $0x2d4] sm:$0xf]
        %v3853 = vld [vmem:[%s980 + $0x2d8] sm:$0xf]
        %v3854 = vld [vmem:[%s980 + $0x2dc] sm:$0xf]
        %v3855 = vld [vmem:[%s980 + $0x2e0] sm:$0xf]
        %v3856 = vld [vmem:[%s980 + $0x2e4] sm:$0xf]
        %v3857 = vld [vmem:[%s980 + $0x2e8] sm:$0xf]
        %v3858 = vld [vmem:[%s980 + $0x2ec] sm:$0xf]
        %v3859 = vld [vmem:[%s980 + $0x2f0] sm:$0xf]
        %v3860 = vld [vmem:[%s980 + $0x2f4] sm:$0xf]
        %v3861 = vld [vmem:[%s980 + $0x2f8] sm:$0xf]
        %v3862 = vld [vmem:[%s980 + $0x2fc] sm:$0xf]
        %v3863 = vld [vmem:[%s980 + $0x300] sm:$0xf]
        %v3864 = vld [vmem:[%s980 + $0x304] sm:$0xf]
        %v3865 = vld [vmem:[%s980 + $0x308] sm:$0xf]
        %v3866 = vld [vmem:[%s980 + $0x30c] sm:$0xf]
        %v3867 = vld [vmem:[%s980 + $0x310] sm:$0xf]
        %v3868 = vld [vmem:[%s980 + $0x314] sm:$0xf]
        %v3869 = vld [vmem:[%s980 + $0x318] sm:$0xf]
        %v3870 = vld [vmem:[%s980 + $0x31c] sm:$0xf]
        %v3871 = vld [vmem:[%s980 + $0x320] sm:$0xf]
        %v3872 = vld [vmem:[%s980 + $0x324] sm:$0xf]
        %v3873 = vld [vmem:[%s980 + $0x328] sm:$0xf]
        %v3874 = vld [vmem:[%s980 + $0x32c] sm:$0xf]
        %v3875 = vld [vmem:[%s980 + $0x330] sm:$0xf]
        %v3876 = vld [vmem:[%s980 + $0x334] sm:$0xf]
        %v3877 = vld [vmem:[%s980 + $0x338] sm:$0xf]
        %v3878 = vld [vmem:[%s980 + $0x33c] sm:$0xf]
        %v3879 = vld [vmem:[%s980 + $0x340] sm:$0xf]
        %v3880 = vld [vmem:[%s980 + $0x344] sm:$0xf]
        %v3881 = vld [vmem:[%s980 + $0x348] sm:$0xf]
        %v3882 = vld [vmem:[%s980 + $0x34c] sm:$0xf]
        %v3883 = vld [vmem:[%s980 + $0x350] sm:$0xf]
        %v3884 = vld [vmem:[%s980 + $0x354] sm:$0xf]
        %v3885 = vld [vmem:[%s980 + $0x358] sm:$0xf]
        %v3886 = vld [vmem:[%s980 + $0x35c] sm:$0xf]
        %v3887 = vld [vmem:[%s980 + $0x360] sm:$0xf]
        %v3888 = vld [vmem:[%s980 + $0x364] sm:$0xf]
        %v3889 = vld [vmem:[%s980 + $0x368] sm:$0xf]
        %v3890 = vld [vmem:[%s980 + $0x36c] sm:$0xf]
        %v3891 = vld [vmem:[%s980 + $0x370] sm:$0xf]
        %v3892 = vld [vmem:[%s980 + $0x374] sm:$0xf]
        %v3893 = vld [vmem:[%s980 + $0x378] sm:$0xf]
        %v3894 = vld [vmem:[%s980 + $0x37c] sm:$0xf]
        %v3895 = vld [vmem:[%s980 + $0x380] sm:$0xf]
        %v3896 = vld [vmem:[%s980 + $0x384] sm:$0xf]
        %v3897 = vld [vmem:[%s980 + $0x388] sm:$0xf]
        %v3898 = vld [vmem:[%s980 + $0x38c] sm:$0xf]
        %v3899 = vld [vmem:[%s980 + $0x390] sm:$0xf]
        %v3900 = vld [vmem:[%s980 + $0x394] sm:$0xf]
        %v3901 = vld [vmem:[%s980 + $0x398] sm:$0xf]
        %v3902 = vld [vmem:[%s980 + $0x39c] sm:$0xf]
        %v3903 = vld [vmem:[%s980 + $0x3a0] sm:$0xf]
        %v3904 = vld [vmem:[%s980 + $0x3a4] sm:$0xf]
        %v3905 = vld [vmem:[%s980 + $0x3a8] sm:$0xf]
        %v3906 = vld [vmem:[%s980 + $0x3ac] sm:$0xf]
        %v3907 = vld [vmem:[%s980 + $0x3b0] sm:$0xf]
        %v3908 = vld [vmem:[%s980 + $0x3b4] sm:$0xf]
        %v3909 = vld [vmem:[%s980 + $0x3b8] sm:$0xf]
        %v3910 = vld [vmem:[%s980 + $0x3bc] sm:$0xf]
        %v3911 = vld [vmem:[%s980 + $0x3c0] sm:$0xf]
        %v3912 = vld [vmem:[%s980 + $0x3c4] sm:$0xf]
        %v3913 = vld [vmem:[%s980 + $0x3c8] sm:$0xf]
        %v3914 = vld [vmem:[%s980 + $0x3cc] sm:$0xf]
        %v3915 = vld [vmem:[%s980 + $0x3d0] sm:$0xf]
        %v3916 = vld [vmem:[%s980 + $0x3d4] sm:$0xf]
        %v3917 = vld [vmem:[%s980 + $0x3d8] sm:$0xf]
        %v3918 = vld [vmem:[%s980 + $0x3dc] sm:$0xf]
        %v3919 = vld [vmem:[%s980 + $0x3e0] sm:$0xf]
        %v3920 = vld [vmem:[%s980 + $0x3e4] sm:$0xf]
        %v3921 = vld [vmem:[%s980 + $0x3e8] sm:$0xf]
        %v3922 = vld [vmem:[%s980 + $0x3ec] sm:$0xf]
        %v3923 = vld [vmem:[%s980 + $0x3f0] sm:$0xf]
        %v3924 = vld [vmem:[%s980 + $0x3f4] sm:$0xf]
        %v3925 = vld [vmem:[%s980 + $0x3f8] sm:$0xf]
        %v3926 = vld [vmem:[%s980 + $0x3fc] sm:$0xf]
        %v3927 = vld [vmem:[%s983] sm:$0x1]
        %v3929 = vlaneseq
        %v3930 = vshrl.u32 %v3929, 7
        %v3931 = vsub.s32 0, %v3930
        %v3932 = vrot.slane %v3927, %v3931
        %v4190 = vunpack.c.l.b16 %v3671
        %v4191 = vunpack.c.l.b16 %v3672
        %v4192 = vunpack.c.l.b16 %v3673
        %v4193 = vunpack.c.l.b16 %v3674
        %v4194 = vunpack.c.l.b16 %v3675
        %v4195 = vunpack.c.l.b16 %v3676
        %v4196 = vunpack.c.l.b16 %v3677
        %v4197 = vunpack.c.l.b16 %v3678
        %v4198 = vunpack.c.l.b16 %v3679
        %v4199 = vunpack.c.l.b16 %v3680
        %v4200 = vunpack.c.l.b16 %v3681
        %v4201 = vunpack.c.l.b16 %v3682
        %v4202 = vunpack.c.l.b16 %v3683
        %v4203 = vunpack.c.l.b16 %v3684
        %v4204 = vunpack.c.l.b16 %v3685
        %v4205 = vunpack.c.l.b16 %v3686
        %v4206 = vunpack.c.l.b16 %v3687
        %v4207 = vunpack.c.l.b16 %v3688
        %v4208 = vunpack.c.l.b16 %v3689
        %v4209 = vunpack.c.l.b16 %v3690
        %v4210 = vunpack.c.l.b16 %v3691
        %v4211 = vunpack.c.l.b16 %v3692
        %v4212 = vunpack.c.l.b16 %v3693
        %v4213 = vunpack.c.l.b16 %v3694
        %v4214 = vunpack.c.l.b16 %v3695
        %v4215 = vunpack.c.l.b16 %v3696
        %v4216 = vunpack.c.l.b16 %v3697
        %v4217 = vunpack.c.l.b16 %v3698
        %v4218 = vunpack.c.l.b16 %v3699
        %v4219 = vunpack.c.l.b16 %v3700
        %v4220 = vunpack.c.l.b16 %v3701
        %v4221 = vunpack.c.l.b16 %v3702
        %v4222 = vunpack.c.l.b16 %v3703
        %v4223 = vunpack.c.l.b16 %v3704
        %v4224 = vunpack.c.l.b16 %v3705
        %v4225 = vunpack.c.l.b16 %v3706
        %v4226 = vunpack.c.l.b16 %v3707
        %v4227 = vunpack.c.l.b16 %v3708
        %v4228 = vunpack.c.l.b16 %v3709
        %v4229 = vunpack.c.l.b16 %v3710
        %v4230 = vunpack.c.l.b16 %v3711
        %v4231 = vunpack.c.l.b16 %v3712
        %v4232 = vunpack.c.l.b16 %v3713
        %v4233 = vunpack.c.l.b16 %v3714
        %v4234 = vunpack.c.l.b16 %v3715
        %v4235 = vunpack.c.l.b16 %v3716
        %v4236 = vunpack.c.l.b16 %v3717
        %v4237 = vunpack.c.l.b16 %v3718
        %v4238 = vunpack.c.l.b16 %v3719
        %v4239 = vunpack.c.l.b16 %v3720
        %v4240 = vunpack.c.l.b16 %v3721
        %v4241 = vunpack.c.l.b16 %v3722
        %v4242 = vunpack.c.l.b16 %v3723
        %v4243 = vunpack.c.l.b16 %v3724
        %v4244 = vunpack.c.l.b16 %v3725
        %v4245 = vunpack.c.l.b16 %v3726
        %v4246 = vunpack.c.l.b16 %v3727
        %v4247 = vunpack.c.l.b16 %v3728
        %v4248 = vunpack.c.l.b16 %v3729
        %v4249 = vunpack.c.l.b16 %v3730
        %v4250 = vunpack.c.l.b16 %v3731
        %v4251 = vunpack.c.l.b16 %v3732
        %v4252 = vunpack.c.l.b16 %v3733
        %v4253 = vunpack.c.l.b16 %v3734
        %v4254 = vunpack.c.l.b16 %v3735
        %v4255 = vunpack.c.l.b16 %v3736
        %v4256 = vunpack.c.l.b16 %v3737
        %v4257 = vunpack.c.l.b16 %v3738
        %v4258 = vunpack.c.l.b16 %v3739
        %v4259 = vunpack.c.l.b16 %v3740
        %v4260 = vunpack.c.l.b16 %v3741
        %v4261 = vunpack.c.l.b16 %v3742
        %v4262 = vunpack.c.l.b16 %v3743
        %v4263 = vunpack.c.l.b16 %v3744
        %v4264 = vunpack.c.l.b16 %v3745
        %v4265 = vunpack.c.l.b16 %v3746
        %v4266 = vunpack.c.l.b16 %v3747
        %v4267 = vunpack.c.l.b16 %v3748
        %v4268 = vunpack.c.l.b16 %v3749
        %v4269 = vunpack.c.l.b16 %v3750
        %v4270 = vunpack.c.l.b16 %v3751
        %v4271 = vunpack.c.l.b16 %v3752
        %v4272 = vunpack.c.l.b16 %v3753
        %v4273 = vunpack.c.l.b16 %v3754
        %v4274 = vunpack.c.l.b16 %v3755
        %v4275 = vunpack.c.l.b16 %v3756
        %v4276 = vunpack.c.l.b16 %v3757
        %v4277 = vunpack.c.l.b16 %v3758
        %v4278 = vunpack.c.l.b16 %v3759
        %v4279 = vunpack.c.l.b16 %v3760
        %v4280 = vunpack.c.l.b16 %v3761
        %v4281 = vunpack.c.l.b16 %v3762
        %v4282 = vunpack.c.l.b16 %v3763
        %v4283 = vunpack.c.l.b16 %v3764
        %v4284 = vunpack.c.l.b16 %v3765
        %v4285 = vunpack.c.l.b16 %v3766
        %v4286 = vunpack.c.l.b16 %v3767
        %v4287 = vunpack.c.l.b16 %v3768
        %v4288 = vunpack.c.l.b16 %v3769
        %v4289 = vunpack.c.l.b16 %v3770
        %v4290 = vunpack.c.l.b16 %v3771
        %v4291 = vunpack.c.l.b16 %v3772
        %v4292 = vunpack.c.l.b16 %v3773
        %v4293 = vunpack.c.l.b16 %v3774
        %v4294 = vunpack.c.l.b16 %v3775
        %v4295 = vunpack.c.l.b16 %v3776
        %v4296 = vunpack.c.l.b16 %v3777
        %v4297 = vunpack.c.l.b16 %v3778
        %v4298 = vunpack.c.l.b16 %v3779
        %v4299 = vunpack.c.l.b16 %v3780
        %v4300 = vunpack.c.l.b16 %v3781
        %v4301 = vunpack.c.l.b16 %v3782
        %v4302 = vunpack.c.l.b16 %v3783
        %v4303 = vunpack.c.l.b16 %v3784
        %v4304 = vunpack.c.l.b16 %v3785
        %v4305 = vunpack.c.l.b16 %v3786
        %v4306 = vunpack.c.l.b16 %v3787
        %v4307 = vunpack.c.l.b16 %v3788
        %v4308 = vunpack.c.l.b16 %v3789
        %v4309 = vunpack.c.l.b16 %v3790
        %v4310 = vunpack.c.l.b16 %v3791
        %v4311 = vunpack.c.l.b16 %v3792
        %v4312 = vunpack.c.l.b16 %v3793
        %v4313 = vunpack.c.l.b16 %v3794
        %v4314 = vunpack.c.l.b16 %v3795
        %v4315 = vunpack.c.l.b16 %v3796
        %v4316 = vunpack.c.l.b16 %v3797
        %v4317 = vunpack.c.l.b16 %v3798
        %v4318 = vunpack.c.l.b16 %v3799
        %v4319 = vunpack.c.l.b16 %v3800
        %v4320 = vunpack.c.l.b16 %v3801
        %v4321 = vunpack.c.l.b16 %v3802
        %v4322 = vunpack.c.l.b16 %v3803
        %v4323 = vunpack.c.l.b16 %v3804
        %v4324 = vunpack.c.l.b16 %v3805
        %v4325 = vunpack.c.l.b16 %v3806
        %v4326 = vunpack.c.l.b16 %v3807
        %v4327 = vunpack.c.l.b16 %v3808
        %v4328 = vunpack.c.l.b16 %v3809
        %v4329 = vunpack.c.l.b16 %v3810
        %v4330 = vunpack.c.l.b16 %v3811
        %v4331 = vunpack.c.l.b16 %v3812
        %v4332 = vunpack.c.l.b16 %v3813
        %v4333 = vunpack.c.l.b16 %v3814
        %v4334 = vunpack.c.l.b16 %v3815
        %v4335 = vunpack.c.l.b16 %v3816
        %v4336 = vunpack.c.l.b16 %v3817
        %v4337 = vunpack.c.l.b16 %v3818
        %v4338 = vunpack.c.l.b16 %v3819
        %v4339 = vunpack.c.l.b16 %v3820
        %v4340 = vunpack.c.l.b16 %v3821
        %v4341 = vunpack.c.l.b16 %v3822
        %v4342 = vunpack.c.l.b16 %v3823
        %v4343 = vunpack.c.l.b16 %v3824
        %v4344 = vunpack.c.l.b16 %v3825
        %v4345 = vunpack.c.l.b16 %v3826
        %v4346 = vunpack.c.l.b16 %v3827
        %v4347 = vunpack.c.l.b16 %v3828
        %v4348 = vunpack.c.l.b16 %v3829
        %v4349 = vunpack.c.l.b16 %v3830
        %v4350 = vunpack.c.l.b16 %v3831
        %v4351 = vunpack.c.l.b16 %v3832
        %v4352 = vunpack.c.l.b16 %v3833
        %v4353 = vunpack.c.l.b16 %v3834
        %v4354 = vunpack.c.l.b16 %v3835
        %v4355 = vunpack.c.l.b16 %v3836
        %v4356 = vunpack.c.l.b16 %v3837
        %v4357 = vunpack.c.l.b16 %v3838
        %v4358 = vunpack.c.l.b16 %v3839
        %v4359 = vunpack.c.l.b16 %v3840
        %v4360 = vunpack.c.l.b16 %v3841
        %v4361 = vunpack.c.l.b16 %v3842
        %v4362 = vunpack.c.l.b16 %v3843
        %v4363 = vunpack.c.l.b16 %v3844
        %v4364 = vunpack.c.l.b16 %v3845
        %v4365 = vunpack.c.l.b16 %v3846
        %v4366 = vunpack.c.l.b16 %v3847
        %v4367 = vunpack.c.l.b16 %v3848
        %v4368 = vunpack.c.l.b16 %v3849
        %v4369 = vunpack.c.l.b16 %v3850
        %v4370 = vunpack.c.l.b16 %v3851
        %v4371 = vunpack.c.l.b16 %v3852
        %v4372 = vunpack.c.l.b16 %v3853
        %v4373 = vunpack.c.l.b16 %v3854
        %v4374 = vunpack.c.l.b16 %v3855
        %v4375 = vunpack.c.l.b16 %v3856
        %v4376 = vunpack.c.l.b16 %v3857
        %v4377 = vunpack.c.l.b16 %v3858
        %v4378 = vunpack.c.l.b16 %v3859
        %v4379 = vunpack.c.l.b16 %v3860
        %v4380 = vunpack.c.l.b16 %v3861
        %v4381 = vunpack.c.l.b16 %v3862
        %v4382 = vunpack.c.l.b16 %v3863
        %v4383 = vunpack.c.l.b16 %v3864
        %v4384 = vunpack.c.l.b16 %v3865
        %v4385 = vunpack.c.l.b16 %v3866
        %v4386 = vunpack.c.l.b16 %v3867
        %v4387 = vunpack.c.l.b16 %v3868
        %v4388 = vunpack.c.l.b16 %v3869
        %v4389 = vunpack.c.l.b16 %v3870
        %v4390 = vunpack.c.l.b16 %v3871
        %v4391 = vunpack.c.l.b16 %v3872
        %v4392 = vunpack.c.l.b16 %v3873
        %v4393 = vunpack.c.l.b16 %v3874
        %v4394 = vunpack.c.l.b16 %v3875
        %v4395 = vunpack.c.l.b16 %v3876
        %v4396 = vunpack.c.l.b16 %v3877
        %v4397 = vunpack.c.l.b16 %v3878
        %v4398 = vunpack.c.l.b16 %v3879
        %v4399 = vunpack.c.l.b16 %v3880
        %v4400 = vunpack.c.l.b16 %v3881
        %v4401 = vunpack.c.l.b16 %v3882
        %v4402 = vunpack.c.l.b16 %v3883
        %v4403 = vunpack.c.l.b16 %v3884
        %v4404 = vunpack.c.l.b16 %v3885
        %v4405 = vunpack.c.l.b16 %v3886
        %v4406 = vunpack.c.l.b16 %v3887
        %v4407 = vunpack.c.l.b16 %v3888
        %v4408 = vunpack.c.l.b16 %v3889
        %v4409 = vunpack.c.l.b16 %v3890
        %v4410 = vunpack.c.l.b16 %v3891
        %v4411 = vunpack.c.l.b16 %v3892
        %v4412 = vunpack.c.l.b16 %v3893
        %v4413 = vunpack.c.l.b16 %v3894
        %v4414 = vunpack.c.l.b16 %v3895
        %v4415 = vunpack.c.l.b16 %v3896
        %v4416 = vunpack.c.l.b16 %v3897
        %v4417 = vunpack.c.l.b16 %v3898
        %v4418 = vunpack.c.l.b16 %v3899
        %v4419 = vunpack.c.l.b16 %v3900
        %v4420 = vunpack.c.l.b16 %v3901
        %v4421 = vunpack.c.l.b16 %v3902
        %v4422 = vunpack.c.l.b16 %v3903
        %v4423 = vunpack.c.l.b16 %v3904
        %v4424 = vunpack.c.l.b16 %v3905
        %v4425 = vunpack.c.l.b16 %v3906
        %v4426 = vunpack.c.l.b16 %v3907
        %v4427 = vunpack.c.l.b16 %v3908
        %v4428 = vunpack.c.l.b16 %v3909
        %v4429 = vunpack.c.l.b16 %v3910
        %v4430 = vunpack.c.l.b16 %v3911
        %v4431 = vunpack.c.l.b16 %v3912
        %v4432 = vunpack.c.l.b16 %v3913
        %v4433 = vunpack.c.l.b16 %v3914
        %v4434 = vunpack.c.l.b16 %v3915
        %v4435 = vunpack.c.l.b16 %v3916
        %v4436 = vunpack.c.l.b16 %v3917
        %v4437 = vunpack.c.l.b16 %v3918
        %v4438 = vunpack.c.l.b16 %v3919
        %v4439 = vunpack.c.l.b16 %v3920
        %v4440 = vunpack.c.l.b16 %v3921
        %v4441 = vunpack.c.l.b16 %v3922
        %v4442 = vunpack.c.l.b16 %v3923
        %v4443 = vunpack.c.l.b16 %v3924
        %v4444 = vunpack.c.l.b16 %v3925
        %v4445 = vunpack.c.l.b16 %v3926
        %v4446 = vpack.c.b16 %v4191, %v4190
        %v4447 = vpack.c.b16 %v4193, %v4192
        %v4448 = vpack.c.b16 %v4195, %v4194
        %v4449 = vpack.c.b16 %v4197, %v4196
        %v4450 = vpack.c.b16 %v4199, %v4198
        %v4451 = vpack.c.b16 %v4201, %v4200
        %v4452 = vpack.c.b16 %v4203, %v4202
        %v4453 = vpack.c.b16 %v4205, %v4204
        %v4454 = vpack.c.b16 %v4207, %v4206
        %v4455 = vpack.c.b16 %v4209, %v4208
        %v4456 = vpack.c.b16 %v4211, %v4210
        %v4457 = vpack.c.b16 %v4213, %v4212
        %v4458 = vpack.c.b16 %v4215, %v4214
        %v4459 = vpack.c.b16 %v4217, %v4216
        %v4460 = vpack.c.b16 %v4219, %v4218
        %v4461 = vpack.c.b16 %v4221, %v4220
        %v4462 = vpack.c.b16 %v4223, %v4222
        %v4463 = vpack.c.b16 %v4225, %v4224
        %v4464 = vpack.c.b16 %v4227, %v4226
        %v4465 = vpack.c.b16 %v4229, %v4228
        %v4466 = vpack.c.b16 %v4231, %v4230
        %v4467 = vpack.c.b16 %v4233, %v4232
        %v4468 = vpack.c.b16 %v4235, %v4234
        %v4469 = vpack.c.b16 %v4237, %v4236
        %v4470 = vpack.c.b16 %v4239, %v4238
        %v4471 = vpack.c.b16 %v4241, %v4240
        %v4472 = vpack.c.b16 %v4243, %v4242
        %v4473 = vpack.c.b16 %v4245, %v4244
        %v4474 = vpack.c.b16 %v4247, %v4246
        %v4475 = vpack.c.b16 %v4249, %v4248
        %v4476 = vpack.c.b16 %v4251, %v4250
        %v4477 = vpack.c.b16 %v4253, %v4252
        %v4478 = vpack.c.b16 %v4255, %v4254
        %v4479 = vpack.c.b16 %v4257, %v4256
        %v4480 = vpack.c.b16 %v4259, %v4258
        %v4481 = vpack.c.b16 %v4261, %v4260
        %v4482 = vpack.c.b16 %v4263, %v4262
        %v4483 = vpack.c.b16 %v4265, %v4264
        %v4484 = vpack.c.b16 %v4267, %v4266
        %v4485 = vpack.c.b16 %v4269, %v4268
        %v4486 = vpack.c.b16 %v4271, %v4270
        %v4487 = vpack.c.b16 %v4273, %v4272
        %v4488 = vpack.c.b16 %v4275, %v4274
        %v4489 = vpack.c.b16 %v4277, %v4276
        %v4490 = vpack.c.b16 %v4279, %v4278
        %v4491 = vpack.c.b16 %v4281, %v4280
        %v4492 = vpack.c.b16 %v4283, %v4282
        %v4493 = vpack.c.b16 %v4285, %v4284
        %v4494 = vpack.c.b16 %v4287, %v4286
        %v4495 = vpack.c.b16 %v4289, %v4288
        %v4496 = vpack.c.b16 %v4291, %v4290
        %v4497 = vpack.c.b16 %v4293, %v4292
        %v4498 = vpack.c.b16 %v4295, %v4294
        %v4499 = vpack.c.b16 %v4297, %v4296
        %v4500 = vpack.c.b16 %v4299, %v4298
        %v4501 = vpack.c.b16 %v4301, %v4300
        %v4502 = vpack.c.b16 %v4303, %v4302
        %v4503 = vpack.c.b16 %v4305, %v4304
        %v4504 = vpack.c.b16 %v4307, %v4306
        %v4505 = vpack.c.b16 %v4309, %v4308
        %v4506 = vpack.c.b16 %v4311, %v4310
        %v4507 = vpack.c.b16 %v4313, %v4312
        %v4508 = vpack.c.b16 %v4315, %v4314
        %v4509 = vpack.c.b16 %v4317, %v4316
        %v4510 = vpack.c.b16 %v4319, %v4318
        %v4511 = vpack.c.b16 %v4321, %v4320
        %v4512 = vpack.c.b16 %v4323, %v4322
        %v4513 = vpack.c.b16 %v4325, %v4324
        %v4514 = vpack.c.b16 %v4327, %v4326
        %v4515 = vpack.c.b16 %v4329, %v4328
        %v4516 = vpack.c.b16 %v4331, %v4330
        %v4517 = vpack.c.b16 %v4333, %v4332
        %v4518 = vpack.c.b16 %v4335, %v4334
        %v4519 = vpack.c.b16 %v4337, %v4336
        %v4520 = vpack.c.b16 %v4339, %v4338
        %v4521 = vpack.c.b16 %v4341, %v4340
        %v4522 = vpack.c.b16 %v4343, %v4342
        %v4523 = vpack.c.b16 %v4345, %v4344
        %v4524 = vpack.c.b16 %v4347, %v4346
        %v4525 = vpack.c.b16 %v4349, %v4348
        %v4526 = vpack.c.b16 %v4351, %v4350
        %v4527 = vpack.c.b16 %v4353, %v4352
        %v4528 = vpack.c.b16 %v4355, %v4354
        %v4529 = vpack.c.b16 %v4357, %v4356
        %v4530 = vpack.c.b16 %v4359, %v4358
        %v4531 = vpack.c.b16 %v4361, %v4360
        %v4532 = vpack.c.b16 %v4363, %v4362
        %v4533 = vpack.c.b16 %v4365, %v4364
        %v4534 = vpack.c.b16 %v4367, %v4366
        %v4535 = vpack.c.b16 %v4369, %v4368
        %v4536 = vpack.c.b16 %v4371, %v4370
        %v4537 = vpack.c.b16 %v4373, %v4372
        %v4538 = vpack.c.b16 %v4375, %v4374
        %v4539 = vpack.c.b16 %v4377, %v4376
        %v4540 = vpack.c.b16 %v4379, %v4378
        %v4541 = vpack.c.b16 %v4381, %v4380
        %v4542 = vpack.c.b16 %v4383, %v4382
        %v4543 = vpack.c.b16 %v4385, %v4384
        %v4544 = vpack.c.b16 %v4387, %v4386
        %v4545 = vpack.c.b16 %v4389, %v4388
        %v4546 = vpack.c.b16 %v4391, %v4390
        %v4547 = vpack.c.b16 %v4393, %v4392
        %v4548 = vpack.c.b16 %v4395, %v4394
        %v4549 = vpack.c.b16 %v4397, %v4396
        %v4550 = vpack.c.b16 %v4399, %v4398
        %v4551 = vpack.c.b16 %v4401, %v4400
        %v4552 = vpack.c.b16 %v4403, %v4402
        %v4553 = vpack.c.b16 %v4405, %v4404
        %v4554 = vpack.c.b16 %v4407, %v4406
        %v4555 = vpack.c.b16 %v4409, %v4408
        %v4556 = vpack.c.b16 %v4411, %v4410
        %v4557 = vpack.c.b16 %v4413, %v4412
        %v4558 = vpack.c.b16 %v4415, %v4414
        %v4559 = vpack.c.b16 %v4417, %v4416
        %v4560 = vpack.c.b16 %v4419, %v4418
        %v4561 = vpack.c.b16 %v4421, %v4420
        %v4562 = vpack.c.b16 %v4423, %v4422
        %v4563 = vpack.c.b16 %v4425, %v4424
        %v4564 = vpack.c.b16 %v4427, %v4426
        %v4565 = vpack.c.b16 %v4429, %v4428
        %v4566 = vpack.c.b16 %v4431, %v4430
        %v4567 = vpack.c.b16 %v4433, %v4432
        %v4568 = vpack.c.b16 %v4435, %v4434
        %v4569 = vpack.c.b16 %v4437, %v4436
        %v4570 = vpack.c.b16 %v4439, %v4438
        %v4571 = vpack.c.b16 %v4441, %v4440
        %v4572 = vpack.c.b16 %v4443, %v4442
        %v4573 = vpack.c.b16 %v4445, %v4444
        %4702 = vmatprep.subr.bf16.mxu0 0
        %4703 = vmatpush1.bf16.msra.mxu0 %v4453
        %4704 = vmatprep.subr.bf16.mxu0 0
        %4705 = vmatpush1.bf16.msra.mxu0 %v4452
        %4706 = vmatprep.subr.bf16.mxu0 0
        %4707 = vmatpush1.bf16.msra.mxu0 %v4451
        %4708 = vmatprep.subr.bf16.mxu0 0
        %4709 = vmatpush1.bf16.msra.mxu0 %v4450
        %4710 = vmatprep.subr.bf16.mxu0 0
        %4711 = vmatpush1.bf16.msra.mxu0 %v4449
        %4712 = vmatprep.subr.bf16.mxu0 0
        %4713 = vmatpush1.bf16.msra.mxu0 %v4448
        %4714 = vmatprep.subr.bf16.mxu0 0
        %4715 = vmatpush1.bf16.msra.mxu0 %v4447
        %4716 = vmatprep.subr.bf16.mxu0 0
        %4717 = vmatpush1.bf16.msra.mxu0 %v4446
        %4718 = vmatprep.subr.bf16.mxu0 0
        %4719 = vmatpush2.bf16.msra.mxu0 %v4461
        %4720 = vmatprep.subr.bf16.mxu0 0
        %4721 = vmatpush2.bf16.msra.mxu0 %v4460
        %4722 = vmatprep.subr.bf16.mxu0 0
        %4723 = vmatpush2.bf16.msra.mxu0 %v4459
        %4724 = vmatprep.subr.bf16.mxu0 0
        %4725 = vmatpush2.bf16.msra.mxu0 %v4458
        %4726 = vmatprep.subr.bf16.mxu0 0
        %4727 = vmatpush2.bf16.msra.mxu0 %v4457
        %4728 = vmatprep.subr.bf16.mxu0 0
        %4729 = vmatpush2.bf16.msra.mxu0 %v4456
        %4730 = vmatprep.subr.bf16.mxu0 0
        %4731 = vmatpush2.bf16.msra.mxu0 %v4455
        %4732 = vmatprep.subr.bf16.mxu0 0
        %4733 = vmatpush2.bf16.msra.mxu0 %v4454
        %4734 = vmatprep.mubr.bf16.mxu0 %v3656
        %4735 = vmatmul.mubr.bf16.gmra.mxu0 %v3655
        %v4736 = vpop.f32.mrf.mxu0
        %v4737 = vadd.f32 %v3932, %v4736
        %v4738 = vpop.f32.mrf.mxu0
        %v4739 = vpop.f32.mrf.mxu0
        %v4740 = vadd.f32 %v3932, %v4739
        %v4741 = vpop.f32.mrf.mxu0
        %4742 = vdwg.mxu0
        %4743 = vmatprep.subr.bf16.mxu0 0
        %4744 = vmatpush1.bf16.msra.mxu0 %v4469
        %4745 = vmatprep.subr.bf16.mxu0 0
        %4746 = vmatpush1.bf16.msra.mxu0 %v4468
        %4747 = vmatprep.subr.bf16.mxu0 0
        %4748 = vmatpush1.bf16.msra.mxu0 %v4467
        %4749 = vmatprep.subr.bf16.mxu0 0
        %4750 = vmatpush1.bf16.msra.mxu0 %v4466
        %4751 = vmatprep.subr.bf16.mxu0 0
        %4752 = vmatpush1.bf16.msra.mxu0 %v4465
        %4753 = vmatprep.subr.bf16.mxu0 0
        %4754 = vmatpush1.bf16.msra.mxu0 %v4464
        %4755 = vmatprep.subr.bf16.mxu0 0
        %4756 = vmatpush1.bf16.msra.mxu0 %v4463
        %4757 = vmatprep.subr.bf16.mxu0 0
        %4758 = vmatpush1.bf16.msra.mxu0 %v4462
        %4759 = vmatprep.subr.bf16.mxu0 0
        %4760 = vmatpush2.bf16.msra.mxu0 %v4477
        %4761 = vmatprep.subr.bf16.mxu0 0
        %4762 = vmatpush2.bf16.msra.mxu0 %v4476
        %4763 = vmatprep.subr.bf16.mxu0 0
        %4764 = vmatpush2.bf16.msra.mxu0 %v4475
        %4765 = vmatprep.subr.bf16.mxu0 0
        %4766 = vmatpush2.bf16.msra.mxu0 %v4474
        %4767 = vmatprep.subr.bf16.mxu0 0
        %4768 = vmatpush2.bf16.msra.mxu0 %v4473
        %4769 = vmatprep.subr.bf16.mxu0 0
        %4770 = vmatpush2.bf16.msra.mxu0 %v4472
        %4771 = vmatprep.subr.bf16.mxu0 0
        %4772 = vmatpush2.bf16.msra.mxu0 %v4471
        %4773 = vmatprep.subr.bf16.mxu0 0
        %4774 = vmatpush2.bf16.msra.mxu0 %v4470
        %4775 = vmatprep.mubr.bf16.mxu0 %v3658
        %4776 = vmatmul.mubr.bf16.gmra.mxu0 %v3657
        %v4777 = vpop.f32.mrf.mxu0
        %v4778 = vadd.f32 %v4737, %v4777
        %v4779 = vpop.f32.mrf.mxu0
        %v4780 = vpop.f32.mrf.mxu0
        %v4781 = vadd.f32 %v4740, %v4780
        %v4782 = vpop.f32.mrf.mxu0
        %4783 = vdwg.mxu0
        %4784 = vmatprep.subr.bf16.mxu0 0
        %4785 = vmatpush1.bf16.msra.mxu0 %v4485
        %4786 = vmatprep.subr.bf16.mxu0 0
        %4787 = vmatpush1.bf16.msra.mxu0 %v4484
        %4788 = vmatprep.subr.bf16.mxu0 0
        %4789 = vmatpush1.bf16.msra.mxu0 %v4483
        %4790 = vmatprep.subr.bf16.mxu0 0
        %4791 = vmatpush1.bf16.msra.mxu0 %v4482
        %4792 = vmatprep.subr.bf16.mxu0 0
        %4793 = vmatpush1.bf16.msra.mxu0 %v4481
        %4794 = vmatprep.subr.bf16.mxu0 0
        %4795 = vmatpush1.bf16.msra.mxu0 %v4480
        %4796 = vmatprep.subr.bf16.mxu0 0
        %4797 = vmatpush1.bf16.msra.mxu0 %v4479
        %4798 = vmatprep.subr.bf16.mxu0 0
        %4799 = vmatpush1.bf16.msra.mxu0 %v4478
        %4800 = vmatprep.subr.bf16.mxu0 0
        %4801 = vmatpush2.bf16.msra.mxu0 %v4493
        %4802 = vmatprep.subr.bf16.mxu0 0
        %4803 = vmatpush2.bf16.msra.mxu0 %v4492
        %4804 = vmatprep.subr.bf16.mxu0 0
        %4805 = vmatpush2.bf16.msra.mxu0 %v4491
        %4806 = vmatprep.subr.bf16.mxu0 0
        %4807 = vmatpush2.bf16.msra.mxu0 %v4490
        %4808 = vmatprep.subr.bf16.mxu0 0
        %4809 = vmatpush2.bf16.msra.mxu0 %v4489
        %4810 = vmatprep.subr.bf16.mxu0 0
        %4811 = vmatpush2.bf16.msra.mxu0 %v4488
        %4812 = vmatprep.subr.bf16.mxu0 0
        %4813 = vmatpush2.bf16.msra.mxu0 %v4487
        %4814 = vmatprep.subr.bf16.mxu0 0
        %4815 = vmatpush2.bf16.msra.mxu0 %v4486
        %4816 = vmatprep.mubr.bf16.mxu0 %v3660
        %4817 = vmatmul.mubr.bf16.gmra.mxu0 %v3659
        %v4818 = vpop.f32.mrf.mxu0
        %v4819 = vadd.f32 %v4778, %v4818
        %v4820 = vpop.f32.mrf.mxu0
        %v4821 = vpop.f32.mrf.mxu0
        %v4822 = vadd.f32 %v4781, %v4821
        %v4823 = vpop.f32.mrf.mxu0
        %4824 = vdwg.mxu0
        %4825 = vmatprep.subr.bf16.mxu0 0
        %4826 = vmatpush1.bf16.msra.mxu0 %v4501
        %4827 = vmatprep.subr.bf16.mxu0 0
        %4828 = vmatpush1.bf16.msra.mxu0 %v4500
        %4829 = vmatprep.subr.bf16.mxu0 0
        %4830 = vmatpush1.bf16.msra.mxu0 %v4499
        %4831 = vmatprep.subr.bf16.mxu0 0
        %4832 = vmatpush1.bf16.msra.mxu0 %v4498
        %4833 = vmatprep.subr.bf16.mxu0 0
        %4834 = vmatpush1.bf16.msra.mxu0 %v4497
        %4835 = vmatprep.subr.bf16.mxu0 0
        %4836 = vmatpush1.bf16.msra.mxu0 %v4496
        %4837 = vmatprep.subr.bf16.mxu0 0
        %4838 = vmatpush1.bf16.msra.mxu0 %v4495
        %4839 = vmatprep.subr.bf16.mxu0 0
        %4840 = vmatpush1.bf16.msra.mxu0 %v4494
        %4841 = vmatprep.subr.bf16.mxu0 0
        %4842 = vmatpush2.bf16.msra.mxu0 %v4509
        %4843 = vmatprep.subr.bf16.mxu0 0
        %4844 = vmatpush2.bf16.msra.mxu0 %v4508
        %4845 = vmatprep.subr.bf16.mxu0 0
        %4846 = vmatpush2.bf16.msra.mxu0 %v4507
        %4847 = vmatprep.subr.bf16.mxu0 0
        %4848 = vmatpush2.bf16.msra.mxu0 %v4506
        %4849 = vmatprep.subr.bf16.mxu0 0
        %4850 = vmatpush2.bf16.msra.mxu0 %v4505
        %4851 = vmatprep.subr.bf16.mxu0 0
        %4852 = vmatpush2.bf16.msra.mxu0 %v4504
        %4853 = vmatprep.subr.bf16.mxu0 0
        %4854 = vmatpush2.bf16.msra.mxu0 %v4503
        %4855 = vmatprep.subr.bf16.mxu0 0
        %4856 = vmatpush2.bf16.msra.mxu0 %v4502
        %4857 = vmatprep.mubr.bf16.mxu0 %v3662
        %4858 = vmatmul.mubr.bf16.gmra.mxu0 %v3661
        %v4859 = vpop.f32.mrf.mxu0
        %v4860 = vadd.f32 %v4819, %v4859
        %v4861 = vpop.f32.mrf.mxu0
        %v4862 = vpop.f32.mrf.mxu0
        %v4863 = vadd.f32 %v4822, %v4862
        %v4864 = vpop.f32.mrf.mxu0
        %4865 = vdwg.mxu0
        %4866 = vmatprep.subr.bf16.mxu0 0
        %4867 = vmatpush1.bf16.msra.mxu0 %v4517
        %4868 = vmatprep.subr.bf16.mxu0 0
        %4869 = vmatpush1.bf16.msra.mxu0 %v4516
        %4870 = vmatprep.subr.bf16.mxu0 0
        %4871 = vmatpush1.bf16.msra.mxu0 %v4515
        %4872 = vmatprep.subr.bf16.mxu0 0
        %4873 = vmatpush1.bf16.msra.mxu0 %v4514
        %4874 = vmatprep.subr.bf16.mxu0 0
        %4875 = vmatpush1.bf16.msra.mxu0 %v4513
        %4876 = vmatprep.subr.bf16.mxu0 0
        %4877 = vmatpush1.bf16.msra.mxu0 %v4512
        %4878 = vmatprep.subr.bf16.mxu0 0
        %4879 = vmatpush1.bf16.msra.mxu0 %v4511
        %4880 = vmatprep.subr.bf16.mxu0 0
        %4881 = vmatpush1.bf16.msra.mxu0 %v4510
        %4882 = vmatprep.subr.bf16.mxu0 0
        %4883 = vmatpush2.bf16.msra.mxu0 %v4525
        %4884 = vmatprep.subr.bf16.mxu0 0
        %4885 = vmatpush2.bf16.msra.mxu0 %v4524
        %4886 = vmatprep.subr.bf16.mxu0 0
        %4887 = vmatpush2.bf16.msra.mxu0 %v4523
        %4888 = vmatprep.subr.bf16.mxu0 0
        %4889 = vmatpush2.bf16.msra.mxu0 %v4522
        %4890 = vmatprep.subr.bf16.mxu0 0
        %4891 = vmatpush2.bf16.msra.mxu0 %v4521
        %4892 = vmatprep.subr.bf16.mxu0 0
        %4893 = vmatpush2.bf16.msra.mxu0 %v4520
        %4894 = vmatprep.subr.bf16.mxu0 0
        %4895 = vmatpush2.bf16.msra.mxu0 %v4519
        %4896 = vmatprep.subr.bf16.mxu0 0
        %4897 = vmatpush2.bf16.msra.mxu0 %v4518
        %4898 = vmatprep.mubr.bf16.mxu0 %v3664
        %4899 = vmatmul.mubr.bf16.gmra.mxu0 %v3663
        %v4900 = vpop.f32.mrf.mxu0
        %v4901 = vadd.f32 %v4860, %v4900
        %v4902 = vpop.f32.mrf.mxu0
        %v4903 = vpop.f32.mrf.mxu0
        %v4904 = vadd.f32 %v4863, %v4903
        %v4905 = vpop.f32.mrf.mxu0
        %4906 = vdwg.mxu0
        %4907 = vmatprep.subr.bf16.mxu0 0
        %4908 = vmatpush1.bf16.msra.mxu0 %v4533
        %4909 = vmatprep.subr.bf16.mxu0 0
        %4910 = vmatpush1.bf16.msra.mxu0 %v4532
        %4911 = vmatprep.subr.bf16.mxu0 0
        %4912 = vmatpush1.bf16.msra.mxu0 %v4531
        %4913 = vmatprep.subr.bf16.mxu0 0
        %4914 = vmatpush1.bf16.msra.mxu0 %v4530
        %4915 = vmatprep.subr.bf16.mxu0 0
        %4916 = vmatpush1.bf16.msra.mxu0 %v4529
        %4917 = vmatprep.subr.bf16.mxu0 0
        %4918 = vmatpush1.bf16.msra.mxu0 %v4528
        %4919 = vmatprep.subr.bf16.mxu0 0
        %4920 = vmatpush1.bf16.msra.mxu0 %v4527
        %4921 = vmatprep.subr.bf16.mxu0 0
        %4922 = vmatpush1.bf16.msra.mxu0 %v4526
        %4923 = vmatprep.subr.bf16.mxu0 0
        %4924 = vmatpush2.bf16.msra.mxu0 %v4541
        %4925 = vmatprep.subr.bf16.mxu0 0
        %4926 = vmatpush2.bf16.msra.mxu0 %v4540
        %4927 = vmatprep.subr.bf16.mxu0 0
        %4928 = vmatpush2.bf16.msra.mxu0 %v4539
        %4929 = vmatprep.subr.bf16.mxu0 0
        %4930 = vmatpush2.bf16.msra.mxu0 %v4538
        %4931 = vmatprep.subr.bf16.mxu0 0
        %4932 = vmatpush2.bf16.msra.mxu0 %v4537
        %4933 = vmatprep.subr.bf16.mxu0 0
        %4934 = vmatpush2.bf16.msra.mxu0 %v4536
        %4935 = vmatprep.subr.bf16.mxu0 0
        %4936 = vmatpush2.bf16.msra.mxu0 %v4535
        %4937 = vmatprep.subr.bf16.mxu0 0
        %4938 = vmatpush2.bf16.msra.mxu0 %v4534
        %4939 = vmatprep.mubr.bf16.mxu0 %v3666
        %4940 = vmatmul.mubr.bf16.gmra.mxu0 %v3665
        %v4941 = vpop.f32.mrf.mxu0
        %v4942 = vadd.f32 %v4901, %v4941
        %v4943 = vpop.f32.mrf.mxu0
        %v4944 = vpop.f32.mrf.mxu0
        %v4945 = vadd.f32 %v4904, %v4944
        %v4946 = vpop.f32.mrf.mxu0
        %4947 = vdwg.mxu0
        %4948 = vmatprep.subr.bf16.mxu0 0
        %4949 = vmatpush1.bf16.msra.mxu0 %v4549
        %4950 = vmatprep.subr.bf16.mxu0 0
        %4951 = vmatpush1.bf16.msra.mxu0 %v4548
        %4952 = vmatprep.subr.bf16.mxu0 0
        %4953 = vmatpush1.bf16.msra.mxu0 %v4547
        %4954 = vmatprep.subr.bf16.mxu0 0
        %4955 = vmatpush1.bf16.msra.mxu0 %v4546
        %4956 = vmatprep.subr.bf16.mxu0 0
        %4957 = vmatpush1.bf16.msra.mxu0 %v4545
        %4958 = vmatprep.subr.bf16.mxu0 0
        %4959 = vmatpush1.bf16.msra.mxu0 %v4544
        %4960 = vmatprep.subr.bf16.mxu0 0
        %4961 = vmatpush1.bf16.msra.mxu0 %v4543
        %4962 = vmatprep.subr.bf16.mxu0 0
        %4963 = vmatpush1.bf16.msra.mxu0 %v4542
        %4964 = vmatprep.subr.bf16.mxu0 0
        %4965 = vmatpush2.bf16.msra.mxu0 %v4557
        %4966 = vmatprep.subr.bf16.mxu0 0
        %4967 = vmatpush2.bf16.msra.mxu0 %v4556
        %4968 = vmatprep.subr.bf16.mxu0 0
        %4969 = vmatpush2.bf16.msra.mxu0 %v4555
        %4970 = vmatprep.subr.bf16.mxu0 0
        %4971 = vmatpush2.bf16.msra.mxu0 %v4554
        %4972 = vmatprep.subr.bf16.mxu0 0
        %4973 = vmatpush2.bf16.msra.mxu0 %v4553
        %4974 = vmatprep.subr.bf16.mxu0 0
        %4975 = vmatpush2.bf16.msra.mxu0 %v4552
        %4976 = vmatprep.subr.bf16.mxu0 0
        %4977 = vmatpush2.bf16.msra.mxu0 %v4551
        %4978 = vmatprep.subr.bf16.mxu0 0
        %4979 = vmatpush2.bf16.msra.mxu0 %v4550
        %4980 = vmatprep.mubr.bf16.mxu0 %v3668
        %4981 = vmatmul.mubr.bf16.gmra.mxu0 %v3667
        %v4982 = vpop.f32.mrf.mxu0
        %v4983 = vadd.f32 %v4942, %v4982
        %v4984 = vpop.f32.mrf.mxu0
        %v4985 = vpop.f32.mrf.mxu0
        %v4986 = vadd.f32 %v4945, %v4985
        %v4987 = vpop.f32.mrf.mxu0
        %4988 = vdwg.mxu0
        %4989 = vmatprep.subr.bf16.mxu0 0
        %4990 = vmatpush1.bf16.msra.mxu0 %v4565
        %4991 = vmatprep.subr.bf16.mxu0 0
        %4992 = vmatpush1.bf16.msra.mxu0 %v4564
        %4993 = vmatprep.subr.bf16.mxu0 0
        %4994 = vmatpush1.bf16.msra.mxu0 %v4563
        %4995 = vmatprep.subr.bf16.mxu0 0
        %4996 = vmatpush1.bf16.msra.mxu0 %v4562
        %4997 = vmatprep.subr.bf16.mxu0 0
        %4998 = vmatpush1.bf16.msra.mxu0 %v4561
        %4999 = vmatprep.subr.bf16.mxu0 0
        %5000 = vmatpush1.bf16.msra.mxu0 %v4560
        %5001 = vmatprep.subr.bf16.mxu0 0
        %5002 = vmatpush1.bf16.msra.mxu0 %v4559
        %5003 = vmatprep.subr.bf16.mxu0 0
        %5004 = vmatpush1.bf16.msra.mxu0 %v4558
        %5005 = vmatprep.subr.bf16.mxu0 0
        %5006 = vmatpush2.bf16.msra.mxu0 %v4573
        %5007 = vmatprep.subr.bf16.mxu0 0
        %5008 = vmatpush2.bf16.msra.mxu0 %v4572
        %5009 = vmatprep.subr.bf16.mxu0 0
        %5010 = vmatpush2.bf16.msra.mxu0 %v4571
        %5011 = vmatprep.subr.bf16.mxu0 0
        %5012 = vmatpush2.bf16.msra.mxu0 %v4570
        %5013 = vmatprep.subr.bf16.mxu0 0
        %5014 = vmatpush2.bf16.msra.mxu0 %v4569
        %5015 = vmatprep.subr.bf16.mxu0 0
        %5016 = vmatpush2.bf16.msra.mxu0 %v4568
        %5017 = vmatprep.subr.bf16.mxu0 0
        %5018 = vmatpush2.bf16.msra.mxu0 %v4567
        %5019 = vmatprep.subr.bf16.mxu0 0
        %5020 = vmatpush2.bf16.msra.mxu0 %v4566
        %5021 = vmatprep.mubr.bf16.mxu0 %v3670
        %5022 = vmatmul.mubr.bf16.gmra.mxu0 %v3669
        %v5023 = vpop.f32.mrf.mxu0
        %v5024 = vadd.f32 %v4983, %v5023
        %v5025 = vpop.f32.mrf.mxu0
        %v5026 = vpop.f32.mrf.mxu0
        %v5027 = vadd.f32 %v4986, %v5026
        %v5028 = vpop.f32.mrf.mxu0
        %5029 = vdwg.mxu0
        %v5030 = vadd.f32 %v2805, %v5024
        %v5031 = vadd.f32 %v2806, %v5027
        %v5032 = vld [vmem:[%s986] sm:$0x1]
        %v5033 = vld [vmem:[%s989] sm:$0x1]
        %v5034 = vsel %vm1112, %v5030, 0.0
        %5035 = vadd.xlane.f32.xlu0 %v5034
        %v5036 = vpop.xlane.xlu0 %5035
        %v5037 = vsel %vm1112, %v5031, 0.0
        %5038 = vadd.xlane.f32.xlu0 %v5037
        %v5039 = vpop.xlane.xlu0 %5038
        %v5040 = vmul.f32 %v5036, %v2770
        %v5041 = vmul.f32 %v5039, %v2770
        %v5042 = vsub.f32 %v5030, %v5040
        %v5043 = vsub.f32 %v5031, %v5041
        %v5044 = vmul.f32 %v5042, %v5042
        %v5045 = vmul.f32 %v5043, %v5043
        %v5046 = vsel %vm1112, %v5044, 0.0
        %5047 = vadd.xlane.f32.xlu0 %v5046
        %v5048 = vpop.xlane.xlu0 %5047
        %v5049 = vsel %vm1112, %v5045, 0.0
        %5050 = vadd.xlane.f32.xlu0 %v5049
        %v5051 = vpop.xlane.xlu0 %5050
        %v5052 = vmul.f32 %v5048, %v2770
        %v5053 = vmul.f32 %v5051, %v2770
        %v5054 = vadd.f32 %v5052, 1e-05
        %v5055 = vadd.f32 %v5053, 1e-05
        %v5056 = vrsqrt.pop %v5054
        %v5057 = vrsqrt.pop %v5055
        %v5058 = vmul.f32 %v5042, %v5056
        %v5059 = vmul.f32 %v5043, %v5057
        %v5061 = vlaneseq
        %v5062 = vshrl.u32 %v5061, 7
        %v5063 = vsub.s32 0, %v5062
        %v5064 = vrot.slane %v5032, %v5063
        %v5066 = vmul.f32 %v5058, %v5064
        %v5067 = vmul.f32 %v5059, %v5064
        %v5069 = vlaneseq
        %v5070 = vshrl.u32 %v5069, 7
        %v5071 = vsub.s32 0, %v5070
        %v5072 = vrot.slane %v5033, %v5071
        %v5074 = vadd.f32 %v5066, %v5072
        %v5075 = vadd.f32 %v5067, %v5072
        %5076 = vst.msk [vmem:[%s1067] sm:$0xff] %vm1112, %v5074
        %5077 = vst.msk [vmem:[%s1067 + $0x8] sm:$0xff] %vm1112, %v5075
        %v5078 = vld [vmem:[%s21] sm:$0x1]
        %v5079 = vpack.c.bf16 %v5075, %v5074
        %v5080 = vld [vmem:[#allocation3] sm:$0x1]
        %5082 = vset.pattern.permute.xlu0 0
        %5083 = vperm.xlu0 %5082, %v5080
        %v5084 = vpop.permute.xlu0 %5083
        %v5086 = vlaneseq
        %v5087 = vshrl.u32 %v5086, 7
        %v5088 = vsub.s32 0, %v5087
        %v5089 = vrot.slane %v5084, %v5088
        %v5091 = vsel %vm1112, %v5078, 0
        %v5094 = vsel %vm1112, %v5079, 0
        %5096 = vmatprep.subr.bf16.mxu0 0
        %5097 = vmatpush1.bf16.xpose.msra.mxu0 0
        %5098 = vmatprep.subr.bf16.mxu0 0
        %5099 = vmatpush1.bf16.xpose.msra.mxu0 0
        %5100 = vmatprep.subr.bf16.mxu0 0
        %5101 = vmatpush1.bf16.xpose.msra.mxu0 0
        %5102 = vmatprep.subr.bf16.mxu0 0
        %5103 = vmatpush1.bf16.xpose.msra.mxu0 0
        %5104 = vmatprep.subr.bf16.mxu0 0
        %5105 = vmatpush1.bf16.xpose.msra.mxu0 0
        %5106 = vmatprep.subr.bf16.mxu0 0
        %5107 = vmatpush1.bf16.xpose.msra.mxu0 0
        %5108 = vmatprep.subr.bf16.mxu0 0
        %5109 = vmatpush1.bf16.xpose.msra.mxu0 0
        %5110 = vmatprep.subr.bf16.mxu0 0
        %5111 = vmatpush1.bf16.xpose.msra.mxu0 %v5094
        %5112 = vmatprep.subr.bf16.mxu0 0
        %5113 = vmatpush2.bf16.xpose.msra.mxu0 0
        %5114 = vmatprep.subr.bf16.mxu0 0
        %5115 = vmatpush2.bf16.xpose.msra.mxu0 0
        %5116 = vmatprep.subr.bf16.mxu0 0
        %5117 = vmatpush2.bf16.xpose.msra.mxu0 0
        %5118 = vmatprep.subr.bf16.mxu0 0
        %5119 = vmatpush2.bf16.xpose.msra.mxu0 0
        %5120 = vmatprep.subr.bf16.mxu0 0
        %5121 = vmatpush2.bf16.xpose.msra.mxu0 0
        %5122 = vmatprep.subr.bf16.mxu0 0
        %5123 = vmatpush2.bf16.xpose.msra.mxu0 0
        %5124 = vmatprep.subr.bf16.mxu0 0
        %5125 = vmatpush2.bf16.xpose.msra.mxu0 0
        %5126 = vmatprep.subr.bf16.mxu0 0
        %5127 = vmatpush2.bf16.xpose.msra.mxu0 0
        %5128 = vmatprep.mubr.bf16.mxu0 0
        %5129 = vmatmul.mubr.bf16.gmra.mxu0 %v5091
        %v5130 = vpop.f32.mrf.mxu0
        %v5131 = vadd.f32 %v5089, %v5130
        %v5132 = vpop.f32.mrf.mxu0
        %v5133 = vpop.f32.mrf.mxu0
        %v5134 = vpop.f32.mrf.mxu0
        %5135 = vdwg.mxu0
        %vm5136 = vcmask 122880
        %5137 = vst.msk [vmem:[#allocation4] sm:$0x1] %vm5136, %v5131
        // Predicated region
        $region117: #{tpu_custom_call.1} parent=111 // pred_check
          %p5138 = pneg %p635
        $region118: #{tpu_custom_call.1} parent=111 // pred_check_branch
          %5140 = sbr.rel (%p5138) target = $region120
        $region119: #{tpu_custom_call.1} parent=111 // pred_region
          %s5142 = ssub.s32 16, 16
          %5143 = vsyncadd [#allocation5], %s5142
          %s5144 = smul.addr %s42, 16
          %s5145 = scalar_lea.hbm %s23, %s5144
          %s5147 = sshll.u32 [#allocation4], 4
          %s5148 = int_to_ptr.vmem [resolvable:$true] %s5147
          %5150 = dma.vmem_to_hbm [thread:$0]  %s5148, 16, %s5145, [#allocation5]
        $region120: #{tpu_custom_call.1} parent=111 // pred_fallthru
          _
        // Predicated region
        $region121: #{tpu_custom_call.1} parent=111 // pred_check
          %p5151 = pneg %p635
        $region122: #{tpu_custom_call.1} parent=111 // pred_check_branch
          %5153 = sbr.rel (%p5151) target = $region124
        $region123: #{tpu_custom_call.1} parent=111 // pred_region
          %5154 = dma.done [#allocation5], 16
        $region124: #{tpu_custom_call.1} parent=111 // pred_fallthru
          _
      $region112: #{tpu_custom_call.1} parent=5 // pred_fallthru
        _
      %p5155 = scmp.le.s32.totalorder 2, %s32
      // Predicated region
      $region125: #{tpu_custom_call.1} parent=5 // pred_check
        %p5156 = pneg %p5155
      $region126: #{tpu_custom_call.1} parent=5 // pred_check_branch
        %5158 = sbr.rel (%p5156) target = $region128
      $region127: #{tpu_custom_call.1} parent=5 // pred_region
        %s5159 = ssub.s32 %s32, 2
      $region128: #{tpu_custom_call.1} parent=5 // pred_fallthru
        _
    $region6: #{tpu_custom_call.1} parent=1 // loop_footer
      %s36 = sadd.s32 1, %s32
    $region7: #{tpu_custom_call.1} parent=1 // loop_footer_branch
      %31 = sbr.rel target = $region3
    $region8: #{tpu_custom_call.1} parent=1 // loop_exit
      _
    %5160 = vsyncpa [#allocation5], 1
    %s5161 = scalar_lea.sflag [#allocation5], 1
    %5162 = vsyncpa %s5161, 1

</llo_original>
